<compile_context>
chip_gen: v7x
topology: tpu7x:2x2x1
jax: 0.10.0
libtpu: 0.0.40
codegen_flags: <defaults>
</compile_context>

<pallas_src>
import functools

import jax
import jax.numpy as jnp
from jax.experimental import pallas as pl
from jax.experimental.pallas import tpu as pltpu

EPS = 1e-5
CPAD = 128                       # lane-dense padded channel width
VMEM_LIMIT = 32 * 1024 * 1024    # safe on v5e/v6e (128 MiB) and v7x (64 MiB)


def _round_up(x, m):
    return ((x + m - 1) // m) * m


def _full_block(shape):
    nd = len(shape)
    return pl.BlockSpec(shape, lambda i, _nd=nd: (0,) * _nd)


def _pad_cols(a, target):
    pad = target - a.shape[-1]
    return jnp.pad(a, ((0, 0), (0, pad))) if pad > 0 else a


# ---------------------------------------------------------------------------
# Fused kernel: 3x3 conv (im2col matmul) + BatchNorm(train) + ReLU + 2x2 maxpool
# ---------------------------------------------------------------------------
def conv_bn_relu_pool_kernel(p_ref, w_ref, g_ref, bt_ref, o_ref, *, mp, inv_count):
    """
    p_ref  : (4*Mp, K)  bf16  im2col patches; rows [g*Mp, (g+1)*Mp) are pool
                              member g; rows >= M inside each group are zero pad.
    w_ref  : (K, 128)   bf16  conv weight, output channels zero-padded to 128.
    g_ref  : (1, 128)   f32   BN gamma (zero-padded)
    bt_ref : (1, 128)   f32   BN beta  (zero-padded)
    o_ref  : (Mp, 128)  f32   pooled output (lane-dense)
    """
    # Single MXU matmul for all four pool members; f32 accumulation.
    # Conv bias is omitted: under training-mode BN it cancels exactly.
    y = jnp.dot(p_ref[...], w_ref[...], preferred_element_type=jnp.float32)

    # BatchNorm2d (training): per-channel batch stats over the 4*M valid
    # pre-pool pixels.  Zero-padded rows/channels contribute 0 to both sums,
    # so dividing by the true count (inv_count, baked in) is exact.
    s = jnp.sum(y, axis=0, keepdims=True)
    sq = jnp.sum(y * y, axis=0, keepdims=True)
    mean = s * inv_count
    var = jnp.maximum(sq * inv_count - mean * mean, 0.0)
    scale = g_ref[...] * jax.lax.rsqrt(var + EPS)
    shift = bt_ref[...] - mean * scale

    z = jnp.maximum(y * scale + shift, 0.0)          # BN + ReLU in f32 on VPU
    # 2x2 max pool = elementwise max over the four member groups (Mp % 8 == 0,
    # so these sublane slices are tile-aligned).
    z0 = z[0 * mp:1 * mp]
    z1 = z[1 * mp:2 * mp]
    z2 = z[2 * mp:3 * mp]
    z3 = z[3 * mp:4 * mp]
    o_ref[...] = jnp.maximum(jnp.maximum(z0, z1), jnp.maximum(z2, z3))


def linear_kernel(x_ref, w_ref, b_ref, o_ref):
    o_ref[...] = (jnp.dot(x_ref[...], w_ref[...],
                          preferred_element_type=jnp.float32) + b_ref[...])


# ---------------------------------------------------------------------------
# pallas_call wrappers
# ---------------------------------------------------------------------------
def _call_conv_block(patches, w, gamma, beta, m_valid, mp):
    c = w.shape[1]
    kernel = functools.partial(conv_bn_relu_pool_kernel,
                               mp=mp, inv_count=1.0 / (4.0 * m_valid))
    return pl.pallas_call(
        kernel,
        grid=(1,),
        in_specs=[_full_block(patches.shape), _full_block(w.shape),
                  _full_block(gamma.shape), _full_block(beta.shape)],
        out_specs=_full_block((mp, c)),
        out_shape=jax.ShapeDtypeStruct((mp, c), jnp.float32),
        compiler_params=pltpu.CompilerParams(
            dimension_semantics=("arbitrary",),
            vmem_limit_bytes=VMEM_LIMIT),
    )(patches, w, gamma, beta)


def _call_linear(x, w, b):
    n = x.shape[0]
    c = w.shape[1]
    return pl.pallas_call(
        linear_kernel,
        grid=(1,),
        in_specs=[_full_block(x.shape), _full_block(w.shape),
                  _full_block(b.shape)],
        out_specs=_full_block((n, c)),
        out_shape=jax.ShapeDtypeStruct((n, c), jnp.float32),
        compiler_params=pltpu.CompilerParams(
            dimension_semantics=("arbitrary",),
            vmem_limit_bytes=VMEM_LIMIT),
    )(x, w, b)


# ---------------------------------------------------------------------------
# Glue: im2col (3x3, stride 1, pad 1), rows grouped by 2x2 pool member, rows
# per group zero-padded up to a multiple of 8 (tile-aligned sublane slices).
# ---------------------------------------------------------------------------
def _im2col_pool_order(x_nhwc, dtype=jnp.bfloat16):
    N, H, W, Cin = x_nhwc.shape
    Ho, Wo = H // 2, W // 2
    xp = jnp.pad(x_nhwc, ((0, 0), (1, 1), (1, 1), (0, 0)))
    pats = [xp[:, kh:kh + H, kw:kw + W, :]
            for kh in range(3) for kw in range(3)]
    p = jnp.stack(pats, axis=-1)                 # (N, H, W, Cin, 9)
    K = Cin * 9
    p = p.reshape(N, H, W, K)                    # col index = ci*9 + kh*3 + kw
    p = p.reshape(N, Ho, 2, Wo, 2, K)
    p = jnp.transpose(p, (2, 4, 0, 1, 3, 5))     # (2, 2, N, Ho, Wo, K)
    M = N * Ho * Wo
    Mp = _round_up(M, 8)
    p = p.reshape(4, M, K)
    if Mp != M:
        p = jnp.pad(p, ((0, 0), (0, Mp - M), (0, 0)))
    return p.reshape(4 * Mp, K).astype(dtype), M, Mp, (N, Ho, Wo)


# ---------------------------------------------------------------------------
# Parameters (deterministic, shapes per MyConvNet.__init__)
# ---------------------------------------------------------------------------
def init_params(key):
    ks = jax.random.split(key, 10)
    p = {}
    p["w1"] = 0.30 * jax.random.normal(ks[0], (16, 1, 3, 3), jnp.float32)
    p["b1"] = 0.10 * jax.random.normal(ks[1], (16,), jnp.float32)
    p["g1"] = 1.0 + 0.10 * jax.random.normal(ks[2], (16,), jnp.float32)
    p["bt1"] = 0.10 * jax.random.normal(ks[3], (16,), jnp.float32)
    p["w2"] = 0.10 * jax.random.normal(ks[4], (32, 16, 3, 3), jnp.float32)
    p["b2"] = 0.10 * jax.random.normal(ks[5], (32,), jnp.float32)
    p["g2"] = 1.0 + 0.10 * jax.random.normal(ks[6], (32,), jnp.float32)
    p["bt2"] = 0.10 * jax.random.normal(ks[7], (32,), jnp.float32)
    p["wl"] = 0.05 * jax.random.normal(ks[8], (10, 7 * 7 * 32), jnp.float32)
    p["bl"] = 0.10 * jax.random.normal(ks[9], (10,), jnp.float32)
    return p


@jax.jit
def myconvnet_forward(x_nchw, params):
    x = jnp.transpose(x_nchw, (0, 2, 3, 1))              # NCHW -> NHWC
    N = x.shape[0]

    # ----- conv1 + bn1 + relu + pool1 (fused Pallas kernel) -----
    # conv bias b1 is intentionally unused: it cancels under training-mode BN.
    p1, M1, Mp1, (_, H1, W1) = _im2col_pool_order(x)
    w1 = _pad_cols(params["w1"].reshape(16, 9).T, CPAD).astype(jnp.bfloat16)
    g1 = _pad_cols(params["g1"].reshape(1, 16), CPAD)
    bt1 = _pad_cols(params["bt1"].reshape(1, 16), CPAD)
    o1 = _call_conv_block(p1, w1, g1, bt1, M1, Mp1)       # (Mp1, 128) f32
    h1 = o1[:M1, :16].reshape(N, H1, W1, 16)              # (N, 14, 14, 16) NHWC

    # ----- conv2 + bn2 + relu + pool2 (fused Pallas kernel) -----
    p2, M2, Mp2, (_, H2, W2) = _im2col_pool_order(h1)
    w2 = _pad_cols(params["w2"].reshape(32, 16 * 9).T, CPAD).astype(jnp.bfloat16)
    g2 = _pad_cols(params["g2"].reshape(1, 32), CPAD)
    bt2 = _pad_cols(params["bt2"].reshape(1, 32), CPAD)
    o2 = _call_conv_block(p2, w2, g2, bt2, M2, Mp2)       # (Mp2, 128) f32

    # ----- lin2 (Pallas matmul kernel) -----
    # torch.flatten(p2, 1) flattens in (C, H, W) order.  Instead of transposing
    # the activations, the permutation is baked into the linear weight:
    #   x_lin[n, s*32 + c]   = pooled[n*49 + s, c]          (s = h*7 + w)
    #   wl_perm[s*32 + c, o] = wl[o, c*49 + s]
    S = H2 * W2                                           # 49
    x_lin = o2[:M2, :32].reshape(N, S * 32).astype(jnp.bfloat16)
    wl_perm = jnp.transpose(params["wl"].reshape(10, 32, S), (2, 1, 0))
    wl_perm = _pad_cols(wl_perm.reshape(S * 32, 10), CPAD).astype(jnp.bfloat16)
    bl = _pad_cols(params["bl"].reshape(1, 10), CPAD)
    out_pad = _call_linear(x_lin, wl_perm, bl)            # (N, 128) f32
    return out_pad[:, :10]


if __name__ == "__main__":
    key = jax.random.PRNGKey(0)
    kx, kp = jax.random.split(key)
    # MNIST-like input (required by lin2's 7*7*32 = 28/2/2 spatial size).
    x = jax.random.normal(kx, (2, 1, 28, 28), jnp.float32)   # NCHW as in PyTorch
    params = init_params(kp)
    out = myconvnet_forward(x, params)
    jax.block_until_ready(out)
    assert out.shape == (2, 10) and out.dtype == jnp.float32
    assert bool(jnp.isfinite(out).all())
    print("KERNEL_OK")
</pallas_src>

<mosaic_0001>
module attributes {stable_mosaic.version = 11 : i64} {
  func.func @conv_bn_relu_pool_kernel(%arg0: i32, %arg1: memref<1568x9xbf16, #tpu.memory_space<vmem>>, %arg2: memref<9x128xbf16, #tpu.memory_space<vmem>>, %arg3: memref<1x128xf32, #tpu.memory_space<vmem>>, %arg4: memref<1x128xf32, #tpu.memory_space<vmem>>, %arg5: memref<392x128xf32, #tpu.memory_space<vmem>>) attributes {dimension_semantics = [#tpu.dimension_semantics<arbitrary>], iteration_bounds = array<i64: 1>, scalar_prefetch = 0 : i64, scratch_operands = 0 : i64, tpu.core_type = #tpu.core_type<tc>, window_params = [{pipeline_mode = #tpu.pipeline_mode<synchronous>, transform_indices = @transform_0, window_bounds = array<i64: 1568, 9>}, {pipeline_mode = #tpu.pipeline_mode<synchronous>, transform_indices = @transform_1, window_bounds = array<i64: 9, 128>}, {pipeline_mode = #tpu.pipeline_mode<synchronous>, transform_indices = @transform_2, window_bounds = array<i64: 1, 128>}, {pipeline_mode = #tpu.pipeline_mode<synchronous>, transform_indices = @transform_3, window_bounds = array<i64: 1, 128>}, {pipeline_mode = #tpu.pipeline_mode<synchronous>, transform_indices = @transform_4, window_bounds = array<i64: 392, 128>}]} {
    %c0 = arith.constant 0 : index
    %c0_0 = arith.constant 0 : index
    %0 = vector.load %arg1[%c0, %c0_0] : memref<1568x9xbf16, #tpu.memory_space<vmem>>, vector<1568x9xbf16>
    %c0_1 = arith.constant 0 : index
    %c0_2 = arith.constant 0 : index
    %1 = vector.load %arg2[%c0_1, %c0_2] : memref<9x128xbf16, #tpu.memory_space<vmem>>, vector<9x128xbf16>
    %cst = arith.constant dense<0.000000e+00> : vector<1568x128xf32>
    %2 = tpu.matmul %0, %1, %cst {dimension_numbers = #tpu.dot_dimension_numbers<[1], [0], [0], [1], [0, 0, 1, 1], [], []>} : vector<1568x9xbf16>, vector<9x128xbf16>, vector<1568x128xf32> -> vector<1568x128xf32>
    %cst_3 = arith.constant dense<0.000000e+00> : vector<128xf32>
    %3 = vector.multi_reduction <add>, %2, %cst_3 [0] : vector<1568x128xf32> to vector<128xf32>
    %4 = vector.shape_cast %3 : vector<128xf32> to vector<1x128xf32>
    %5 = arith.mulf %2, %2 : vector<1568x128xf32>
    %cst_4 = arith.constant dense<0.000000e+00> : vector<128xf32>
    %6 = vector.multi_reduction <add>, %5, %cst_4 [0] : vector<1568x128xf32> to vector<128xf32>
    %7 = vector.shape_cast %6 : vector<128xf32> to vector<1x128xf32>
    %cst_5 = arith.constant 6.37755089E-4 : f32
    %8 = vector.broadcast %cst_5 : f32 to vector<1x128xf32>
    %9 = arith.mulf %4, %8 : vector<1x128xf32>
    %cst_6 = arith.constant 6.37755089E-4 : f32
    %10 = vector.broadcast %cst_6 : f32 to vector<1x128xf32>
    %11 = arith.mulf %7, %10 : vector<1x128xf32>
    %12 = arith.mulf %9, %9 : vector<1x128xf32>
    %13 = arith.subf %11, %12 : vector<1x128xf32>
    %cst_7 = arith.constant 0.000000e+00 : f32
    %14 = vector.broadcast %cst_7 : f32 to vector<1x128xf32>
    %15 = arith.maximumf %13, %14 : vector<1x128xf32>
    %c0_8 = arith.constant 0 : index
    %c0_9 = arith.constant 0 : index
    %16 = vector.load %arg3[%c0_8, %c0_9] : memref<1x128xf32, #tpu.memory_space<vmem>>, vector<1x128xf32>
    %cst_10 = arith.constant 9.99999974E-6 : f32
    %17 = vector.broadcast %cst_10 : f32 to vector<1x128xf32>
    %18 = arith.addf %15, %17 : vector<1x128xf32>
    %19 = math.rsqrt %18 : vector<1x128xf32>
    %20 = arith.mulf %16, %19 : vector<1x128xf32>
    %c0_11 = arith.constant 0 : index
    %c0_12 = arith.constant 0 : index
    %21 = vector.load %arg4[%c0_11, %c0_12] : memref<1x128xf32, #tpu.memory_space<vmem>>, vector<1x128xf32>
    %22 = arith.mulf %9, %20 : vector<1x128xf32>
    %23 = arith.subf %21, %22 : vector<1x128xf32>
    %24 = vector.broadcast %20 : vector<1x128xf32> to vector<1568x128xf32>
    %25 = arith.mulf %2, %24 : vector<1568x128xf32>
    %26 = vector.broadcast %23 : vector<1x128xf32> to vector<1568x128xf32>
    %27 = arith.addf %25, %26 : vector<1568x128xf32>
    %cst_13 = arith.constant 0.000000e+00 : f32
    %28 = vector.broadcast %cst_13 : f32 to vector<1568x128xf32>
    %29 = arith.maximumf %27, %28 : vector<1568x128xf32>
    %30 = vector.extract_strided_slice %29 {offsets = [0, 0], sizes = [392, 128], strides = [1, 1]} : vector<1568x128xf32> to vector<392x128xf32>
    %31 = vector.extract_strided_slice %29 {offsets = [392, 0], sizes = [392, 128], strides = [1, 1]} : vector<1568x128xf32> to vector<392x128xf32>
    %32 = vector.extract_strided_slice %29 {offsets = [784, 0], sizes = [392, 128], strides = [1, 1]} : vector<1568x128xf32> to vector<392x128xf32>
    %33 = vector.extract_strided_slice %29 {offsets = [1176, 0], sizes = [392, 128], strides = [1, 1]} : vector<1568x128xf32> to vector<392x128xf32>
    %34 = arith.maximumf %30, %31 : vector<392x128xf32>
    %35 = arith.maximumf %32, %33 : vector<392x128xf32>
    %36 = arith.maximumf %34, %35 : vector<392x128xf32>
    %c0_14 = arith.constant 0 : index
    %c0_15 = arith.constant 0 : index
    %37 = vector.load %arg5[%c0_14, %c0_15] : memref<392x128xf32, #tpu.memory_space<vmem>>, vector<392x128xf32>
    tpu.vector_store %arg5[%c0_14, %c0_15], %36 {strides = array<i32>} : memref<392x128xf32, #tpu.memory_space<vmem>>, vector<392x128xf32>,
    return
  }
  func.func @transform_0(%arg0: i32) -> (i32, i32) {
    %c0_i32 = arith.constant 0 : i32
    %c0_i32_0 = arith.constant 0 : i32
    %c0_i32_1 = arith.constant 0 : i32
    return %c0_i32, %c0_i32_0 : i32, i32
  }
  func.func @transform_1(%arg0: i32) -> (i32, i32) {
    %c0_i32 = arith.constant 0 : i32
    %c0_i32_0 = arith.constant 0 : i32
    %c0_i32_1 = arith.constant 0 : i32
    return %c0_i32, %c0_i32_0 : i32, i32
  }
  func.func @transform_2(%arg0: i32) -> (i32, i32) {
    %c0_i32 = arith.constant 0 : i32
    %c0_i32_0 = arith.constant 0 : i32
    %c0_i32_1 = arith.constant 0 : i32
    return %c0_i32, %c0_i32_0 : i32, i32
  }
  func.func @transform_3(%arg0: i32) -> (i32, i32) {
    %c0_i32 = arith.constant 0 : i32
    %c0_i32_0 = arith.constant 0 : i32
    %c0_i32_1 = arith.constant 0 : i32
    return %c0_i32, %c0_i32_0 : i32, i32
  }
  func.func @transform_4(%arg0: i32) -> (i32, i32) {
    %c0_i32 = arith.constant 0 : i32
    %c0_i32_0 = arith.constant 0 : i32
    %c0_i32_1 = arith.constant 0 : i32
    return %c0_i32, %c0_i32_0 : i32, i32
  }
}

module attributes {stable_mosaic.version = 11 : i64} {
  func.func @conv_bn_relu_pool_kernel(%arg0: i32, %arg1: memref<416x144xbf16, #tpu.memory_space<vmem>>, %arg2: memref<144x128xbf16, #tpu.memory_space<vmem>>, %arg3: memref<1x128xf32, #tpu.memory_space<vmem>>, %arg4: memref<1x128xf32, #tpu.memory_space<vmem>>, %arg5: memref<104x128xf32, #tpu.memory_space<vmem>>) attributes {dimension_semantics = [#tpu.dimension_semantics<arbitrary>], iteration_bounds = array<i64: 1>, scalar_prefetch = 0 : i64, scratch_operands = 0 : i64, tpu.core_type = #tpu.core_type<tc>, window_params = [{pipeline_mode = #tpu.pipeline_mode<synchronous>, transform_indices = @transform_0, window_bounds = array<i64: 416, 144>}, {pipeline_mode = #tpu.pipeline_mode<synchronous>, transform_indices = @transform_1, window_bounds = array<i64: 144, 128>}, {pipeline_mode = #tpu.pipeline_mode<synchronous>, transform_indices = @transform_2, window_bounds = array<i64: 1, 128>}, {pipeline_mode = #tpu.pipeline_mode<synchronous>, transform_indices = @transform_3, window_bounds = array<i64: 1, 128>}, {pipeline_mode = #tpu.pipeline_mode<synchronous>, transform_indices = @transform_4, window_bounds = array<i64: 104, 128>}]} {
    %c0 = arith.constant 0 : index
    %c0_0 = arith.constant 0 : index
    %0 = vector.load %arg1[%c0, %c0_0] : memref<416x144xbf16, #tpu.memory_space<vmem>>, vector<416x144xbf16>
    %c0_1 = arith.constant 0 : index
    %c0_2 = arith.constant 0 : index
    %1 = vector.load %arg2[%c0_1, %c0_2] : memref<144x128xbf16, #tpu.memory_space<vmem>>, vector<144x128xbf16>
    %cst = arith.constant dense<0.000000e+00> : vector<416x128xf32>
    %2 = tpu.matmul %0, %1, %cst {dimension_numbers = #tpu.dot_dimension_numbers<[1], [0], [0], [1], [0, 0, 1, 1], [], []>} : vector<416x144xbf16>, vector<144x128xbf16>, vector<416x128xf32> -> vector<416x128xf32>
    %cst_3 = arith.constant dense<0.000000e+00> : vector<128xf32>
    %3 = vector.multi_reduction <add>, %2, %cst_3 [0] : vector<416x128xf32> to vector<128xf32>
    %4 = vector.shape_cast %3 : vector<128xf32> to vector<1x128xf32>
    %5 = arith.mulf %2, %2 : vector<416x128xf32>
    %cst_4 = arith.constant dense<0.000000e+00> : vector<128xf32>
    %6 = vector.multi_reduction <add>, %5, %cst_4 [0] : vector<416x128xf32> to vector<128xf32>
    %7 = vector.shape_cast %6 : vector<128xf32> to vector<1x128xf32>
    %cst_5 = arith.constant 0.00255102036 : f32
    %8 = vector.broadcast %cst_5 : f32 to vector<1x128xf32>
    %9 = arith.mulf %4, %8 : vector<1x128xf32>
    %cst_6 = arith.constant 0.00255102036 : f32
    %10 = vector.broadcast %cst_6 : f32 to vector<1x128xf32>
    %11 = arith.mulf %7, %10 : vector<1x128xf32>
    %12 = arith.mulf %9, %9 : vector<1x128xf32>
    %13 = arith.subf %11, %12 : vector<1x128xf32>
    %cst_7 = arith.constant 0.000000e+00 : f32
    %14 = vector.broadcast %cst_7 : f32 to vector<1x128xf32>
    %15 = arith.maximumf %13, %14 : vector<1x128xf32>
    %c0_8 = arith.constant 0 : index
    %c0_9 = arith.constant 0 : index
    %16 = vector.load %arg3[%c0_8, %c0_9] : memref<1x128xf32, #tpu.memory_space<vmem>>, vector<1x128xf32>
    %cst_10 = arith.constant 9.99999974E-6 : f32
    %17 = vector.broadcast %cst_10 : f32 to vector<1x128xf32>
    %18 = arith.addf %15, %17 : vector<1x128xf32>
    %19 = math.rsqrt %18 : vector<1x128xf32>
    %20 = arith.mulf %16, %19 : vector<1x128xf32>
    %c0_11 = arith.constant 0 : index
    %c0_12 = arith.constant 0 : index
    %21 = vector.load %arg4[%c0_11, %c0_12] : memref<1x128xf32, #tpu.memory_space<vmem>>, vector<1x128xf32>
    %22 = arith.mulf %9, %20 : vector<1x128xf32>
    %23 = arith.subf %21, %22 : vector<1x128xf32>
    %24 = vector.broadcast %20 : vector<1x128xf32> to vector<416x128xf32>
    %25 = arith.mulf %2, %24 : vector<416x128xf32>
    %26 = vector.broadcast %23 : vector<1x128xf32> to vector<416x128xf32>
    %27 = arith.addf %25, %26 : vector<416x128xf32>
    %cst_13 = arith.constant 0.000000e+00 : f32
    %28 = vector.broadcast %cst_13 : f32 to vector<416x128xf32>
    %29 = arith.maximumf %27, %28 : vector<416x128xf32>
    %30 = vector.extract_strided_slice %29 {offsets = [0, 0], sizes = [104, 128], strides = [1, 1]} : vector<416x128xf32> to vector<104x128xf32>
    %31 = vector.extract_strided_slice %29 {offsets = [104, 0], sizes = [104, 128], strides = [1, 1]} : vector<416x128xf32> to vector<104x128xf32>
    %32 = vector.extract_strided_slice %29 {offsets = [208, 0], sizes = [104, 128], strides = [1, 1]} : vector<416x128xf32> to vector<104x128xf32>
    %33 = vector.extract_strided_slice %29 {offsets = [312, 0], sizes = [104, 128], strides = [1, 1]} : vector<416x128xf32> to vector<104x128xf32>
    %34 = arith.maximumf %30, %31 : vector<104x128xf32>
    %35 = arith.maximumf %32, %33 : vector<104x128xf32>
    %36 = arith.maximumf %34, %35 : vector<104x128xf32>
    %c0_14 = arith.constant 0 : index
    %c0_15 = arith.constant 0 : index
    %37 = vector.load %arg5[%c0_14, %c0_15] : memref<104x128xf32, #tpu.memory_space<vmem>>, vector<104x128xf32>
    tpu.vector_store %arg5[%c0_14, %c0_15], %36 {strides = array<i32>} : memref<104x128xf32, #tpu.memory_space<vmem>>, vector<104x128xf32>,
    return
  }
  func.func @transform_0(%arg0: i32) -> (i32, i32) {
    %c0_i32 = arith.constant 0 : i32
    %c0_i32_0 = arith.constant 0 : i32
    %c0_i32_1 = arith.constant 0 : i32
    return %c0_i32, %c0_i32_0 : i32, i32
  }
  func.func @transform_1(%arg0: i32) -> (i32, i32) {
    %c0_i32 = arith.constant 0 : i32
    %c0_i32_0 = arith.constant 0 : i32
    %c0_i32_1 = arith.constant 0 : i32
    return %c0_i32, %c0_i32_0 : i32, i32
  }
  func.func @transform_2(%arg0: i32) -> (i32, i32) {
    %c0_i32 = arith.constant 0 : i32
    %c0_i32_0 = arith.constant 0 : i32
    %c0_i32_1 = arith.constant 0 : i32
    return %c0_i32, %c0_i32_0 : i32, i32
  }
  func.func @transform_3(%arg0: i32) -> (i32, i32) {
    %c0_i32 = arith.constant 0 : i32
    %c0_i32_0 = arith.constant 0 : i32
    %c0_i32_1 = arith.constant 0 : i32
    return %c0_i32, %c0_i32_0 : i32, i32
  }
  func.func @transform_4(%arg0: i32) -> (i32, i32) {
    %c0_i32 = arith.constant 0 : i32
    %c0_i32_0 = arith.constant 0 : i32
    %c0_i32_1 = arith.constant 0 : i32
    return %c0_i32, %c0_i32_0 : i32, i32
  }
}

module attributes {stable_mosaic.version = 11 : i64} {
  func.func @linear_kernel(%arg0: i32, %arg1: memref<2x1568xbf16, #tpu.memory_space<vmem>>, %arg2: memref<1568x128xbf16, #tpu.memory_space<vmem>>, %arg3: memref<1x128xf32, #tpu.memory_space<vmem>>, %arg4: memref<2x128xf32, #tpu.memory_space<vmem>>) attributes {dimension_semantics = [#tpu.dimension_semantics<arbitrary>], iteration_bounds = array<i64: 1>, scalar_prefetch = 0 : i64, scratch_operands = 0 : i64, tpu.core_type = #tpu.core_type<tc>, window_params = [{pipeline_mode = #tpu.pipeline_mode<synchronous>, transform_indices = @transform_0, window_bounds = array<i64: 2, 1568>}, {pipeline_mode = #tpu.pipeline_mode<synchronous>, transform_indices = @transform_1, window_bounds = array<i64: 1568, 128>}, {pipeline_mode = #tpu.pipeline_mode<synchronous>, transform_indices = @transform_2, window_bounds = array<i64: 1, 128>}, {pipeline_mode = #tpu.pipeline_mode<synchronous>, transform_indices = @transform_3, window_bounds = array<i64: 2, 128>}]} {
    %c0 = arith.constant 0 : index
    %c0_0 = arith.constant 0 : index
    %0 = vector.load %arg1[%c0, %c0_0] : memref<2x1568xbf16, #tpu.memory_space<vmem>>, vector<2x1568xbf16>
    %c0_1 = arith.constant 0 : index
    %c0_2 = arith.constant 0 : index
    %1 = vector.load %arg2[%c0_1, %c0_2] : memref<1568x128xbf16, #tpu.memory_space<vmem>>, vector<1568x128xbf16>
    %cst = arith.constant dense<0.000000e+00> : vector<2x128xf32>
    %2 = tpu.matmul %0, %1, %cst {dimension_numbers = #tpu.dot_dimension_numbers<[1], [0], [0], [1], [0, 0, 1, 1], [], []>} : vector<2x1568xbf16>, vector<1568x128xbf16>, vector<2x128xf32> -> vector<2x128xf32>
    %c0_3 = arith.constant 0 : index
    %c0_4 = arith.constant 0 : index
    %3 = vector.load %arg3[%c0_3, %c0_4] : memref<1x128xf32, #tpu.memory_space<vmem>>, vector<1x128xf32>
    %4 = vector.broadcast %3 : vector<1x128xf32> to vector<2x128xf32>
    %5 = arith.addf %2, %4 : vector<2x128xf32>
    %c0_5 = arith.constant 0 : index
    %c0_6 = arith.constant 0 : index
    %6 = vector.load %arg4[%c0_5, %c0_6] : memref<2x128xf32, #tpu.memory_space<vmem>>, vector<2x128xf32>
    tpu.vector_store %arg4[%c0_5, %c0_6], %5 {strides = array<i32>} : memref<2x128xf32, #tpu.memory_space<vmem>>, vector<2x128xf32>,
    return
  }
  func.func @transform_0(%arg0: i32) -> (i32, i32) {
    %c0_i32 = arith.constant 0 : i32
    %c0_i32_0 = arith.constant 0 : i32
    %c0_i32_1 = arith.constant 0 : i32
    return %c0_i32, %c0_i32_0 : i32, i32
  }
  func.func @transform_1(%arg0: i32) -> (i32, i32) {
    %c0_i32 = arith.constant 0 : i32
    %c0_i32_0 = arith.constant 0 : i32
    %c0_i32_1 = arith.constant 0 : i32
    return %c0_i32, %c0_i32_0 : i32, i32
  }
  func.func @transform_2(%arg0: i32) -> (i32, i32) {
    %c0_i32 = arith.constant 0 : i32
    %c0_i32_0 = arith.constant 0 : i32
    %c0_i32_1 = arith.constant 0 : i32
    return %c0_i32, %c0_i32_0 : i32, i32
  }
  func.func @transform_3(%arg0: i32) -> (i32, i32) {
    %c0_i32 = arith.constant 0 : i32
    %c0_i32_0 = arith.constant 0 : i32
    %c0_i32_1 = arith.constant 0 : i32
    return %c0_i32, %c0_i32_0 : i32, i32
  }
}

</mosaic_0001>

<llo_original>
// kernel: myconvnet_forward.3
$region0: #{myconvnet_forward.3}
  #allocation0 [shape = 'u32[]', space=smem, size = 0x4, offset = 0x4, fixed_abs, tag = 'smem constant byte address 0x4 - core index']
  #allocation1 [shape = 'u32[144,128]{1,0:T(1,128)}', space=vmem, size = 0x12000, scoped, tag = 'internal scratch']
  %s0 = inlined_call_operand.vmem [shape: bf16[1568,9], index: 0, kind: input, shape index: {}]
  %s1 = inlined_call_operand.vmem [shape: bf16[9,128], index: 1, kind: input, shape index: {}]
  %s2 = inlined_call_operand.vmem [shape: f32[1,128], index: 2, kind: input, shape index: {}]
  %s3 = inlined_call_operand.vmem [shape: f32[1,128], index: 3, kind: input, shape index: {}]
  %s4 = inlined_call_operand.vmem [shape: f32[392,128], index: 4, kind: output, shape index: {}]
  %s5 = sld [smem:[#allocation0]]
  $region26: #{myconvnet_forward.3} parent=0
    _
  %s7 = ssub.s32 1, %s5
  %s8 = scalar_select 0, %s7, %s5
  // Predicated region
  $region2: #{myconvnet_forward.3} parent=0 // pred_check
    _
  $region3: #{myconvnet_forward.3} parent=0 // pred_check_branch
    %10 = sbr.rel (0) target = $region5
  $region4: #{myconvnet_forward.3} parent=0 // pred_region
    _
  $region5: #{myconvnet_forward.3} parent=0 // pred_fallthru
    _
  // Predicated region
  $region6: #{myconvnet_forward.3} parent=0 // pred_check
    _
  $region7: #{myconvnet_forward.3} parent=0 // pred_check_branch
    %12 = sbr.rel (0) target = $region9
  $region8: #{myconvnet_forward.3} parent=0 // pred_region
    _
  $region9: #{myconvnet_forward.3} parent=0 // pred_fallthru
    _
  // Predicated region
  $region10: #{myconvnet_forward.3} parent=0 // pred_check
    _
  $region11: #{myconvnet_forward.3} parent=0 // pred_check_branch
    %14 = sbr.rel (0) target = $region13
  $region12: #{myconvnet_forward.3} parent=0 // pred_region
    _
  $region13: #{myconvnet_forward.3} parent=0 // pred_fallthru
    _
  // Predicated region
  $region14: #{myconvnet_forward.3} parent=0 // pred_check
    _
  $region15: #{myconvnet_forward.3} parent=0 // pred_check_branch
    %16 = sbr.rel (0) target = $region17
  $region16: #{myconvnet_forward.3} parent=0 // pred_region
    _
  $region17: #{myconvnet_forward.3} parent=0 // pred_fallthru
    _
  %v18 = vld [vmem:[%s0] sm:$0xf]
  %v19 = vld [vmem:[%s0 + $0x4] sm:$0xf]
  %v20 = vld [vmem:[%s0 + $0x8] sm:$0xf]
  %v21 = vld [vmem:[%s0 + $0xc] sm:$0xf]
  %v22 = vld [vmem:[%s0 + $0x10] sm:$0xf]
  %v23 = vld [vmem:[%s0 + $0x14] sm:$0xf]
  %v24 = vld [vmem:[%s0 + $0x18] sm:$0xf]
  %v25 = vld [vmem:[%s0 + $0x1c] sm:$0xf]
  %v26 = vld [vmem:[%s0 + $0x20] sm:$0xf]
  %v27 = vld [vmem:[%s0 + $0x24] sm:$0xf]
  %v28 = vld [vmem:[%s0 + $0x28] sm:$0xf]
  %v29 = vld [vmem:[%s0 + $0x2c] sm:$0xf]
  %v30 = vld [vmem:[%s0 + $0x30] sm:$0xf]
  %v31 = vld [vmem:[%s0 + $0x34] sm:$0xf]
  %v32 = vld [vmem:[%s0 + $0x38] sm:$0xf]
  %v33 = vld [vmem:[%s0 + $0x3c] sm:$0xf]
  %v34 = vld [vmem:[%s0 + $0x40] sm:$0xf]
  %v35 = vld [vmem:[%s0 + $0x44] sm:$0xf]
  %v36 = vld [vmem:[%s0 + $0x48] sm:$0xf]
  %v37 = vld [vmem:[%s0 + $0x4c] sm:$0xf]
  %v38 = vld [vmem:[%s0 + $0x50] sm:$0xf]
  %v39 = vld [vmem:[%s0 + $0x54] sm:$0xf]
  %v40 = vld [vmem:[%s0 + $0x58] sm:$0xf]
  %v41 = vld [vmem:[%s0 + $0x5c] sm:$0xf]
  %v42 = vld [vmem:[%s0 + $0x60] sm:$0xf]
  %v43 = vld [vmem:[%s0 + $0x64] sm:$0xf]
  %v44 = vld [vmem:[%s0 + $0x68] sm:$0xf]
  %v45 = vld [vmem:[%s0 + $0x6c] sm:$0xf]
  %v46 = vld [vmem:[%s0 + $0x70] sm:$0xf]
  %v47 = vld [vmem:[%s0 + $0x74] sm:$0xf]
  %v48 = vld [vmem:[%s0 + $0x78] sm:$0xf]
  %v49 = vld [vmem:[%s0 + $0x7c] sm:$0xf]
  %v50 = vld [vmem:[%s0 + $0x80] sm:$0xf]
  %v51 = vld [vmem:[%s0 + $0x84] sm:$0xf]
  %v52 = vld [vmem:[%s0 + $0x88] sm:$0xf]
  %v53 = vld [vmem:[%s0 + $0x8c] sm:$0xf]
  %v54 = vld [vmem:[%s0 + $0x90] sm:$0xf]
  %v55 = vld [vmem:[%s0 + $0x94] sm:$0xf]
  %v56 = vld [vmem:[%s0 + $0x98] sm:$0xf]
  %v57 = vld [vmem:[%s0 + $0x9c] sm:$0xf]
  %v58 = vld [vmem:[%s0 + $0xa0] sm:$0xf]
  %v59 = vld [vmem:[%s0 + $0xa4] sm:$0xf]
  %v60 = vld [vmem:[%s0 + $0xa8] sm:$0xf]
  %v61 = vld [vmem:[%s0 + $0xac] sm:$0xf]
  %v62 = vld [vmem:[%s0 + $0xb0] sm:$0xf]
  %v63 = vld [vmem:[%s0 + $0xb4] sm:$0xf]
  %v64 = vld [vmem:[%s0 + $0xb8] sm:$0xf]
  %v65 = vld [vmem:[%s0 + $0xbc] sm:$0xf]
  %v66 = vld [vmem:[%s0 + $0xc0] sm:$0xf]
  %v67 = vld [vmem:[%s0 + $0xc4] sm:$0xf]
  %v68 = vld [vmem:[%s0 + $0xc8] sm:$0xf]
  %v69 = vld [vmem:[%s0 + $0xcc] sm:$0xf]
  %v70 = vld [vmem:[%s0 + $0xd0] sm:$0xf]
  %v71 = vld [vmem:[%s0 + $0xd4] sm:$0xf]
  %v72 = vld [vmem:[%s0 + $0xd8] sm:$0xf]
  %v73 = vld [vmem:[%s0 + $0xdc] sm:$0xf]
  %v74 = vld [vmem:[%s0 + $0xe0] sm:$0xf]
  %v75 = vld [vmem:[%s0 + $0xe4] sm:$0xf]
  %v76 = vld [vmem:[%s0 + $0xe8] sm:$0xf]
  %v77 = vld [vmem:[%s0 + $0xec] sm:$0xf]
  %v78 = vld [vmem:[%s0 + $0xf0] sm:$0xf]
  %v79 = vld [vmem:[%s0 + $0xf4] sm:$0xf]
  %v80 = vld [vmem:[%s0 + $0xf8] sm:$0xf]
  %v81 = vld [vmem:[%s0 + $0xfc] sm:$0xf]
  %v82 = vld [vmem:[%s0 + $0x100] sm:$0xf]
  %v83 = vld [vmem:[%s0 + $0x104] sm:$0xf]
  %v84 = vld [vmem:[%s0 + $0x108] sm:$0xf]
  %v85 = vld [vmem:[%s0 + $0x10c] sm:$0xf]
  %v86 = vld [vmem:[%s0 + $0x110] sm:$0xf]
  %v87 = vld [vmem:[%s0 + $0x114] sm:$0xf]
  %v88 = vld [vmem:[%s0 + $0x118] sm:$0xf]
  %v89 = vld [vmem:[%s0 + $0x11c] sm:$0xf]
  %v90 = vld [vmem:[%s0 + $0x120] sm:$0xf]
  %v91 = vld [vmem:[%s0 + $0x124] sm:$0xf]
  %v92 = vld [vmem:[%s0 + $0x128] sm:$0xf]
  %v93 = vld [vmem:[%s0 + $0x12c] sm:$0xf]
  %v94 = vld [vmem:[%s0 + $0x130] sm:$0xf]
  %v95 = vld [vmem:[%s0 + $0x134] sm:$0xf]
  %v96 = vld [vmem:[%s0 + $0x138] sm:$0xf]
  %v97 = vld [vmem:[%s0 + $0x13c] sm:$0xf]
  %v98 = vld [vmem:[%s0 + $0x140] sm:$0xf]
  %v99 = vld [vmem:[%s0 + $0x144] sm:$0xf]
  %v100 = vld [vmem:[%s0 + $0x148] sm:$0xf]
  %v101 = vld [vmem:[%s0 + $0x14c] sm:$0xf]
  %v102 = vld [vmem:[%s0 + $0x150] sm:$0xf]
  %v103 = vld [vmem:[%s0 + $0x154] sm:$0xf]
  %v104 = vld [vmem:[%s0 + $0x158] sm:$0xf]
  %v105 = vld [vmem:[%s0 + $0x15c] sm:$0xf]
  %v106 = vld [vmem:[%s0 + $0x160] sm:$0xf]
  %v107 = vld [vmem:[%s0 + $0x164] sm:$0xf]
  %v108 = vld [vmem:[%s0 + $0x168] sm:$0xf]
  %v109 = vld [vmem:[%s0 + $0x16c] sm:$0xf]
  %v110 = vld [vmem:[%s0 + $0x170] sm:$0xf]
  %v111 = vld [vmem:[%s0 + $0x174] sm:$0xf]
  %v112 = vld [vmem:[%s0 + $0x178] sm:$0xf]
  %v113 = vld [vmem:[%s0 + $0x17c] sm:$0xf]
  %v114 = vld [vmem:[%s0 + $0x180] sm:$0xf]
  %v115 = vld [vmem:[%s0 + $0x184] sm:$0xf]
  %v116 = vld [vmem:[%s0 + $0x188] sm:$0xf]
  %v117 = vld [vmem:[%s0 + $0x18c] sm:$0xf]
  %v118 = vld [vmem:[%s0 + $0x190] sm:$0xf]
  %v119 = vld [vmem:[%s0 + $0x194] sm:$0xf]
  %v120 = vld [vmem:[%s0 + $0x198] sm:$0xf]
  %v121 = vld [vmem:[%s0 + $0x19c] sm:$0xf]
  %v122 = vld [vmem:[%s0 + $0x1a0] sm:$0xf]
  %v123 = vld [vmem:[%s0 + $0x1a4] sm:$0xf]
  %v124 = vld [vmem:[%s0 + $0x1a8] sm:$0xf]
  %v125 = vld [vmem:[%s0 + $0x1ac] sm:$0xf]
  %v126 = vld [vmem:[%s0 + $0x1b0] sm:$0xf]
  %v127 = vld [vmem:[%s0 + $0x1b4] sm:$0xf]
  %v128 = vld [vmem:[%s0 + $0x1b8] sm:$0xf]
  %v129 = vld [vmem:[%s0 + $0x1bc] sm:$0xf]
  %v130 = vld [vmem:[%s0 + $0x1c0] sm:$0xf]
  %v131 = vld [vmem:[%s0 + $0x1c4] sm:$0xf]
  %v132 = vld [vmem:[%s0 + $0x1c8] sm:$0xf]
  %v133 = vld [vmem:[%s0 + $0x1cc] sm:$0xf]
  %v134 = vld [vmem:[%s0 + $0x1d0] sm:$0xf]
  %v135 = vld [vmem:[%s0 + $0x1d4] sm:$0xf]
  %v136 = vld [vmem:[%s0 + $0x1d8] sm:$0xf]
  %v137 = vld [vmem:[%s0 + $0x1dc] sm:$0xf]
  %v138 = vld [vmem:[%s0 + $0x1e0] sm:$0xf]
  %v139 = vld [vmem:[%s0 + $0x1e4] sm:$0xf]
  %v140 = vld [vmem:[%s0 + $0x1e8] sm:$0xf]
  %v141 = vld [vmem:[%s0 + $0x1ec] sm:$0xf]
  %v142 = vld [vmem:[%s0 + $0x1f0] sm:$0xf]
  %v143 = vld [vmem:[%s0 + $0x1f4] sm:$0xf]
  %v144 = vld [vmem:[%s0 + $0x1f8] sm:$0xf]
  %v145 = vld [vmem:[%s0 + $0x1fc] sm:$0xf]
  %v146 = vld [vmem:[%s0 + $0x200] sm:$0xf]
  %v147 = vld [vmem:[%s0 + $0x204] sm:$0xf]
  %v148 = vld [vmem:[%s0 + $0x208] sm:$0xf]
  %v149 = vld [vmem:[%s0 + $0x20c] sm:$0xf]
  %v150 = vld [vmem:[%s0 + $0x210] sm:$0xf]
  %v151 = vld [vmem:[%s0 + $0x214] sm:$0xf]
  %v152 = vld [vmem:[%s0 + $0x218] sm:$0xf]
  %v153 = vld [vmem:[%s0 + $0x21c] sm:$0xf]
  %v154 = vld [vmem:[%s0 + $0x220] sm:$0xf]
  %v155 = vld [vmem:[%s0 + $0x224] sm:$0xf]
  %v156 = vld [vmem:[%s0 + $0x228] sm:$0xf]
  %v157 = vld [vmem:[%s0 + $0x22c] sm:$0xf]
  %v158 = vld [vmem:[%s0 + $0x230] sm:$0xf]
  %v159 = vld [vmem:[%s0 + $0x234] sm:$0xf]
  %v160 = vld [vmem:[%s0 + $0x238] sm:$0xf]
  %v161 = vld [vmem:[%s0 + $0x23c] sm:$0xf]
  %v162 = vld [vmem:[%s0 + $0x240] sm:$0xf]
  %v163 = vld [vmem:[%s0 + $0x244] sm:$0xf]
  %v164 = vld [vmem:[%s0 + $0x248] sm:$0xf]
  %v165 = vld [vmem:[%s0 + $0x24c] sm:$0xf]
  %v166 = vld [vmem:[%s0 + $0x250] sm:$0xf]
  %v167 = vld [vmem:[%s0 + $0x254] sm:$0xf]
  %v168 = vld [vmem:[%s0 + $0x258] sm:$0xf]
  %v169 = vld [vmem:[%s0 + $0x25c] sm:$0xf]
  %v170 = vld [vmem:[%s0 + $0x260] sm:$0xf]
  %v171 = vld [vmem:[%s0 + $0x264] sm:$0xf]
  %v172 = vld [vmem:[%s0 + $0x268] sm:$0xf]
  %v173 = vld [vmem:[%s0 + $0x26c] sm:$0xf]
  %v174 = vld [vmem:[%s0 + $0x270] sm:$0xf]
  %v175 = vld [vmem:[%s0 + $0x274] sm:$0xf]
  %v176 = vld [vmem:[%s0 + $0x278] sm:$0xf]
  %v177 = vld [vmem:[%s0 + $0x27c] sm:$0xf]
  %v178 = vld [vmem:[%s0 + $0x280] sm:$0xf]
  %v179 = vld [vmem:[%s0 + $0x284] sm:$0xf]
  %v180 = vld [vmem:[%s0 + $0x288] sm:$0xf]
  %v181 = vld [vmem:[%s0 + $0x28c] sm:$0xf]
  %v182 = vld [vmem:[%s0 + $0x290] sm:$0xf]
  %v183 = vld [vmem:[%s0 + $0x294] sm:$0xf]
  %v184 = vld [vmem:[%s0 + $0x298] sm:$0xf]
  %v185 = vld [vmem:[%s0 + $0x29c] sm:$0xf]
  %v186 = vld [vmem:[%s0 + $0x2a0] sm:$0xf]
  %v187 = vld [vmem:[%s0 + $0x2a4] sm:$0xf]
  %v188 = vld [vmem:[%s0 + $0x2a8] sm:$0xf]
  %v189 = vld [vmem:[%s0 + $0x2ac] sm:$0xf]
  %v190 = vld [vmem:[%s0 + $0x2b0] sm:$0xf]
  %v191 = vld [vmem:[%s0 + $0x2b4] sm:$0xf]
  %v192 = vld [vmem:[%s0 + $0x2b8] sm:$0xf]
  %v193 = vld [vmem:[%s0 + $0x2bc] sm:$0xf]
  %v194 = vld [vmem:[%s0 + $0x2c0] sm:$0xf]
  %v195 = vld [vmem:[%s0 + $0x2c4] sm:$0xf]
  %v196 = vld [vmem:[%s0 + $0x2c8] sm:$0xf]
  %v197 = vld [vmem:[%s0 + $0x2cc] sm:$0xf]
  %v198 = vld [vmem:[%s0 + $0x2d0] sm:$0xf]
  %v199 = vld [vmem:[%s0 + $0x2d4] sm:$0xf]
  %v200 = vld [vmem:[%s0 + $0x2d8] sm:$0xf]
  %v201 = vld [vmem:[%s0 + $0x2dc] sm:$0xf]
  %v202 = vld [vmem:[%s0 + $0x2e0] sm:$0xf]
  %v203 = vld [vmem:[%s0 + $0x2e4] sm:$0xf]
  %v204 = vld [vmem:[%s0 + $0x2e8] sm:$0xf]
  %v205 = vld [vmem:[%s0 + $0x2ec] sm:$0xf]
  %v206 = vld [vmem:[%s0 + $0x2f0] sm:$0xf]
  %v207 = vld [vmem:[%s0 + $0x2f4] sm:$0xf]
  %v208 = vld [vmem:[%s0 + $0x2f8] sm:$0xf]
  %v209 = vld [vmem:[%s0 + $0x2fc] sm:$0xf]
  %v210 = vld [vmem:[%s0 + $0x300] sm:$0xf]
  %v211 = vld [vmem:[%s0 + $0x304] sm:$0xf]
  %v212 = vld [vmem:[%s0 + $0x308] sm:$0xf]
  %v213 = vld [vmem:[%s0 + $0x30c] sm:$0xf]
  %v214 = vld [vmem:[%s1] sm:$0xf]
  %v215 = vld [vmem:[%s1 + $0x4] sm:$0x1]
  %v412 = vunpack.c.l.b16 %v18
  %v413 = vunpack.c.l.b16 %v19
  %v414 = vunpack.c.l.b16 %v20
  %v415 = vunpack.c.l.b16 %v21
  %v416 = vunpack.c.l.b16 %v22
  %v417 = vunpack.c.l.b16 %v23
  %v418 = vunpack.c.l.b16 %v24
  %v419 = vunpack.c.l.b16 %v25
  %v420 = vunpack.c.l.b16 %v26
  %v421 = vunpack.c.l.b16 %v27
  %v422 = vunpack.c.l.b16 %v28
  %v423 = vunpack.c.l.b16 %v29
  %v424 = vunpack.c.l.b16 %v30
  %v425 = vunpack.c.l.b16 %v31
  %v426 = vunpack.c.l.b16 %v32
  %v427 = vunpack.c.l.b16 %v33
  %v428 = vunpack.c.l.b16 %v34
  %v429 = vunpack.c.l.b16 %v35
  %v430 = vunpack.c.l.b16 %v36
  %v431 = vunpack.c.l.b16 %v37
  %v432 = vunpack.c.l.b16 %v38
  %v433 = vunpack.c.l.b16 %v39
  %v434 = vunpack.c.l.b16 %v40
  %v435 = vunpack.c.l.b16 %v41
  %v436 = vunpack.c.l.b16 %v42
  %v437 = vunpack.c.l.b16 %v43
  %v438 = vunpack.c.l.b16 %v44
  %v439 = vunpack.c.l.b16 %v45
  %v440 = vunpack.c.l.b16 %v46
  %v441 = vunpack.c.l.b16 %v47
  %v442 = vunpack.c.l.b16 %v48
  %v443 = vunpack.c.l.b16 %v49
  %v444 = vunpack.c.l.b16 %v50
  %v445 = vunpack.c.l.b16 %v51
  %v446 = vunpack.c.l.b16 %v52
  %v447 = vunpack.c.l.b16 %v53
  %v448 = vunpack.c.l.b16 %v54
  %v449 = vunpack.c.l.b16 %v55
  %v450 = vunpack.c.l.b16 %v56
  %v451 = vunpack.c.l.b16 %v57
  %v452 = vunpack.c.l.b16 %v58
  %v453 = vunpack.c.l.b16 %v59
  %v454 = vunpack.c.l.b16 %v60
  %v455 = vunpack.c.l.b16 %v61
  %v456 = vunpack.c.l.b16 %v62
  %v457 = vunpack.c.l.b16 %v63
  %v458 = vunpack.c.l.b16 %v64
  %v459 = vunpack.c.l.b16 %v65
  %v460 = vunpack.c.l.b16 %v66
  %v461 = vunpack.c.l.b16 %v67
  %v462 = vunpack.c.l.b16 %v68
  %v463 = vunpack.c.l.b16 %v69
  %v464 = vunpack.c.l.b16 %v70
  %v465 = vunpack.c.l.b16 %v71
  %v466 = vunpack.c.l.b16 %v72
  %v467 = vunpack.c.l.b16 %v73
  %v468 = vunpack.c.l.b16 %v74
  %v469 = vunpack.c.l.b16 %v75
  %v470 = vunpack.c.l.b16 %v76
  %v471 = vunpack.c.l.b16 %v77
  %v472 = vunpack.c.l.b16 %v78
  %v473 = vunpack.c.l.b16 %v79
  %v474 = vunpack.c.l.b16 %v80
  %v475 = vunpack.c.l.b16 %v81
  %v476 = vunpack.c.l.b16 %v82
  %v477 = vunpack.c.l.b16 %v83
  %v478 = vunpack.c.l.b16 %v84
  %v479 = vunpack.c.l.b16 %v85
  %v480 = vunpack.c.l.b16 %v86
  %v481 = vunpack.c.l.b16 %v87
  %v482 = vunpack.c.l.b16 %v88
  %v483 = vunpack.c.l.b16 %v89
  %v484 = vunpack.c.l.b16 %v90
  %v485 = vunpack.c.l.b16 %v91
  %v486 = vunpack.c.l.b16 %v92
  %v487 = vunpack.c.l.b16 %v93
  %v488 = vunpack.c.l.b16 %v94
  %v489 = vunpack.c.l.b16 %v95
  %v490 = vunpack.c.l.b16 %v96
  %v491 = vunpack.c.l.b16 %v97
  %v492 = vunpack.c.l.b16 %v98
  %v493 = vunpack.c.l.b16 %v99
  %v494 = vunpack.c.l.b16 %v100
  %v495 = vunpack.c.l.b16 %v101
  %v496 = vunpack.c.l.b16 %v102
  %v497 = vunpack.c.l.b16 %v103
  %v498 = vunpack.c.l.b16 %v104
  %v499 = vunpack.c.l.b16 %v105
  %v500 = vunpack.c.l.b16 %v106
  %v501 = vunpack.c.l.b16 %v107
  %v502 = vunpack.c.l.b16 %v108
  %v503 = vunpack.c.l.b16 %v109
  %v504 = vunpack.c.l.b16 %v110
  %v505 = vunpack.c.l.b16 %v111
  %v506 = vunpack.c.l.b16 %v112
  %v507 = vunpack.c.l.b16 %v113
  %v508 = vunpack.c.l.b16 %v114
  %v509 = vunpack.c.l.b16 %v115
  %v510 = vunpack.c.l.b16 %v116
  %v511 = vunpack.c.l.b16 %v117
  %v512 = vunpack.c.l.b16 %v118
  %v513 = vunpack.c.l.b16 %v119
  %v514 = vunpack.c.l.b16 %v120
  %v515 = vunpack.c.l.b16 %v121
  %v516 = vunpack.c.l.b16 %v122
  %v517 = vunpack.c.l.b16 %v123
  %v518 = vunpack.c.l.b16 %v124
  %v519 = vunpack.c.l.b16 %v125
  %v520 = vunpack.c.l.b16 %v126
  %v521 = vunpack.c.l.b16 %v127
  %v522 = vunpack.c.l.b16 %v128
  %v523 = vunpack.c.l.b16 %v129
  %v524 = vunpack.c.l.b16 %v130
  %v525 = vunpack.c.l.b16 %v131
  %v526 = vunpack.c.l.b16 %v132
  %v527 = vunpack.c.l.b16 %v133
  %v528 = vunpack.c.l.b16 %v134
  %v529 = vunpack.c.l.b16 %v135
  %v530 = vunpack.c.l.b16 %v136
  %v531 = vunpack.c.l.b16 %v137
  %v532 = vunpack.c.l.b16 %v138
  %v533 = vunpack.c.l.b16 %v139
  %v534 = vunpack.c.l.b16 %v140
  %v535 = vunpack.c.l.b16 %v141
  %v536 = vunpack.c.l.b16 %v142
  %v537 = vunpack.c.l.b16 %v143
  %v538 = vunpack.c.l.b16 %v144
  %v539 = vunpack.c.l.b16 %v145
  %v540 = vunpack.c.l.b16 %v146
  %v541 = vunpack.c.l.b16 %v147
  %v542 = vunpack.c.l.b16 %v148
  %v543 = vunpack.c.l.b16 %v149
  %v544 = vunpack.c.l.b16 %v150
  %v545 = vunpack.c.l.b16 %v151
  %v546 = vunpack.c.l.b16 %v152
  %v547 = vunpack.c.l.b16 %v153
  %v548 = vunpack.c.l.b16 %v154
  %v549 = vunpack.c.l.b16 %v155
  %v550 = vunpack.c.l.b16 %v156
  %v551 = vunpack.c.l.b16 %v157
  %v552 = vunpack.c.l.b16 %v158
  %v553 = vunpack.c.l.b16 %v159
  %v554 = vunpack.c.l.b16 %v160
  %v555 = vunpack.c.l.b16 %v161
  %v556 = vunpack.c.l.b16 %v162
  %v557 = vunpack.c.l.b16 %v163
  %v558 = vunpack.c.l.b16 %v164
  %v559 = vunpack.c.l.b16 %v165
  %v560 = vunpack.c.l.b16 %v166
  %v561 = vunpack.c.l.b16 %v167
  %v562 = vunpack.c.l.b16 %v168
  %v563 = vunpack.c.l.b16 %v169
  %v564 = vunpack.c.l.b16 %v170
  %v565 = vunpack.c.l.b16 %v171
  %v566 = vunpack.c.l.b16 %v172
  %v567 = vunpack.c.l.b16 %v173
  %v568 = vunpack.c.l.b16 %v174
  %v569 = vunpack.c.l.b16 %v175
  %v570 = vunpack.c.l.b16 %v176
  %v571 = vunpack.c.l.b16 %v177
  %v572 = vunpack.c.l.b16 %v178
  %v573 = vunpack.c.l.b16 %v179
  %v574 = vunpack.c.l.b16 %v180
  %v575 = vunpack.c.l.b16 %v181
  %v576 = vunpack.c.l.b16 %v182
  %v577 = vunpack.c.l.b16 %v183
  %v578 = vunpack.c.l.b16 %v184
  %v579 = vunpack.c.l.b16 %v185
  %v580 = vunpack.c.l.b16 %v186
  %v581 = vunpack.c.l.b16 %v187
  %v582 = vunpack.c.l.b16 %v188
  %v583 = vunpack.c.l.b16 %v189
  %v584 = vunpack.c.l.b16 %v190
  %v585 = vunpack.c.l.b16 %v191
  %v586 = vunpack.c.l.b16 %v192
  %v587 = vunpack.c.l.b16 %v193
  %v588 = vunpack.c.l.b16 %v194
  %v589 = vunpack.c.l.b16 %v195
  %v590 = vunpack.c.l.b16 %v196
  %v591 = vunpack.c.l.b16 %v197
  %v592 = vunpack.c.l.b16 %v198
  %v593 = vunpack.c.l.b16 %v199
  %v594 = vunpack.c.l.b16 %v200
  %v595 = vunpack.c.l.b16 %v201
  %v596 = vunpack.c.l.b16 %v202
  %v597 = vunpack.c.l.b16 %v203
  %v598 = vunpack.c.l.b16 %v204
  %v599 = vunpack.c.l.b16 %v205
  %v600 = vunpack.c.l.b16 %v206
  %v601 = vunpack.c.l.b16 %v207
  %v602 = vunpack.c.l.b16 %v208
  %v603 = vunpack.c.l.b16 %v209
  %v604 = vunpack.c.l.b16 %v210
  %v605 = vunpack.c.l.b16 %v211
  %v606 = vunpack.c.l.b16 %v212
  %v607 = vunpack.c.l.b16 %v213
  %v608 = vpack.c.b16 %v413, %v412
  %v609 = vpack.c.b16 %v415, %v414
  %v610 = vpack.c.b16 %v417, %v416
  %v611 = vpack.c.b16 %v419, %v418
  %v612 = vpack.c.b16 %v421, %v420
  %v613 = vpack.c.b16 %v423, %v422
  %v614 = vpack.c.b16 %v425, %v424
  %v615 = vpack.c.b16 %v427, %v426
  %v616 = vpack.c.b16 %v429, %v428
  %v617 = vpack.c.b16 %v431, %v430
  %v618 = vpack.c.b16 %v433, %v432
  %v619 = vpack.c.b16 %v435, %v434
  %v620 = vpack.c.b16 %v437, %v436
  %v621 = vpack.c.b16 %v439, %v438
  %v622 = vpack.c.b16 %v441, %v440
  %v623 = vpack.c.b16 %v443, %v442
  %v624 = vpack.c.b16 %v445, %v444
  %v625 = vpack.c.b16 %v447, %v446
  %v626 = vpack.c.b16 %v449, %v448
  %v627 = vpack.c.b16 %v451, %v450
  %v628 = vpack.c.b16 %v453, %v452
  %v629 = vpack.c.b16 %v455, %v454
  %v630 = vpack.c.b16 %v457, %v456
  %v631 = vpack.c.b16 %v459, %v458
  %v632 = vpack.c.b16 %v461, %v460
  %v633 = vpack.c.b16 %v463, %v462
  %v634 = vpack.c.b16 %v465, %v464
  %v635 = vpack.c.b16 %v467, %v466
  %v636 = vpack.c.b16 %v469, %v468
  %v637 = vpack.c.b16 %v471, %v470
  %v638 = vpack.c.b16 %v473, %v472
  %v639 = vpack.c.b16 %v475, %v474
  %v640 = vpack.c.b16 %v477, %v476
  %v641 = vpack.c.b16 %v479, %v478
  %v642 = vpack.c.b16 %v481, %v480
  %v643 = vpack.c.b16 %v483, %v482
  %v644 = vpack.c.b16 %v485, %v484
  %v645 = vpack.c.b16 %v487, %v486
  %v646 = vpack.c.b16 %v489, %v488
  %v647 = vpack.c.b16 %v491, %v490
  %v648 = vpack.c.b16 %v493, %v492
  %v649 = vpack.c.b16 %v495, %v494
  %v650 = vpack.c.b16 %v497, %v496
  %v651 = vpack.c.b16 %v499, %v498
  %v652 = vpack.c.b16 %v501, %v500
  %v653 = vpack.c.b16 %v503, %v502
  %v654 = vpack.c.b16 %v505, %v504
  %v655 = vpack.c.b16 %v507, %v506
  %v656 = vpack.c.b16 %v509, %v508
  %v657 = vpack.c.b16 %v511, %v510
  %v658 = vpack.c.b16 %v513, %v512
  %v659 = vpack.c.b16 %v515, %v514
  %v660 = vpack.c.b16 %v517, %v516
  %v661 = vpack.c.b16 %v519, %v518
  %v662 = vpack.c.b16 %v521, %v520
  %v663 = vpack.c.b16 %v523, %v522
  %v664 = vpack.c.b16 %v525, %v524
  %v665 = vpack.c.b16 %v527, %v526
  %v666 = vpack.c.b16 %v529, %v528
  %v667 = vpack.c.b16 %v531, %v530
  %v668 = vpack.c.b16 %v533, %v532
  %v669 = vpack.c.b16 %v535, %v534
  %v670 = vpack.c.b16 %v537, %v536
  %v671 = vpack.c.b16 %v539, %v538
  %v672 = vpack.c.b16 %v541, %v540
  %v673 = vpack.c.b16 %v543, %v542
  %v674 = vpack.c.b16 %v545, %v544
  %v675 = vpack.c.b16 %v547, %v546
  %v676 = vpack.c.b16 %v549, %v548
  %v677 = vpack.c.b16 %v551, %v550
  %v678 = vpack.c.b16 %v553, %v552
  %v679 = vpack.c.b16 %v555, %v554
  %v680 = vpack.c.b16 %v557, %v556
  %v681 = vpack.c.b16 %v559, %v558
  %v682 = vpack.c.b16 %v561, %v560
  %v683 = vpack.c.b16 %v563, %v562
  %v684 = vpack.c.b16 %v565, %v564
  %v685 = vpack.c.b16 %v567, %v566
  %v686 = vpack.c.b16 %v569, %v568
  %v687 = vpack.c.b16 %v571, %v570
  %v688 = vpack.c.b16 %v573, %v572
  %v689 = vpack.c.b16 %v575, %v574
  %v690 = vpack.c.b16 %v577, %v576
  %v691 = vpack.c.b16 %v579, %v578
  %v692 = vpack.c.b16 %v581, %v580
  %v693 = vpack.c.b16 %v583, %v582
  %v694 = vpack.c.b16 %v585, %v584
  %v695 = vpack.c.b16 %v587, %v586
  %v696 = vpack.c.b16 %v589, %v588
  %v697 = vpack.c.b16 %v591, %v590
  %v698 = vpack.c.b16 %v593, %v592
  %v699 = vpack.c.b16 %v595, %v594
  %v700 = vpack.c.b16 %v597, %v596
  %v701 = vpack.c.b16 %v599, %v598
  %v702 = vpack.c.b16 %v601, %v600
  %v703 = vpack.c.b16 %v603, %v602
  %v704 = vpack.c.b16 %v605, %v604
  %v705 = vpack.c.b16 %v607, %v606
  %v708 = vunpack.c.l.b16 %v214
  %v709 = vunpack.c.l.b16 %v215
  %v710 = vpack.c.b16 %v709, %v708
  %vm711 = vcmask 72704
  %v713 = vsel %vm711, %v608, 0
  %v716 = vsel %vm711, %v609, 0
  %v719 = vsel %vm711, %v610, 0
  %v722 = vsel %vm711, %v611, 0
  %v725 = vsel %vm711, %v612, 0
  %v728 = vsel %vm711, %v613, 0
  %v731 = vsel %vm711, %v614, 0
  %v734 = vsel %vm711, %v615, 0
  %v737 = vsel %vm711, %v616, 0
  %v740 = vsel %vm711, %v617, 0
  %v743 = vsel %vm711, %v618, 0
  %v746 = vsel %vm711, %v619, 0
  %v749 = vsel %vm711, %v620, 0
  %v752 = vsel %vm711, %v621, 0
  %v755 = vsel %vm711, %v622, 0
  %v758 = vsel %vm711, %v623, 0
  %v761 = vsel %vm711, %v624, 0
  %v764 = vsel %vm711, %v625, 0
  %v767 = vsel %vm711, %v626, 0
  %v770 = vsel %vm711, %v627, 0
  %v773 = vsel %vm711, %v628, 0
  %v776 = vsel %vm711, %v629, 0
  %v779 = vsel %vm711, %v630, 0
  %v782 = vsel %vm711, %v631, 0
  %v785 = vsel %vm711, %v632, 0
  %v788 = vsel %vm711, %v633, 0
  %v791 = vsel %vm711, %v634, 0
  %v794 = vsel %vm711, %v635, 0
  %v797 = vsel %vm711, %v636, 0
  %v800 = vsel %vm711, %v637, 0
  %v803 = vsel %vm711, %v638, 0
  %v806 = vsel %vm711, %v639, 0
  %v809 = vsel %vm711, %v640, 0
  %v812 = vsel %vm711, %v641, 0
  %v815 = vsel %vm711, %v642, 0
  %v818 = vsel %vm711, %v643, 0
  %v821 = vsel %vm711, %v644, 0
  %v824 = vsel %vm711, %v645, 0
  %v827 = vsel %vm711, %v646, 0
  %v830 = vsel %vm711, %v647, 0
  %v833 = vsel %vm711, %v648, 0
  %v836 = vsel %vm711, %v649, 0
  %v839 = vsel %vm711, %v650, 0
  %v842 = vsel %vm711, %v651, 0
  %v845 = vsel %vm711, %v652, 0
  %v848 = vsel %vm711, %v653, 0
  %v851 = vsel %vm711, %v654, 0
  %v854 = vsel %vm711, %v655, 0
  %v857 = vsel %vm711, %v656, 0
  %v860 = vsel %vm711, %v657, 0
  %v863 = vsel %vm711, %v658, 0
  %v866 = vsel %vm711, %v659, 0
  %v869 = vsel %vm711, %v660, 0
  %v872 = vsel %vm711, %v661, 0
  %v875 = vsel %vm711, %v662, 0
  %v878 = vsel %vm711, %v663, 0
  %v881 = vsel %vm711, %v664, 0
  %v884 = vsel %vm711, %v665, 0
  %v887 = vsel %vm711, %v666, 0
  %v890 = vsel %vm711, %v667, 0
  %v893 = vsel %vm711, %v668, 0
  %v896 = vsel %vm711, %v669, 0
  %v899 = vsel %vm711, %v670, 0
  %v902 = vsel %vm711, %v671, 0
  %v905 = vsel %vm711, %v672, 0
  %v908 = vsel %vm711, %v673, 0
  %v911 = vsel %vm711, %v674, 0
  %v914 = vsel %vm711, %v675, 0
  %v917 = vsel %vm711, %v676, 0
  %v920 = vsel %vm711, %v677, 0
  %v923 = vsel %vm711, %v678, 0
  %v926 = vsel %vm711, %v679, 0
  %v929 = vsel %vm711, %v680, 0
  %v932 = vsel %vm711, %v681, 0
  %v935 = vsel %vm711, %v682, 0
  %v938 = vsel %vm711, %v683, 0
  %v941 = vsel %vm711, %v684, 0
  %v944 = vsel %vm711, %v685, 0
  %v947 = vsel %vm711, %v686, 0
  %v950 = vsel %vm711, %v687, 0
  %v953 = vsel %vm711, %v688, 0
  %v956 = vsel %vm711, %v689, 0
  %v959 = vsel %vm711, %v690, 0
  %v962 = vsel %vm711, %v691, 0
  %v965 = vsel %vm711, %v692, 0
  %v968 = vsel %vm711, %v693, 0
  %v971 = vsel %vm711, %v694, 0
  %v974 = vsel %vm711, %v695, 0
  %v977 = vsel %vm711, %v696, 0
  %v980 = vsel %vm711, %v697, 0
  %v983 = vsel %vm711, %v698, 0
  %v986 = vsel %vm711, %v699, 0
  %v989 = vsel %vm711, %v700, 0
  %v992 = vsel %vm711, %v701, 0
  %v995 = vsel %vm711, %v702, 0
  %v998 = vsel %vm711, %v703, 0
  %v1001 = vsel %vm711, %v704, 0
  %v1004 = vsel %vm711, %v705, 0
  %vm1006 = vcmask 1043456
  %vm1007 = vcmask 1044480
  %v1008 = vsel %vm1006, 4294967295, 65535
  %v1009 = vsel %vm1007, %v1008, 0
  %v1011 = vand.u32 %v710, %v1009
  %1013 = vmatprep.subr.bf16.mxu0 0
  %1014 = vmatpush1.bf16.msra.mxu0 %v1011
  %1015 = vmatprep.subr.bf16.mxu0 0
  %1016 = vmatpush1.bf16.msra.mxu0 0
  %1017 = vmatprep.subr.bf16.mxu0 0
  %1018 = vmatpush1.bf16.msra.mxu0 0
  %1019 = vmatprep.subr.bf16.mxu0 0
  %1020 = vmatpush1.bf16.msra.mxu0 0
  %1021 = vmatprep.subr.bf16.mxu0 0
  %1022 = vmatpush1.bf16.msra.mxu0 0
  %1023 = vmatprep.subr.bf16.mxu0 0
  %1024 = vmatpush1.bf16.msra.mxu0 0
  %1025 = vmatprep.subr.bf16.mxu0 0
  %1026 = vmatpush1.bf16.msra.mxu0 0
  %1027 = vmatprep.subr.bf16.mxu0 0
  %1028 = vmatpush1.bf16.msra.mxu0 0
  %1029 = vmatprep.subr.bf16.mxu0 0
  %1030 = vmatpush1.bf16.msra.mxu0 0
  %1031 = vmatprep.subr.bf16.mxu0 0
  %1032 = vmatpush1.bf16.msra.mxu0 0
  %1033 = vmatprep.subr.bf16.mxu0 0
  %1034 = vmatpush1.bf16.msra.mxu0 0
  %1035 = vmatprep.subr.bf16.mxu0 0
  %1036 = vmatpush1.bf16.msra.mxu0 0
  %1037 = vmatprep.subr.bf16.mxu0 0
  %1038 = vmatpush1.bf16.msra.mxu0 0
  %1039 = vmatprep.subr.bf16.mxu0 0
  %1040 = vmatpush1.bf16.msra.mxu0 0
  %1041 = vmatprep.subr.bf16.mxu0 0
  %1042 = vmatpush1.bf16.msra.mxu0 0
  %1043 = vmatprep.subr.bf16.mxu0 0
  %1044 = vmatpush1.bf16.msra.mxu0 0
  %1045 = vmatprep.mubr.bf16.mxu0 0
  %1046 = vmatmul.mubr.bf16.gmra.mrb[0].mxu0 %v713
  %v1047 = vpop.f32.mrb[0].mxu0
  %v1048 = vadd.f32 0.0, %v1047
  %v1049 = vpop.f32.mrb[0].mxu0
  %v1050 = vpop.f32.mrb[0].mxu0
  %v1051 = vadd.f32 0.0, %v1050
  %v1052 = vpop.f32.mrb[0].mxu0
  %1053 = vmatprep.mubr.bf16.mxu0 0
  %1054 = vmatmul.mubr.bf16.gmra.mrb[0].mxu0 %v716
  %v1055 = vpop.f32.mrb[0].mxu0
  %v1056 = vadd.f32 0.0, %v1055
  %v1057 = vpop.f32.mrb[0].mxu0
  %v1058 = vpop.f32.mrb[0].mxu0
  %v1059 = vadd.f32 0.0, %v1058
  %v1060 = vpop.f32.mrb[0].mxu0
  %1061 = vmatprep.mubr.bf16.mxu0 0
  %1062 = vmatmul.mubr.bf16.gmra.mrb[0].mxu0 %v719
  %v1063 = vpop.f32.mrb[0].mxu0
  %v1064 = vadd.f32 0.0, %v1063
  %v1065 = vpop.f32.mrb[0].mxu0
  %v1066 = vpop.f32.mrb[0].mxu0
  %v1067 = vadd.f32 0.0, %v1066
  %v1068 = vpop.f32.mrb[0].mxu0
  %1069 = vmatprep.mubr.bf16.mxu0 0
  %1070 = vmatmul.mubr.bf16.gmra.mrb[0].mxu0 %v722
  %v1071 = vpop.f32.mrb[0].mxu0
  %v1072 = vadd.f32 0.0, %v1071
  %v1073 = vpop.f32.mrb[0].mxu0
  %v1074 = vpop.f32.mrb[0].mxu0
  %v1075 = vadd.f32 0.0, %v1074
  %v1076 = vpop.f32.mrb[0].mxu0
  %1077 = vmatprep.mubr.bf16.mxu0 0
  %1078 = vmatmul.mubr.bf16.gmra.mrb[0].mxu0 %v725
  %v1079 = vpop.f32.mrb[0].mxu0
  %v1080 = vadd.f32 0.0, %v1079
  %v1081 = vpop.f32.mrb[0].mxu0
  %v1082 = vpop.f32.mrb[0].mxu0
  %v1083 = vadd.f32 0.0, %v1082
  %v1084 = vpop.f32.mrb[0].mxu0
  %1085 = vmatprep.mubr.bf16.mxu0 0
  %1086 = vmatmul.mubr.bf16.gmra.mrb[0].mxu0 %v728
  %v1087 = vpop.f32.mrb[0].mxu0
  %v1088 = vadd.f32 0.0, %v1087
  %v1089 = vpop.f32.mrb[0].mxu0
  %v1090 = vpop.f32.mrb[0].mxu0
  %v1091 = vadd.f32 0.0, %v1090
  %v1092 = vpop.f32.mrb[0].mxu0
  %1093 = vmatprep.mubr.bf16.mxu0 0
  %1094 = vmatmul.mubr.bf16.gmra.mrb[0].mxu0 %v731
  %v1095 = vpop.f32.mrb[0].mxu0
  %v1096 = vadd.f32 0.0, %v1095
  %v1097 = vpop.f32.mrb[0].mxu0
  %v1098 = vpop.f32.mrb[0].mxu0
  %v1099 = vadd.f32 0.0, %v1098
  %v1100 = vpop.f32.mrb[0].mxu0
  %1101 = vmatprep.mubr.bf16.mxu0 0
  %1102 = vmatmul.mubr.bf16.gmra.mrb[0].mxu0 %v734
  %v1103 = vpop.f32.mrb[0].mxu0
  %v1104 = vadd.f32 0.0, %v1103
  %v1105 = vpop.f32.mrb[0].mxu0
  %v1106 = vpop.f32.mrb[0].mxu0
  %v1107 = vadd.f32 0.0, %v1106
  %v1108 = vpop.f32.mrb[0].mxu0
  %1109 = vmatprep.mubr.bf16.mxu0 0
  %1110 = vmatmul.mubr.bf16.gmra.mrb[0].mxu0 %v737
  %v1111 = vpop.f32.mrb[0].mxu0
  %v1112 = vadd.f32 0.0, %v1111
  %v1113 = vpop.f32.mrb[0].mxu0
  %v1114 = vpop.f32.mrb[0].mxu0
  %v1115 = vadd.f32 0.0, %v1114
  %v1116 = vpop.f32.mrb[0].mxu0
  %1117 = vmatprep.mubr.bf16.mxu0 0
  %1118 = vmatmul.mubr.bf16.gmra.mrb[0].mxu0 %v740
  %v1119 = vpop.f32.mrb[0].mxu0
  %v1120 = vadd.f32 0.0, %v1119
  %v1121 = vpop.f32.mrb[0].mxu0
  %v1122 = vpop.f32.mrb[0].mxu0
  %v1123 = vadd.f32 0.0, %v1122
  %v1124 = vpop.f32.mrb[0].mxu0
  %1125 = vmatprep.mubr.bf16.mxu0 0
  %1126 = vmatmul.mubr.bf16.gmra.mrb[0].mxu0 %v743
  %v1127 = vpop.f32.mrb[0].mxu0
  %v1128 = vadd.f32 0.0, %v1127
  %v1129 = vpop.f32.mrb[0].mxu0
  %v1130 = vpop.f32.mrb[0].mxu0
  %v1131 = vadd.f32 0.0, %v1130
  %v1132 = vpop.f32.mrb[0].mxu0
  %1133 = vmatprep.mubr.bf16.mxu0 0
  %1134 = vmatmul.mubr.bf16.gmra.mrb[0].mxu0 %v746
  %v1135 = vpop.f32.mrb[0].mxu0
  %v1136 = vadd.f32 0.0, %v1135
  %v1137 = vpop.f32.mrb[0].mxu0
  %v1138 = vpop.f32.mrb[0].mxu0
  %v1139 = vadd.f32 0.0, %v1138
  %v1140 = vpop.f32.mrb[0].mxu0
  %1141 = vmatprep.mubr.bf16.mxu0 0
  %1142 = vmatmul.mubr.bf16.gmra.mrb[0].mxu0 %v749
  %v1143 = vpop.f32.mrb[0].mxu0
  %v1144 = vadd.f32 0.0, %v1143
  %v1145 = vpop.f32.mrb[0].mxu0
  %v1146 = vpop.f32.mrb[0].mxu0
  %v1147 = vadd.f32 0.0, %v1146
  %v1148 = vpop.f32.mrb[0].mxu0
  %1149 = vmatprep.mubr.bf16.mxu0 0
  %1150 = vmatmul.mubr.bf16.gmra.mrb[0].mxu0 %v752
  %v1151 = vpop.f32.mrb[0].mxu0
  %v1152 = vadd.f32 0.0, %v1151
  %v1153 = vpop.f32.mrb[0].mxu0
  %v1154 = vpop.f32.mrb[0].mxu0
  %v1155 = vadd.f32 0.0, %v1154
  %v1156 = vpop.f32.mrb[0].mxu0
  %1157 = vmatprep.mubr.bf16.mxu0 0
  %1158 = vmatmul.mubr.bf16.gmra.mrb[0].mxu0 %v755
  %v1159 = vpop.f32.mrb[0].mxu0
  %v1160 = vadd.f32 0.0, %v1159
  %v1161 = vpop.f32.mrb[0].mxu0
  %v1162 = vpop.f32.mrb[0].mxu0
  %v1163 = vadd.f32 0.0, %v1162
  %v1164 = vpop.f32.mrb[0].mxu0
  %1165 = vmatprep.mubr.bf16.mxu0 0
  %1166 = vmatmul.mubr.bf16.gmra.mrb[0].mxu0 %v758
  %v1167 = vpop.f32.mrb[0].mxu0
  %v1168 = vadd.f32 0.0, %v1167
  %v1169 = vpop.f32.mrb[0].mxu0
  %v1170 = vpop.f32.mrb[0].mxu0
  %v1171 = vadd.f32 0.0, %v1170
  %v1172 = vpop.f32.mrb[0].mxu0
  %1173 = vmatprep.mubr.bf16.mxu0 0
  %1174 = vmatmul.mubr.bf16.gmra.mrb[0].mxu0 %v761
  %v1175 = vpop.f32.mrb[0].mxu0
  %v1176 = vadd.f32 0.0, %v1175
  %v1177 = vpop.f32.mrb[0].mxu0
  %v1178 = vpop.f32.mrb[0].mxu0
  %v1179 = vadd.f32 0.0, %v1178
  %v1180 = vpop.f32.mrb[0].mxu0
  %1181 = vmatprep.mubr.bf16.mxu0 0
  %1182 = vmatmul.mubr.bf16.gmra.mrb[0].mxu0 %v764
  %v1183 = vpop.f32.mrb[0].mxu0
  %v1184 = vadd.f32 0.0, %v1183
  %v1185 = vpop.f32.mrb[0].mxu0
  %v1186 = vpop.f32.mrb[0].mxu0
  %v1187 = vadd.f32 0.0, %v1186
  %v1188 = vpop.f32.mrb[0].mxu0
  %1189 = vmatprep.mubr.bf16.mxu0 0
  %1190 = vmatmul.mubr.bf16.gmra.mrb[0].mxu0 %v767
  %v1191 = vpop.f32.mrb[0].mxu0
  %v1192 = vadd.f32 0.0, %v1191
  %v1193 = vpop.f32.mrb[0].mxu0
  %v1194 = vpop.f32.mrb[0].mxu0
  %v1195 = vadd.f32 0.0, %v1194
  %v1196 = vpop.f32.mrb[0].mxu0
  %1197 = vmatprep.mubr.bf16.mxu0 0
  %1198 = vmatmul.mubr.bf16.gmra.mrb[0].mxu0 %v770
  %v1199 = vpop.f32.mrb[0].mxu0
  %v1200 = vadd.f32 0.0, %v1199
  %v1201 = vpop.f32.mrb[0].mxu0
  %v1202 = vpop.f32.mrb[0].mxu0
  %v1203 = vadd.f32 0.0, %v1202
  %v1204 = vpop.f32.mrb[0].mxu0
  %1205 = vmatprep.mubr.bf16.mxu0 0
  %1206 = vmatmul.mubr.bf16.gmra.mrb[0].mxu0 %v773
  %v1207 = vpop.f32.mrb[0].mxu0
  %v1208 = vadd.f32 0.0, %v1207
  %v1209 = vpop.f32.mrb[0].mxu0
  %v1210 = vpop.f32.mrb[0].mxu0
  %v1211 = vadd.f32 0.0, %v1210
  %v1212 = vpop.f32.mrb[0].mxu0
  %1213 = vmatprep.mubr.bf16.mxu0 0
  %1214 = vmatmul.mubr.bf16.gmra.mrb[0].mxu0 %v776
  %v1215 = vpop.f32.mrb[0].mxu0
  %v1216 = vadd.f32 0.0, %v1215
  %v1217 = vpop.f32.mrb[0].mxu0
  %v1218 = vpop.f32.mrb[0].mxu0
  %v1219 = vadd.f32 0.0, %v1218
  %v1220 = vpop.f32.mrb[0].mxu0
  %1221 = vmatprep.mubr.bf16.mxu0 0
  %1222 = vmatmul.mubr.bf16.gmra.mrb[0].mxu0 %v779
  %v1223 = vpop.f32.mrb[0].mxu0
  %v1224 = vadd.f32 0.0, %v1223
  %v1225 = vpop.f32.mrb[0].mxu0
  %v1226 = vpop.f32.mrb[0].mxu0
  %v1227 = vadd.f32 0.0, %v1226
  %v1228 = vpop.f32.mrb[0].mxu0
  %1229 = vmatprep.mubr.bf16.mxu0 0
  %1230 = vmatmul.mubr.bf16.gmra.mrb[0].mxu0 %v782
  %v1231 = vpop.f32.mrb[0].mxu0
  %v1232 = vadd.f32 0.0, %v1231
  %v1233 = vpop.f32.mrb[0].mxu0
  %v1234 = vpop.f32.mrb[0].mxu0
  %v1235 = vadd.f32 0.0, %v1234
  %v1236 = vpop.f32.mrb[0].mxu0
  %1237 = vmatprep.mubr.bf16.mxu0 0
  %1238 = vmatmul.mubr.bf16.gmra.mrb[0].mxu0 %v785
  %v1239 = vpop.f32.mrb[0].mxu0
  %v1240 = vadd.f32 0.0, %v1239
  %v1241 = vpop.f32.mrb[0].mxu0
  %v1242 = vpop.f32.mrb[0].mxu0
  %v1243 = vadd.f32 0.0, %v1242
  %v1244 = vpop.f32.mrb[0].mxu0
  %1245 = vmatprep.mubr.bf16.mxu0 0
  %1246 = vmatmul.mubr.bf16.gmra.mrb[0].mxu0 %v788
  %v1247 = vpop.f32.mrb[0].mxu0
  %v1248 = vadd.f32 0.0, %v1247
  %v1249 = vpop.f32.mrb[0].mxu0
  %v1250 = vpop.f32.mrb[0].mxu0
  %v1251 = vadd.f32 0.0, %v1250
  %v1252 = vpop.f32.mrb[0].mxu0
  %1253 = vmatprep.mubr.bf16.mxu0 0
  %1254 = vmatmul.mubr.bf16.gmra.mrb[0].mxu0 %v791
  %v1255 = vpop.f32.mrb[0].mxu0
  %v1256 = vadd.f32 0.0, %v1255
  %v1257 = vpop.f32.mrb[0].mxu0
  %v1258 = vpop.f32.mrb[0].mxu0
  %v1259 = vadd.f32 0.0, %v1258
  %v1260 = vpop.f32.mrb[0].mxu0
  %1261 = vmatprep.mubr.bf16.mxu0 0
  %1262 = vmatmul.mubr.bf16.gmra.mrb[0].mxu0 %v794
  %v1263 = vpop.f32.mrb[0].mxu0
  %v1264 = vadd.f32 0.0, %v1263
  %v1265 = vpop.f32.mrb[0].mxu0
  %v1266 = vpop.f32.mrb[0].mxu0
  %v1267 = vadd.f32 0.0, %v1266
  %v1268 = vpop.f32.mrb[0].mxu0
  %1269 = vmatprep.mubr.bf16.mxu0 0
  %1270 = vmatmul.mubr.bf16.gmra.mrb[0].mxu0 %v797
  %v1271 = vpop.f32.mrb[0].mxu0
  %v1272 = vadd.f32 0.0, %v1271
  %v1273 = vpop.f32.mrb[0].mxu0
  %v1274 = vpop.f32.mrb[0].mxu0
  %v1275 = vadd.f32 0.0, %v1274
  %v1276 = vpop.f32.mrb[0].mxu0
  %1277 = vmatprep.mubr.bf16.mxu0 0
  %1278 = vmatmul.mubr.bf16.gmra.mrb[0].mxu0 %v800
  %v1279 = vpop.f32.mrb[0].mxu0
  %v1280 = vadd.f32 0.0, %v1279
  %v1281 = vpop.f32.mrb[0].mxu0
  %v1282 = vpop.f32.mrb[0].mxu0
  %v1283 = vadd.f32 0.0, %v1282
  %v1284 = vpop.f32.mrb[0].mxu0
  %1285 = vmatprep.mubr.bf16.mxu0 0
  %1286 = vmatmul.mubr.bf16.gmra.mrb[0].mxu0 %v803
  %v1287 = vpop.f32.mrb[0].mxu0
  %v1288 = vadd.f32 0.0, %v1287
  %v1289 = vpop.f32.mrb[0].mxu0
  %v1290 = vpop.f32.mrb[0].mxu0
  %v1291 = vadd.f32 0.0, %v1290
  %v1292 = vpop.f32.mrb[0].mxu0
  %1293 = vmatprep.mubr.bf16.mxu0 0
  %1294 = vmatmul.mubr.bf16.gmra.mrb[0].mxu0 %v806
  %v1295 = vpop.f32.mrb[0].mxu0
  %v1296 = vadd.f32 0.0, %v1295
  %v1297 = vpop.f32.mrb[0].mxu0
  %v1298 = vpop.f32.mrb[0].mxu0
  %v1299 = vadd.f32 0.0, %v1298
  %v1300 = vpop.f32.mrb[0].mxu0
  %1301 = vmatprep.mubr.bf16.mxu0 0
  %1302 = vmatmul.mubr.bf16.gmra.mrb[0].mxu0 %v809
  %v1303 = vpop.f32.mrb[0].mxu0
  %v1304 = vadd.f32 0.0, %v1303
  %v1305 = vpop.f32.mrb[0].mxu0
  %v1306 = vpop.f32.mrb[0].mxu0
  %v1307 = vadd.f32 0.0, %v1306
  %v1308 = vpop.f32.mrb[0].mxu0
  %1309 = vmatprep.mubr.bf16.mxu0 0
  %1310 = vmatmul.mubr.bf16.gmra.mrb[0].mxu0 %v812
  %v1311 = vpop.f32.mrb[0].mxu0
  %v1312 = vadd.f32 0.0, %v1311
  %v1313 = vpop.f32.mrb[0].mxu0
  %v1314 = vpop.f32.mrb[0].mxu0
  %v1315 = vadd.f32 0.0, %v1314
  %v1316 = vpop.f32.mrb[0].mxu0
  %1317 = vmatprep.mubr.bf16.mxu0 0
  %1318 = vmatmul.mubr.bf16.gmra.mrb[0].mxu0 %v815
  %v1319 = vpop.f32.mrb[0].mxu0
  %v1320 = vadd.f32 0.0, %v1319
  %v1321 = vpop.f32.mrb[0].mxu0
  %v1322 = vpop.f32.mrb[0].mxu0
  %v1323 = vadd.f32 0.0, %v1322
  %v1324 = vpop.f32.mrb[0].mxu0
  %1325 = vmatprep.mubr.bf16.mxu0 0
  %1326 = vmatmul.mubr.bf16.gmra.mrb[0].mxu0 %v818
  %v1327 = vpop.f32.mrb[0].mxu0
  %v1328 = vadd.f32 0.0, %v1327
  %v1329 = vpop.f32.mrb[0].mxu0
  %v1330 = vpop.f32.mrb[0].mxu0
  %v1331 = vadd.f32 0.0, %v1330
  %v1332 = vpop.f32.mrb[0].mxu0
  %1333 = vmatprep.mubr.bf16.mxu0 0
  %1334 = vmatmul.mubr.bf16.gmra.mrb[0].mxu0 %v821
  %v1335 = vpop.f32.mrb[0].mxu0
  %v1336 = vadd.f32 0.0, %v1335
  %v1337 = vpop.f32.mrb[0].mxu0
  %v1338 = vpop.f32.mrb[0].mxu0
  %v1339 = vadd.f32 0.0, %v1338
  %v1340 = vpop.f32.mrb[0].mxu0
  %1341 = vmatprep.mubr.bf16.mxu0 0
  %1342 = vmatmul.mubr.bf16.gmra.mrb[0].mxu0 %v824
  %v1343 = vpop.f32.mrb[0].mxu0
  %v1344 = vadd.f32 0.0, %v1343
  %v1345 = vpop.f32.mrb[0].mxu0
  %v1346 = vpop.f32.mrb[0].mxu0
  %v1347 = vadd.f32 0.0, %v1346
  %v1348 = vpop.f32.mrb[0].mxu0
  %1349 = vmatprep.mubr.bf16.mxu0 0
  %1350 = vmatmul.mubr.bf16.gmra.mrb[0].mxu0 %v827
  %v1351 = vpop.f32.mrb[0].mxu0
  %v1352 = vadd.f32 0.0, %v1351
  %v1353 = vpop.f32.mrb[0].mxu0
  %v1354 = vpop.f32.mrb[0].mxu0
  %v1355 = vadd.f32 0.0, %v1354
  %v1356 = vpop.f32.mrb[0].mxu0
  %1357 = vmatprep.mubr.bf16.mxu0 0
  %1358 = vmatmul.mubr.bf16.gmra.mrb[0].mxu0 %v830
  %v1359 = vpop.f32.mrb[0].mxu0
  %v1360 = vadd.f32 0.0, %v1359
  %v1361 = vpop.f32.mrb[0].mxu0
  %v1362 = vpop.f32.mrb[0].mxu0
  %v1363 = vadd.f32 0.0, %v1362
  %v1364 = vpop.f32.mrb[0].mxu0
  %1365 = vmatprep.mubr.bf16.mxu0 0
  %1366 = vmatmul.mubr.bf16.gmra.mrb[0].mxu0 %v833
  %v1367 = vpop.f32.mrb[0].mxu0
  %v1368 = vadd.f32 0.0, %v1367
  %v1369 = vpop.f32.mrb[0].mxu0
  %v1370 = vpop.f32.mrb[0].mxu0
  %v1371 = vadd.f32 0.0, %v1370
  %v1372 = vpop.f32.mrb[0].mxu0
  %1373 = vmatprep.mubr.bf16.mxu0 0
  %1374 = vmatmul.mubr.bf16.gmra.mrb[0].mxu0 %v836
  %v1375 = vpop.f32.mrb[0].mxu0
  %v1376 = vadd.f32 0.0, %v1375
  %v1377 = vpop.f32.mrb[0].mxu0
  %v1378 = vpop.f32.mrb[0].mxu0
  %v1379 = vadd.f32 0.0, %v1378
  %v1380 = vpop.f32.mrb[0].mxu0
  %1381 = vmatprep.mubr.bf16.mxu0 0
  %1382 = vmatmul.mubr.bf16.gmra.mrb[0].mxu0 %v839
  %v1383 = vpop.f32.mrb[0].mxu0
  %v1384 = vadd.f32 0.0, %v1383
  %v1385 = vpop.f32.mrb[0].mxu0
  %v1386 = vpop.f32.mrb[0].mxu0
  %v1387 = vadd.f32 0.0, %v1386
  %v1388 = vpop.f32.mrb[0].mxu0
  %1389 = vmatprep.mubr.bf16.mxu0 0
  %1390 = vmatmul.mubr.bf16.gmra.mrb[0].mxu0 %v842
  %v1391 = vpop.f32.mrb[0].mxu0
  %v1392 = vadd.f32 0.0, %v1391
  %v1393 = vpop.f32.mrb[0].mxu0
  %v1394 = vpop.f32.mrb[0].mxu0
  %v1395 = vadd.f32 0.0, %v1394
  %v1396 = vpop.f32.mrb[0].mxu0
  %1397 = vmatprep.mubr.bf16.mxu0 0
  %1398 = vmatmul.mubr.bf16.gmra.mrb[0].mxu0 %v845
  %v1399 = vpop.f32.mrb[0].mxu0
  %v1400 = vadd.f32 0.0, %v1399
  %v1401 = vpop.f32.mrb[0].mxu0
  %v1402 = vpop.f32.mrb[0].mxu0
  %v1403 = vadd.f32 0.0, %v1402
  %v1404 = vpop.f32.mrb[0].mxu0
  %1405 = vmatprep.mubr.bf16.mxu0 0
  %1406 = vmatmul.mubr.bf16.gmra.mrb[0].mxu0 %v848
  %v1407 = vpop.f32.mrb[0].mxu0
  %v1408 = vadd.f32 0.0, %v1407
  %v1409 = vpop.f32.mrb[0].mxu0
  %v1410 = vpop.f32.mrb[0].mxu0
  %v1411 = vadd.f32 0.0, %v1410
  %v1412 = vpop.f32.mrb[0].mxu0
  %1413 = vmatprep.mubr.bf16.mxu0 0
  %1414 = vmatmul.mubr.bf16.gmra.mrb[0].mxu0 %v851
  %v1415 = vpop.f32.mrb[0].mxu0
  %v1416 = vadd.f32 0.0, %v1415
  %v1417 = vpop.f32.mrb[0].mxu0
  %v1418 = vpop.f32.mrb[0].mxu0
  %v1419 = vadd.f32 0.0, %v1418
  %v1420 = vpop.f32.mrb[0].mxu0
  %1421 = vmatprep.mubr.bf16.mxu0 0
  %1422 = vmatmul.mubr.bf16.gmra.mrb[0].mxu0 %v854
  %v1423 = vpop.f32.mrb[0].mxu0
  %v1424 = vadd.f32 0.0, %v1423
  %v1425 = vpop.f32.mrb[0].mxu0
  %v1426 = vpop.f32.mrb[0].mxu0
  %v1427 = vadd.f32 0.0, %v1426
  %v1428 = vpop.f32.mrb[0].mxu0
  %1429 = vmatprep.mubr.bf16.mxu0 0
  %1430 = vmatmul.mubr.bf16.gmra.mrb[0].mxu0 %v857
  %v1431 = vpop.f32.mrb[0].mxu0
  %v1432 = vadd.f32 0.0, %v1431
  %v1433 = vpop.f32.mrb[0].mxu0
  %v1434 = vpop.f32.mrb[0].mxu0
  %v1435 = vadd.f32 0.0, %v1434
  %v1436 = vpop.f32.mrb[0].mxu0
  %1437 = vmatprep.mubr.bf16.mxu0 0
  %1438 = vmatmul.mubr.bf16.gmra.mrb[0].mxu0 %v860
  %v1439 = vpop.f32.mrb[0].mxu0
  %v1440 = vadd.f32 0.0, %v1439
  %v1441 = vpop.f32.mrb[0].mxu0
  %v1442 = vpop.f32.mrb[0].mxu0
  %v1443 = vadd.f32 0.0, %v1442
  %v1444 = vpop.f32.mrb[0].mxu0
  %1445 = vmatprep.mubr.bf16.mxu0 0
  %1446 = vmatmul.mubr.bf16.gmra.mrb[0].mxu0 %v863
  %v1447 = vpop.f32.mrb[0].mxu0
  %v1448 = vadd.f32 0.0, %v1447
  %v1449 = vpop.f32.mrb[0].mxu0
  %v1450 = vpop.f32.mrb[0].mxu0
  %v1451 = vadd.f32 0.0, %v1450
  %v1452 = vpop.f32.mrb[0].mxu0
  %1453 = vmatprep.mubr.bf16.mxu0 0
  %1454 = vmatmul.mubr.bf16.gmra.mrb[0].mxu0 %v866
  %v1455 = vpop.f32.mrb[0].mxu0
  %v1456 = vadd.f32 0.0, %v1455
  %v1457 = vpop.f32.mrb[0].mxu0
  %v1458 = vpop.f32.mrb[0].mxu0
  %v1459 = vadd.f32 0.0, %v1458
  %v1460 = vpop.f32.mrb[0].mxu0
  %1461 = vmatprep.mubr.bf16.mxu0 0
  %1462 = vmatmul.mubr.bf16.gmra.mrb[0].mxu0 %v869
  %v1463 = vpop.f32.mrb[0].mxu0
  %v1464 = vadd.f32 0.0, %v1463
  %v1465 = vpop.f32.mrb[0].mxu0
  %v1466 = vpop.f32.mrb[0].mxu0
  %v1467 = vadd.f32 0.0, %v1466
  %v1468 = vpop.f32.mrb[0].mxu0
  %1469 = vmatprep.mubr.bf16.mxu0 0
  %1470 = vmatmul.mubr.bf16.gmra.mrb[0].mxu0 %v872
  %v1471 = vpop.f32.mrb[0].mxu0
  %v1472 = vadd.f32 0.0, %v1471
  %v1473 = vpop.f32.mrb[0].mxu0
  %v1474 = vpop.f32.mrb[0].mxu0
  %v1475 = vadd.f32 0.0, %v1474
  %v1476 = vpop.f32.mrb[0].mxu0
  %1477 = vmatprep.mubr.bf16.mxu0 0
  %1478 = vmatmul.mubr.bf16.gmra.mrb[0].mxu0 %v875
  %v1479 = vpop.f32.mrb[0].mxu0
  %v1480 = vadd.f32 0.0, %v1479
  %v1481 = vpop.f32.mrb[0].mxu0
  %v1482 = vpop.f32.mrb[0].mxu0
  %v1483 = vadd.f32 0.0, %v1482
  %v1484 = vpop.f32.mrb[0].mxu0
  %1485 = vmatprep.mubr.bf16.mxu0 0
  %1486 = vmatmul.mubr.bf16.gmra.mrb[0].mxu0 %v878
  %v1487 = vpop.f32.mrb[0].mxu0
  %v1488 = vadd.f32 0.0, %v1487
  %v1489 = vpop.f32.mrb[0].mxu0
  %v1490 = vpop.f32.mrb[0].mxu0
  %v1491 = vadd.f32 0.0, %v1490
  %v1492 = vpop.f32.mrb[0].mxu0
  %1493 = vmatprep.mubr.bf16.mxu0 0
  %1494 = vmatmul.mubr.bf16.gmra.mrb[0].mxu0 %v881
  %v1495 = vpop.f32.mrb[0].mxu0
  %v1496 = vadd.f32 0.0, %v1495
  %v1497 = vpop.f32.mrb[0].mxu0
  %v1498 = vpop.f32.mrb[0].mxu0
  %v1499 = vadd.f32 0.0, %v1498
  %v1500 = vpop.f32.mrb[0].mxu0
  %1501 = vmatprep.mubr.bf16.mxu0 0
  %1502 = vmatmul.mubr.bf16.gmra.mrb[0].mxu0 %v884
  %v1503 = vpop.f32.mrb[0].mxu0
  %v1504 = vadd.f32 0.0, %v1503
  %v1505 = vpop.f32.mrb[0].mxu0
  %v1506 = vpop.f32.mrb[0].mxu0
  %v1507 = vadd.f32 0.0, %v1506
  %v1508 = vpop.f32.mrb[0].mxu0
  %1509 = vmatprep.mubr.bf16.mxu0 0
  %1510 = vmatmul.mubr.bf16.gmra.mrb[0].mxu0 %v887
  %v1511 = vpop.f32.mrb[0].mxu0
  %v1512 = vadd.f32 0.0, %v1511
  %v1513 = vpop.f32.mrb[0].mxu0
  %v1514 = vpop.f32.mrb[0].mxu0
  %v1515 = vadd.f32 0.0, %v1514
  %v1516 = vpop.f32.mrb[0].mxu0
  %1517 = vmatprep.mubr.bf16.mxu0 0
  %1518 = vmatmul.mubr.bf16.gmra.mrb[0].mxu0 %v890
  %v1519 = vpop.f32.mrb[0].mxu0
  %v1520 = vadd.f32 0.0, %v1519
  %v1521 = vpop.f32.mrb[0].mxu0
  %v1522 = vpop.f32.mrb[0].mxu0
  %v1523 = vadd.f32 0.0, %v1522
  %v1524 = vpop.f32.mrb[0].mxu0
  %1525 = vmatprep.mubr.bf16.mxu0 0
  %1526 = vmatmul.mubr.bf16.gmra.mrb[0].mxu0 %v893
  %v1527 = vpop.f32.mrb[0].mxu0
  %v1528 = vadd.f32 0.0, %v1527
  %v1529 = vpop.f32.mrb[0].mxu0
  %v1530 = vpop.f32.mrb[0].mxu0
  %v1531 = vadd.f32 0.0, %v1530
  %v1532 = vpop.f32.mrb[0].mxu0
  %1533 = vmatprep.mubr.bf16.mxu0 0
  %1534 = vmatmul.mubr.bf16.gmra.mrb[0].mxu0 %v896
  %v1535 = vpop.f32.mrb[0].mxu0
  %v1536 = vadd.f32 0.0, %v1535
  %v1537 = vpop.f32.mrb[0].mxu0
  %v1538 = vpop.f32.mrb[0].mxu0
  %v1539 = vadd.f32 0.0, %v1538
  %v1540 = vpop.f32.mrb[0].mxu0
  %1541 = vmatprep.mubr.bf16.mxu0 0
  %1542 = vmatmul.mubr.bf16.gmra.mrb[0].mxu0 %v899
  %v1543 = vpop.f32.mrb[0].mxu0
  %v1544 = vadd.f32 0.0, %v1543
  %v1545 = vpop.f32.mrb[0].mxu0
  %v1546 = vpop.f32.mrb[0].mxu0
  %v1547 = vadd.f32 0.0, %v1546
  %v1548 = vpop.f32.mrb[0].mxu0
  %1549 = vmatprep.mubr.bf16.mxu0 0
  %1550 = vmatmul.mubr.bf16.gmra.mrb[0].mxu0 %v902
  %v1551 = vpop.f32.mrb[0].mxu0
  %v1552 = vadd.f32 0.0, %v1551
  %v1553 = vpop.f32.mrb[0].mxu0
  %v1554 = vpop.f32.mrb[0].mxu0
  %v1555 = vadd.f32 0.0, %v1554
  %v1556 = vpop.f32.mrb[0].mxu0
  %1557 = vmatprep.mubr.bf16.mxu0 0
  %1558 = vmatmul.mubr.bf16.gmra.mrb[0].mxu0 %v905
  %v1559 = vpop.f32.mrb[0].mxu0
  %v1560 = vadd.f32 0.0, %v1559
  %v1561 = vpop.f32.mrb[0].mxu0
  %v1562 = vpop.f32.mrb[0].mxu0
  %v1563 = vadd.f32 0.0, %v1562
  %v1564 = vpop.f32.mrb[0].mxu0
  %1565 = vmatprep.mubr.bf16.mxu0 0
  %1566 = vmatmul.mubr.bf16.gmra.mrb[0].mxu0 %v908
  %v1567 = vpop.f32.mrb[0].mxu0
  %v1568 = vadd.f32 0.0, %v1567
  %v1569 = vpop.f32.mrb[0].mxu0
  %v1570 = vpop.f32.mrb[0].mxu0
  %v1571 = vadd.f32 0.0, %v1570
  %v1572 = vpop.f32.mrb[0].mxu0
  %1573 = vmatprep.mubr.bf16.mxu0 0
  %1574 = vmatmul.mubr.bf16.gmra.mrb[0].mxu0 %v911
  %v1575 = vpop.f32.mrb[0].mxu0
  %v1576 = vadd.f32 0.0, %v1575
  %v1577 = vpop.f32.mrb[0].mxu0
  %v1578 = vpop.f32.mrb[0].mxu0
  %v1579 = vadd.f32 0.0, %v1578
  %v1580 = vpop.f32.mrb[0].mxu0
  %1581 = vmatprep.mubr.bf16.mxu0 0
  %1582 = vmatmul.mubr.bf16.gmra.mrb[0].mxu0 %v914
  %v1583 = vpop.f32.mrb[0].mxu0
  %v1584 = vadd.f32 0.0, %v1583
  %v1585 = vpop.f32.mrb[0].mxu0
  %v1586 = vpop.f32.mrb[0].mxu0
  %v1587 = vadd.f32 0.0, %v1586
  %v1588 = vpop.f32.mrb[0].mxu0
  %1589 = vmatprep.mubr.bf16.mxu0 0
  %1590 = vmatmul.mubr.bf16.gmra.mrb[0].mxu0 %v917
  %v1591 = vpop.f32.mrb[0].mxu0
  %v1592 = vadd.f32 0.0, %v1591
  %v1593 = vpop.f32.mrb[0].mxu0
  %v1594 = vpop.f32.mrb[0].mxu0
  %v1595 = vadd.f32 0.0, %v1594
  %v1596 = vpop.f32.mrb[0].mxu0
  %1597 = vmatprep.mubr.bf16.mxu0 0
  %1598 = vmatmul.mubr.bf16.gmra.mrb[0].mxu0 %v920
  %v1599 = vpop.f32.mrb[0].mxu0
  %v1600 = vadd.f32 0.0, %v1599
  %v1601 = vpop.f32.mrb[0].mxu0
  %v1602 = vpop.f32.mrb[0].mxu0
  %v1603 = vadd.f32 0.0, %v1602
  %v1604 = vpop.f32.mrb[0].mxu0
  %1605 = vmatprep.mubr.bf16.mxu0 0
  %1606 = vmatmul.mubr.bf16.gmra.mrb[0].mxu0 %v923
  %v1607 = vpop.f32.mrb[0].mxu0
  %v1608 = vadd.f32 0.0, %v1607
  %v1609 = vpop.f32.mrb[0].mxu0
  %v1610 = vpop.f32.mrb[0].mxu0
  %v1611 = vadd.f32 0.0, %v1610
  %v1612 = vpop.f32.mrb[0].mxu0
  %1613 = vmatprep.mubr.bf16.mxu0 0
  %1614 = vmatmul.mubr.bf16.gmra.mrb[0].mxu0 %v926
  %v1615 = vpop.f32.mrb[0].mxu0
  %v1616 = vadd.f32 0.0, %v1615
  %v1617 = vpop.f32.mrb[0].mxu0
  %v1618 = vpop.f32.mrb[0].mxu0
  %v1619 = vadd.f32 0.0, %v1618
  %v1620 = vpop.f32.mrb[0].mxu0
  %1621 = vmatprep.mubr.bf16.mxu0 0
  %1622 = vmatmul.mubr.bf16.gmra.mrb[0].mxu0 %v929
  %v1623 = vpop.f32.mrb[0].mxu0
  %v1624 = vadd.f32 0.0, %v1623
  %v1625 = vpop.f32.mrb[0].mxu0
  %v1626 = vpop.f32.mrb[0].mxu0
  %v1627 = vadd.f32 0.0, %v1626
  %v1628 = vpop.f32.mrb[0].mxu0
  %1629 = vmatprep.mubr.bf16.mxu0 0
  %1630 = vmatmul.mubr.bf16.gmra.mrb[0].mxu0 %v932
  %v1631 = vpop.f32.mrb[0].mxu0
  %v1632 = vadd.f32 0.0, %v1631
  %v1633 = vpop.f32.mrb[0].mxu0
  %v1634 = vpop.f32.mrb[0].mxu0
  %v1635 = vadd.f32 0.0, %v1634
  %v1636 = vpop.f32.mrb[0].mxu0
  %1637 = vmatprep.mubr.bf16.mxu0 0
  %1638 = vmatmul.mubr.bf16.gmra.mrb[0].mxu0 %v935
  %v1639 = vpop.f32.mrb[0].mxu0
  %v1640 = vadd.f32 0.0, %v1639
  %v1641 = vpop.f32.mrb[0].mxu0
  %v1642 = vpop.f32.mrb[0].mxu0
  %v1643 = vadd.f32 0.0, %v1642
  %v1644 = vpop.f32.mrb[0].mxu0
  %1645 = vmatprep.mubr.bf16.mxu0 0
  %1646 = vmatmul.mubr.bf16.gmra.mrb[0].mxu0 %v938
  %v1647 = vpop.f32.mrb[0].mxu0
  %v1648 = vadd.f32 0.0, %v1647
  %v1649 = vpop.f32.mrb[0].mxu0
  %v1650 = vpop.f32.mrb[0].mxu0
  %v1651 = vadd.f32 0.0, %v1650
  %v1652 = vpop.f32.mrb[0].mxu0
  %1653 = vmatprep.mubr.bf16.mxu0 0
  %1654 = vmatmul.mubr.bf16.gmra.mrb[0].mxu0 %v941
  %v1655 = vpop.f32.mrb[0].mxu0
  %v1656 = vadd.f32 0.0, %v1655
  %v1657 = vpop.f32.mrb[0].mxu0
  %v1658 = vpop.f32.mrb[0].mxu0
  %v1659 = vadd.f32 0.0, %v1658
  %v1660 = vpop.f32.mrb[0].mxu0
  %1661 = vmatprep.mubr.bf16.mxu0 0
  %1662 = vmatmul.mubr.bf16.gmra.mrb[0].mxu0 %v944
  %v1663 = vpop.f32.mrb[0].mxu0
  %v1664 = vadd.f32 0.0, %v1663
  %v1665 = vpop.f32.mrb[0].mxu0
  %v1666 = vpop.f32.mrb[0].mxu0
  %v1667 = vadd.f32 0.0, %v1666
  %v1668 = vpop.f32.mrb[0].mxu0
  %1669 = vmatprep.mubr.bf16.mxu0 0
  %1670 = vmatmul.mubr.bf16.gmra.mrb[0].mxu0 %v947
  %v1671 = vpop.f32.mrb[0].mxu0
  %v1672 = vadd.f32 0.0, %v1671
  %v1673 = vpop.f32.mrb[0].mxu0
  %v1674 = vpop.f32.mrb[0].mxu0
  %v1675 = vadd.f32 0.0, %v1674
  %v1676 = vpop.f32.mrb[0].mxu0
  %1677 = vmatprep.mubr.bf16.mxu0 0
  %1678 = vmatmul.mubr.bf16.gmra.mrb[0].mxu0 %v950
  %v1679 = vpop.f32.mrb[0].mxu0
  %v1680 = vadd.f32 0.0, %v1679
  %v1681 = vpop.f32.mrb[0].mxu0
  %v1682 = vpop.f32.mrb[0].mxu0
  %v1683 = vadd.f32 0.0, %v1682
  %v1684 = vpop.f32.mrb[0].mxu0
  %1685 = vmatprep.mubr.bf16.mxu0 0
  %1686 = vmatmul.mubr.bf16.gmra.mrb[0].mxu0 %v953
  %v1687 = vpop.f32.mrb[0].mxu0
  %v1688 = vadd.f32 0.0, %v1687
  %v1689 = vpop.f32.mrb[0].mxu0
  %v1690 = vpop.f32.mrb[0].mxu0
  %v1691 = vadd.f32 0.0, %v1690
  %v1692 = vpop.f32.mrb[0].mxu0
  %1693 = vmatprep.mubr.bf16.mxu0 0
  %1694 = vmatmul.mubr.bf16.gmra.mrb[0].mxu0 %v956
  %v1695 = vpop.f32.mrb[0].mxu0
  %v1696 = vadd.f32 0.0, %v1695
  %v1697 = vpop.f32.mrb[0].mxu0
  %v1698 = vpop.f32.mrb[0].mxu0
  %v1699 = vadd.f32 0.0, %v1698
  %v1700 = vpop.f32.mrb[0].mxu0
  %1701 = vmatprep.mubr.bf16.mxu0 0
  %1702 = vmatmul.mubr.bf16.gmra.mrb[0].mxu0 %v959
  %v1703 = vpop.f32.mrb[0].mxu0
  %v1704 = vadd.f32 0.0, %v1703
  %v1705 = vpop.f32.mrb[0].mxu0
  %v1706 = vpop.f32.mrb[0].mxu0
  %v1707 = vadd.f32 0.0, %v1706
  %v1708 = vpop.f32.mrb[0].mxu0
  %1709 = vmatprep.mubr.bf16.mxu0 0
  %1710 = vmatmul.mubr.bf16.gmra.mrb[0].mxu0 %v962
  %v1711 = vpop.f32.mrb[0].mxu0
  %v1712 = vadd.f32 0.0, %v1711
  %v1713 = vpop.f32.mrb[0].mxu0
  %v1714 = vpop.f32.mrb[0].mxu0
  %v1715 = vadd.f32 0.0, %v1714
  %v1716 = vpop.f32.mrb[0].mxu0
  %1717 = vmatprep.mubr.bf16.mxu0 0
  %1718 = vmatmul.mubr.bf16.gmra.mrb[0].mxu0 %v965
  %v1719 = vpop.f32.mrb[0].mxu0
  %v1720 = vadd.f32 0.0, %v1719
  %v1721 = vpop.f32.mrb[0].mxu0
  %v1722 = vpop.f32.mrb[0].mxu0
  %v1723 = vadd.f32 0.0, %v1722
  %v1724 = vpop.f32.mrb[0].mxu0
  %1725 = vmatprep.mubr.bf16.mxu0 0
  %1726 = vmatmul.mubr.bf16.gmra.mrb[0].mxu0 %v968
  %v1727 = vpop.f32.mrb[0].mxu0
  %v1728 = vadd.f32 0.0, %v1727
  %v1729 = vpop.f32.mrb[0].mxu0
  %v1730 = vpop.f32.mrb[0].mxu0
  %v1731 = vadd.f32 0.0, %v1730
  %v1732 = vpop.f32.mrb[0].mxu0
  %1733 = vmatprep.mubr.bf16.mxu0 0
  %1734 = vmatmul.mubr.bf16.gmra.mrb[0].mxu0 %v971
  %v1735 = vpop.f32.mrb[0].mxu0
  %v1736 = vadd.f32 0.0, %v1735
  %v1737 = vpop.f32.mrb[0].mxu0
  %v1738 = vpop.f32.mrb[0].mxu0
  %v1739 = vadd.f32 0.0, %v1738
  %v1740 = vpop.f32.mrb[0].mxu0
  %1741 = vmatprep.mubr.bf16.mxu0 0
  %1742 = vmatmul.mubr.bf16.gmra.mrb[0].mxu0 %v974
  %v1743 = vpop.f32.mrb[0].mxu0
  %v1744 = vadd.f32 0.0, %v1743
  %v1745 = vpop.f32.mrb[0].mxu0
  %v1746 = vpop.f32.mrb[0].mxu0
  %v1747 = vadd.f32 0.0, %v1746
  %v1748 = vpop.f32.mrb[0].mxu0
  %1749 = vmatprep.mubr.bf16.mxu0 0
  %1750 = vmatmul.mubr.bf16.gmra.mrb[0].mxu0 %v977
  %v1751 = vpop.f32.mrb[0].mxu0
  %v1752 = vadd.f32 0.0, %v1751
  %v1753 = vpop.f32.mrb[0].mxu0
  %v1754 = vpop.f32.mrb[0].mxu0
  %v1755 = vadd.f32 0.0, %v1754
  %v1756 = vpop.f32.mrb[0].mxu0
  %1757 = vmatprep.mubr.bf16.mxu0 0
  %1758 = vmatmul.mubr.bf16.gmra.mrb[0].mxu0 %v980
  %v1759 = vpop.f32.mrb[0].mxu0
  %v1760 = vadd.f32 0.0, %v1759
  %v1761 = vpop.f32.mrb[0].mxu0
  %v1762 = vpop.f32.mrb[0].mxu0
  %v1763 = vadd.f32 0.0, %v1762
  %v1764 = vpop.f32.mrb[0].mxu0
  %1765 = vmatprep.mubr.bf16.mxu0 0
  %1766 = vmatmul.mubr.bf16.gmra.mrb[0].mxu0 %v983
  %v1767 = vpop.f32.mrb[0].mxu0
  %v1768 = vadd.f32 0.0, %v1767
  %v1769 = vpop.f32.mrb[0].mxu0
  %v1770 = vpop.f32.mrb[0].mxu0
  %v1771 = vadd.f32 0.0, %v1770
  %v1772 = vpop.f32.mrb[0].mxu0
  %1773 = vmatprep.mubr.bf16.mxu0 0
  %1774 = vmatmul.mubr.bf16.gmra.mrb[0].mxu0 %v986
  %v1775 = vpop.f32.mrb[0].mxu0
  %v1776 = vadd.f32 0.0, %v1775
  %v1777 = vpop.f32.mrb[0].mxu0
  %v1778 = vpop.f32.mrb[0].mxu0
  %v1779 = vadd.f32 0.0, %v1778
  %v1780 = vpop.f32.mrb[0].mxu0
  %1781 = vmatprep.mubr.bf16.mxu0 0
  %1782 = vmatmul.mubr.bf16.gmra.mrb[0].mxu0 %v989
  %v1783 = vpop.f32.mrb[0].mxu0
  %v1784 = vadd.f32 0.0, %v1783
  %v1785 = vpop.f32.mrb[0].mxu0
  %v1786 = vpop.f32.mrb[0].mxu0
  %v1787 = vadd.f32 0.0, %v1786
  %v1788 = vpop.f32.mrb[0].mxu0
  %1789 = vmatprep.mubr.bf16.mxu0 0
  %1790 = vmatmul.mubr.bf16.gmra.mrb[0].mxu0 %v992
  %v1791 = vpop.f32.mrb[0].mxu0
  %v1792 = vadd.f32 0.0, %v1791
  %v1793 = vpop.f32.mrb[0].mxu0
  %v1794 = vpop.f32.mrb[0].mxu0
  %v1795 = vadd.f32 0.0, %v1794
  %v1796 = vpop.f32.mrb[0].mxu0
  %1797 = vmatprep.mubr.bf16.mxu0 0
  %1798 = vmatmul.mubr.bf16.gmra.mrb[0].mxu0 %v995
  %v1799 = vpop.f32.mrb[0].mxu0
  %v1800 = vadd.f32 0.0, %v1799
  %v1801 = vpop.f32.mrb[0].mxu0
  %v1802 = vpop.f32.mrb[0].mxu0
  %v1803 = vadd.f32 0.0, %v1802
  %v1804 = vpop.f32.mrb[0].mxu0
  %1805 = vmatprep.mubr.bf16.mxu0 0
  %1806 = vmatmul.mubr.bf16.gmra.mrb[0].mxu0 %v998
  %v1807 = vpop.f32.mrb[0].mxu0
  %v1808 = vadd.f32 0.0, %v1807
  %v1809 = vpop.f32.mrb[0].mxu0
  %v1810 = vpop.f32.mrb[0].mxu0
  %v1811 = vadd.f32 0.0, %v1810
  %v1812 = vpop.f32.mrb[0].mxu0
  %1813 = vmatprep.mubr.bf16.mxu0 0
  %1814 = vmatmul.mubr.bf16.gmra.mrb[0].mxu0 %v1001
  %v1815 = vpop.f32.mrb[0].mxu0
  %v1816 = vadd.f32 0.0, %v1815
  %v1817 = vpop.f32.mrb[0].mxu0
  %v1818 = vpop.f32.mrb[0].mxu0
  %v1819 = vadd.f32 0.0, %v1818
  %v1820 = vpop.f32.mrb[0].mxu0
  %1821 = vmatprep.mubr.bf16.mxu0 0
  %1822 = vmatmul.mubr.bf16.gmra.mrb[0].mxu0 %v1004
  %v1823 = vpop.f32.mrb[0].mxu0
  %v1824 = vadd.f32 0.0, %v1823
  %v1825 = vpop.f32.mrb[0].mxu0
  %v1826 = vpop.f32.mrb[0].mxu0
  %v1827 = vadd.f32 0.0, %v1826
  %v1828 = vpop.f32.mrb[0].mxu0
  %1829 = vdwg.mxu0
  %v1830 = vadd.f32 %v1048, %v1051
  %v1831 = vadd.f32 %v1830, %v1056
  %v1832 = vadd.f32 %v1831, %v1059
  %v1833 = vadd.f32 %v1832, %v1064
  %v1834 = vadd.f32 %v1833, %v1067
  %v1835 = vadd.f32 %v1834, %v1072
  %v1836 = vadd.f32 %v1835, %v1075
  %v1837 = vadd.f32 %v1836, %v1080
  %v1838 = vadd.f32 %v1837, %v1083
  %v1839 = vadd.f32 %v1838, %v1088
  %v1840 = vadd.f32 %v1839, %v1091
  %v1841 = vadd.f32 %v1840, %v1096
  %v1842 = vadd.f32 %v1841, %v1099
  %v1843 = vadd.f32 %v1842, %v1104
  %v1844 = vadd.f32 %v1843, %v1107
  %v1845 = vadd.f32 %v1844, %v1112
  %v1846 = vadd.f32 %v1845, %v1115
  %v1847 = vadd.f32 %v1846, %v1120
  %v1848 = vadd.f32 %v1847, %v1123
  %v1849 = vadd.f32 %v1848, %v1128
  %v1850 = vadd.f32 %v1849, %v1131
  %v1851 = vadd.f32 %v1850, %v1136
  %v1852 = vadd.f32 %v1851, %v1139
  %v1853 = vadd.f32 %v1852, %v1144
  %v1854 = vadd.f32 %v1853, %v1147
  %v1855 = vadd.f32 %v1854, %v1152
  %v1856 = vadd.f32 %v1855, %v1155
  %v1857 = vadd.f32 %v1856, %v1160
  %v1858 = vadd.f32 %v1857, %v1163
  %v1859 = vadd.f32 %v1858, %v1168
  %v1860 = vadd.f32 %v1859, %v1171
  %v1861 = vadd.f32 %v1860, %v1176
  %v1862 = vadd.f32 %v1861, %v1179
  %v1863 = vadd.f32 %v1862, %v1184
  %v1864 = vadd.f32 %v1863, %v1187
  %v1865 = vadd.f32 %v1864, %v1192
  %v1866 = vadd.f32 %v1865, %v1195
  %v1867 = vadd.f32 %v1866, %v1200
  %v1868 = vadd.f32 %v1867, %v1203
  %v1869 = vadd.f32 %v1868, %v1208
  %v1870 = vadd.f32 %v1869, %v1211
  %v1871 = vadd.f32 %v1870, %v1216
  %v1872 = vadd.f32 %v1871, %v1219
  %v1873 = vadd.f32 %v1872, %v1224
  %v1874 = vadd.f32 %v1873, %v1227
  %v1875 = vadd.f32 %v1874, %v1232
  %v1876 = vadd.f32 %v1875, %v1235
  %v1877 = vadd.f32 %v1876, %v1240
  %v1878 = vadd.f32 %v1877, %v1243
  %v1879 = vadd.f32 %v1878, %v1248
  %v1880 = vadd.f32 %v1879, %v1251
  %v1881 = vadd.f32 %v1880, %v1256
  %v1882 = vadd.f32 %v1881, %v1259
  %v1883 = vadd.f32 %v1882, %v1264
  %v1884 = vadd.f32 %v1883, %v1267
  %v1885 = vadd.f32 %v1884, %v1272
  %v1886 = vadd.f32 %v1885, %v1275
  %v1887 = vadd.f32 %v1886, %v1280
  %v1888 = vadd.f32 %v1887, %v1283
  %v1889 = vadd.f32 %v1888, %v1288
  %v1890 = vadd.f32 %v1889, %v1291
  %v1891 = vadd.f32 %v1890, %v1296
  %v1892 = vadd.f32 %v1891, %v1299
  %v1893 = vadd.f32 %v1892, %v1304
  %v1894 = vadd.f32 %v1893, %v1307
  %v1895 = vadd.f32 %v1894, %v1312
  %v1896 = vadd.f32 %v1895, %v1315
  %v1897 = vadd.f32 %v1896, %v1320
  %v1898 = vadd.f32 %v1897, %v1323
  %v1899 = vadd.f32 %v1898, %v1328
  %v1900 = vadd.f32 %v1899, %v1331
  %v1901 = vadd.f32 %v1900, %v1336
  %v1902 = vadd.f32 %v1901, %v1339
  %v1903 = vadd.f32 %v1902, %v1344
  %v1904 = vadd.f32 %v1903, %v1347
  %v1905 = vadd.f32 %v1904, %v1352
  %v1906 = vadd.f32 %v1905, %v1355
  %v1907 = vadd.f32 %v1906, %v1360
  %v1908 = vadd.f32 %v1907, %v1363
  %v1909 = vadd.f32 %v1908, %v1368
  %v1910 = vadd.f32 %v1909, %v1371
  %v1911 = vadd.f32 %v1910, %v1376
  %v1912 = vadd.f32 %v1911, %v1379
  %v1913 = vadd.f32 %v1912, %v1384
  %v1914 = vadd.f32 %v1913, %v1387
  %v1915 = vadd.f32 %v1914, %v1392
  %v1916 = vadd.f32 %v1915, %v1395
  %v1917 = vadd.f32 %v1916, %v1400
  %v1918 = vadd.f32 %v1917, %v1403
  %v1919 = vadd.f32 %v1918, %v1408
  %v1920 = vadd.f32 %v1919, %v1411
  %v1921 = vadd.f32 %v1920, %v1416
  %v1922 = vadd.f32 %v1921, %v1419
  %v1923 = vadd.f32 %v1922, %v1424
  %v1924 = vadd.f32 %v1923, %v1427
  %v1925 = vadd.f32 %v1924, %v1432
  %v1926 = vadd.f32 %v1925, %v1435
  %v1927 = vadd.f32 %v1926, %v1440
  %v1928 = vadd.f32 %v1927, %v1443
  %v1929 = vadd.f32 %v1928, %v1448
  %v1930 = vadd.f32 %v1929, %v1451
  %v1931 = vadd.f32 %v1930, %v1456
  %v1932 = vadd.f32 %v1931, %v1459
  %v1933 = vadd.f32 %v1932, %v1464
  %v1934 = vadd.f32 %v1933, %v1467
  %v1935 = vadd.f32 %v1934, %v1472
  %v1936 = vadd.f32 %v1935, %v1475
  %v1937 = vadd.f32 %v1936, %v1480
  %v1938 = vadd.f32 %v1937, %v1483
  %v1939 = vadd.f32 %v1938, %v1488
  %v1940 = vadd.f32 %v1939, %v1491
  %v1941 = vadd.f32 %v1940, %v1496
  %v1942 = vadd.f32 %v1941, %v1499
  %v1943 = vadd.f32 %v1942, %v1504
  %v1944 = vadd.f32 %v1943, %v1507
  %v1945 = vadd.f32 %v1944, %v1512
  %v1946 = vadd.f32 %v1945, %v1515
  %v1947 = vadd.f32 %v1946, %v1520
  %v1948 = vadd.f32 %v1947, %v1523
  %v1949 = vadd.f32 %v1948, %v1528
  %v1950 = vadd.f32 %v1949, %v1531
  %v1951 = vadd.f32 %v1950, %v1536
  %v1952 = vadd.f32 %v1951, %v1539
  %v1953 = vadd.f32 %v1952, %v1544
  %v1954 = vadd.f32 %v1953, %v1547
  %v1955 = vadd.f32 %v1954, %v1552
  %v1956 = vadd.f32 %v1955, %v1555
  %v1957 = vadd.f32 %v1956, %v1560
  %v1958 = vadd.f32 %v1957, %v1563
  %v1959 = vadd.f32 %v1958, %v1568
  %v1960 = vadd.f32 %v1959, %v1571
  %v1961 = vadd.f32 %v1960, %v1576
  %v1962 = vadd.f32 %v1961, %v1579
  %v1963 = vadd.f32 %v1962, %v1584
  %v1964 = vadd.f32 %v1963, %v1587
  %v1965 = vadd.f32 %v1964, %v1592
  %v1966 = vadd.f32 %v1965, %v1595
  %v1967 = vadd.f32 %v1966, %v1600
  %v1968 = vadd.f32 %v1967, %v1603
  %v1969 = vadd.f32 %v1968, %v1608
  %v1970 = vadd.f32 %v1969, %v1611
  %v1971 = vadd.f32 %v1970, %v1616
  %v1972 = vadd.f32 %v1971, %v1619
  %v1973 = vadd.f32 %v1972, %v1624
  %v1974 = vadd.f32 %v1973, %v1627
  %v1975 = vadd.f32 %v1974, %v1632
  %v1976 = vadd.f32 %v1975, %v1635
  %v1977 = vadd.f32 %v1976, %v1640
  %v1978 = vadd.f32 %v1977, %v1643
  %v1979 = vadd.f32 %v1978, %v1648
  %v1980 = vadd.f32 %v1979, %v1651
  %v1981 = vadd.f32 %v1980, %v1656
  %v1982 = vadd.f32 %v1981, %v1659
  %v1983 = vadd.f32 %v1982, %v1664
  %v1984 = vadd.f32 %v1983, %v1667
  %v1985 = vadd.f32 %v1984, %v1672
  %v1986 = vadd.f32 %v1985, %v1675
  %v1987 = vadd.f32 %v1986, %v1680
  %v1988 = vadd.f32 %v1987, %v1683
  %v1989 = vadd.f32 %v1988, %v1688
  %v1990 = vadd.f32 %v1989, %v1691
  %v1991 = vadd.f32 %v1990, %v1696
  %v1992 = vadd.f32 %v1991, %v1699
  %v1993 = vadd.f32 %v1992, %v1704
  %v1994 = vadd.f32 %v1993, %v1707
  %v1995 = vadd.f32 %v1994, %v1712
  %v1996 = vadd.f32 %v1995, %v1715
  %v1997 = vadd.f32 %v1996, %v1720
  %v1998 = vadd.f32 %v1997, %v1723
  %v1999 = vadd.f32 %v1998, %v1728
  %v2000 = vadd.f32 %v1999, %v1731
  %v2001 = vadd.f32 %v2000, %v1736
  %v2002 = vadd.f32 %v2001, %v1739
  %v2003 = vadd.f32 %v2002, %v1744
  %v2004 = vadd.f32 %v2003, %v1747
  %v2005 = vadd.f32 %v2004, %v1752
  %v2006 = vadd.f32 %v2005, %v1755
  %v2007 = vadd.f32 %v2006, %v1760
  %v2008 = vadd.f32 %v2007, %v1763
  %v2009 = vadd.f32 %v2008, %v1768
  %v2010 = vadd.f32 %v2009, %v1771
  %v2011 = vadd.f32 %v2010, %v1776
  %v2012 = vadd.f32 %v2011, %v1779
  %v2013 = vadd.f32 %v2012, %v1784
  %v2014 = vadd.f32 %v2013, %v1787
  %v2015 = vadd.f32 %v2014, %v1792
  %v2016 = vadd.f32 %v2015, %v1795
  %v2017 = vadd.f32 %v2016, %v1800
  %v2018 = vadd.f32 %v2017, %v1803
  %v2019 = vadd.f32 %v2018, %v1808
  %v2020 = vadd.f32 %v2019, %v1811
  %v2021 = vadd.f32 %v2020, %v1816
  %v2022 = vadd.f32 %v2021, %v1819
  %v2023 = vadd.f32 %v2022, %v1824
  %v2024 = vadd.f32 %v2023, %v1827
  %v2025 = vrot.slane %v2024, 4
  %v2026 = vadd.f32 %v2024, %v2025
  %v2027 = vrot.slane %v2026, 2
  %v2028 = vadd.f32 %v2026, %v2027
  %v2029 = vrot.slane %v2028, 1
  %v2030 = vadd.f32 %v2028, %v2029
  %v2031 = vmul.f32 %v1048, %v1048
  %v2032 = vmul.f32 %v1051, %v1051
  %v2033 = vmul.f32 %v1056, %v1056
  %v2034 = vmul.f32 %v1059, %v1059
  %v2035 = vmul.f32 %v1064, %v1064
  %v2036 = vmul.f32 %v1067, %v1067
  %v2037 = vmul.f32 %v1072, %v1072
  %v2038 = vmul.f32 %v1075, %v1075
  %v2039 = vmul.f32 %v1080, %v1080
  %v2040 = vmul.f32 %v1083, %v1083
  %v2041 = vmul.f32 %v1088, %v1088
  %v2042 = vmul.f32 %v1091, %v1091
  %v2043 = vmul.f32 %v1096, %v1096
  %v2044 = vmul.f32 %v1099, %v1099
  %v2045 = vmul.f32 %v1104, %v1104
  %v2046 = vmul.f32 %v1107, %v1107
  %v2047 = vmul.f32 %v1112, %v1112
  %v2048 = vmul.f32 %v1115, %v1115
  %v2049 = vmul.f32 %v1120, %v1120
  %v2050 = vmul.f32 %v1123, %v1123
  %v2051 = vmul.f32 %v1128, %v1128
  %v2052 = vmul.f32 %v1131, %v1131
  %v2053 = vmul.f32 %v1136, %v1136
  %v2054 = vmul.f32 %v1139, %v1139
  %v2055 = vmul.f32 %v1144, %v1144
  %v2056 = vmul.f32 %v1147, %v1147
  %v2057 = vmul.f32 %v1152, %v1152
  %v2058 = vmul.f32 %v1155, %v1155
  %v2059 = vmul.f32 %v1160, %v1160
  %v2060 = vmul.f32 %v1163, %v1163
  %v2061 = vmul.f32 %v1168, %v1168
  %v2062 = vmul.f32 %v1171, %v1171
  %v2063 = vmul.f32 %v1176, %v1176
  %v2064 = vmul.f32 %v1179, %v1179
  %v2065 = vmul.f32 %v1184, %v1184
  %v2066 = vmul.f32 %v1187, %v1187
  %v2067 = vmul.f32 %v1192, %v1192
  %v2068 = vmul.f32 %v1195, %v1195
  %v2069 = vmul.f32 %v1200, %v1200
  %v2070 = vmul.f32 %v1203, %v1203
  %v2071 = vmul.f32 %v1208, %v1208
  %v2072 = vmul.f32 %v1211, %v1211
  %v2073 = vmul.f32 %v1216, %v1216
  %v2074 = vmul.f32 %v1219, %v1219
  %v2075 = vmul.f32 %v1224, %v1224
  %v2076 = vmul.f32 %v1227, %v1227
  %v2077 = vmul.f32 %v1232, %v1232
  %v2078 = vmul.f32 %v1235, %v1235
  %v2079 = vmul.f32 %v1240, %v1240
  %v2080 = vmul.f32 %v1243, %v1243
  %v2081 = vmul.f32 %v1248, %v1248
  %v2082 = vmul.f32 %v1251, %v1251
  %v2083 = vmul.f32 %v1256, %v1256
  %v2084 = vmul.f32 %v1259, %v1259
  %v2085 = vmul.f32 %v1264, %v1264
  %v2086 = vmul.f32 %v1267, %v1267
  %v2087 = vmul.f32 %v1272, %v1272
  %v2088 = vmul.f32 %v1275, %v1275
  %v2089 = vmul.f32 %v1280, %v1280
  %v2090 = vmul.f32 %v1283, %v1283
  %v2091 = vmul.f32 %v1288, %v1288
  %v2092 = vmul.f32 %v1291, %v1291
  %v2093 = vmul.f32 %v1296, %v1296
  %v2094 = vmul.f32 %v1299, %v1299
  %v2095 = vmul.f32 %v1304, %v1304
  %v2096 = vmul.f32 %v1307, %v1307
  %v2097 = vmul.f32 %v1312, %v1312
  %v2098 = vmul.f32 %v1315, %v1315
  %v2099 = vmul.f32 %v1320, %v1320
  %v2100 = vmul.f32 %v1323, %v1323
  %v2101 = vmul.f32 %v1328, %v1328
  %v2102 = vmul.f32 %v1331, %v1331
  %v2103 = vmul.f32 %v1336, %v1336
  %v2104 = vmul.f32 %v1339, %v1339
  %v2105 = vmul.f32 %v1344, %v1344
  %v2106 = vmul.f32 %v1347, %v1347
  %v2107 = vmul.f32 %v1352, %v1352
  %v2108 = vmul.f32 %v1355, %v1355
  %v2109 = vmul.f32 %v1360, %v1360
  %v2110 = vmul.f32 %v1363, %v1363
  %v2111 = vmul.f32 %v1368, %v1368
  %v2112 = vmul.f32 %v1371, %v1371
  %v2113 = vmul.f32 %v1376, %v1376
  %v2114 = vmul.f32 %v1379, %v1379
  %v2115 = vmul.f32 %v1384, %v1384
  %v2116 = vmul.f32 %v1387, %v1387
  %v2117 = vmul.f32 %v1392, %v1392
  %v2118 = vmul.f32 %v1395, %v1395
  %v2119 = vmul.f32 %v1400, %v1400
  %v2120 = vmul.f32 %v1403, %v1403
  %v2121 = vmul.f32 %v1408, %v1408
  %v2122 = vmul.f32 %v1411, %v1411
  %v2123 = vmul.f32 %v1416, %v1416
  %v2124 = vmul.f32 %v1419, %v1419
  %v2125 = vmul.f32 %v1424, %v1424
  %v2126 = vmul.f32 %v1427, %v1427
  %v2127 = vmul.f32 %v1432, %v1432
  %v2128 = vmul.f32 %v1435, %v1435
  %v2129 = vmul.f32 %v1440, %v1440
  %v2130 = vmul.f32 %v1443, %v1443
  %v2131 = vmul.f32 %v1448, %v1448
  %v2132 = vmul.f32 %v1451, %v1451
  %v2133 = vmul.f32 %v1456, %v1456
  %v2134 = vmul.f32 %v1459, %v1459
  %v2135 = vmul.f32 %v1464, %v1464
  %v2136 = vmul.f32 %v1467, %v1467
  %v2137 = vmul.f32 %v1472, %v1472
  %v2138 = vmul.f32 %v1475, %v1475
  %v2139 = vmul.f32 %v1480, %v1480
  %v2140 = vmul.f32 %v1483, %v1483
  %v2141 = vmul.f32 %v1488, %v1488
  %v2142 = vmul.f32 %v1491, %v1491
  %v2143 = vmul.f32 %v1496, %v1496
  %v2144 = vmul.f32 %v1499, %v1499
  %v2145 = vmul.f32 %v1504, %v1504
  %v2146 = vmul.f32 %v1507, %v1507
  %v2147 = vmul.f32 %v1512, %v1512
  %v2148 = vmul.f32 %v1515, %v1515
  %v2149 = vmul.f32 %v1520, %v1520
  %v2150 = vmul.f32 %v1523, %v1523
  %v2151 = vmul.f32 %v1528, %v1528
  %v2152 = vmul.f32 %v1531, %v1531
  %v2153 = vmul.f32 %v1536, %v1536
  %v2154 = vmul.f32 %v1539, %v1539
  %v2155 = vmul.f32 %v1544, %v1544
  %v2156 = vmul.f32 %v1547, %v1547
  %v2157 = vmul.f32 %v1552, %v1552
  %v2158 = vmul.f32 %v1555, %v1555
  %v2159 = vmul.f32 %v1560, %v1560
  %v2160 = vmul.f32 %v1563, %v1563
  %v2161 = vmul.f32 %v1568, %v1568
  %v2162 = vmul.f32 %v1571, %v1571
  %v2163 = vmul.f32 %v1576, %v1576
  %v2164 = vmul.f32 %v1579, %v1579
  %v2165 = vmul.f32 %v1584, %v1584
  %v2166 = vmul.f32 %v1587, %v1587
  %v2167 = vmul.f32 %v1592, %v1592
  %v2168 = vmul.f32 %v1595, %v1595
  %v2169 = vmul.f32 %v1600, %v1600
  %v2170 = vmul.f32 %v1603, %v1603
  %v2171 = vmul.f32 %v1608, %v1608
  %v2172 = vmul.f32 %v1611, %v1611
  %v2173 = vmul.f32 %v1616, %v1616
  %v2174 = vmul.f32 %v1619, %v1619
  %v2175 = vmul.f32 %v1624, %v1624
  %v2176 = vmul.f32 %v1627, %v1627
  %v2177 = vmul.f32 %v1632, %v1632
  %v2178 = vmul.f32 %v1635, %v1635
  %v2179 = vmul.f32 %v1640, %v1640
  %v2180 = vmul.f32 %v1643, %v1643
  %v2181 = vmul.f32 %v1648, %v1648
  %v2182 = vmul.f32 %v1651, %v1651
  %v2183 = vmul.f32 %v1656, %v1656
  %v2184 = vmul.f32 %v1659, %v1659
  %v2185 = vmul.f32 %v1664, %v1664
  %v2186 = vmul.f32 %v1667, %v1667
  %v2187 = vmul.f32 %v1672, %v1672
  %v2188 = vmul.f32 %v1675, %v1675
  %v2189 = vmul.f32 %v1680, %v1680
  %v2190 = vmul.f32 %v1683, %v1683
  %v2191 = vmul.f32 %v1688, %v1688
  %v2192 = vmul.f32 %v1691, %v1691
  %v2193 = vmul.f32 %v1696, %v1696
  %v2194 = vmul.f32 %v1699, %v1699
  %v2195 = vmul.f32 %v1704, %v1704
  %v2196 = vmul.f32 %v1707, %v1707
  %v2197 = vmul.f32 %v1712, %v1712
  %v2198 = vmul.f32 %v1715, %v1715
  %v2199 = vmul.f32 %v1720, %v1720
  %v2200 = vmul.f32 %v1723, %v1723
  %v2201 = vmul.f32 %v1728, %v1728
  %v2202 = vmul.f32 %v1731, %v1731
  %v2203 = vmul.f32 %v1736, %v1736
  %v2204 = vmul.f32 %v1739, %v1739
  %v2205 = vmul.f32 %v1744, %v1744
  %v2206 = vmul.f32 %v1747, %v1747
  %v2207 = vmul.f32 %v1752, %v1752
  %v2208 = vmul.f32 %v1755, %v1755
  %v2209 = vmul.f32 %v1760, %v1760
  %v2210 = vmul.f32 %v1763, %v1763
  %v2211 = vmul.f32 %v1768, %v1768
  %v2212 = vmul.f32 %v1771, %v1771
  %v2213 = vmul.f32 %v1776, %v1776
  %v2214 = vmul.f32 %v1779, %v1779
  %v2215 = vmul.f32 %v1784, %v1784
  %v2216 = vmul.f32 %v1787, %v1787
  %v2217 = vmul.f32 %v1792, %v1792
  %v2218 = vmul.f32 %v1795, %v1795
  %v2219 = vmul.f32 %v1800, %v1800
  %v2220 = vmul.f32 %v1803, %v1803
  %v2221 = vmul.f32 %v1808, %v1808
  %v2222 = vmul.f32 %v1811, %v1811
  %v2223 = vmul.f32 %v1816, %v1816
  %v2224 = vmul.f32 %v1819, %v1819
  %v2225 = vmul.f32 %v1824, %v1824
  %v2226 = vmul.f32 %v1827, %v1827
  %v2227 = vadd.f32 %v2031, %v2032
  %v2228 = vadd.f32 %v2227, %v2033
  %v2229 = vadd.f32 %v2228, %v2034
  %v2230 = vadd.f32 %v2229, %v2035
  %v2231 = vadd.f32 %v2230, %v2036
  %v2232 = vadd.f32 %v2231, %v2037
  %v2233 = vadd.f32 %v2232, %v2038
  %v2234 = vadd.f32 %v2233, %v2039
  %v2235 = vadd.f32 %v2234, %v2040
  %v2236 = vadd.f32 %v2235, %v2041
  %v2237 = vadd.f32 %v2236, %v2042
  %v2238 = vadd.f32 %v2237, %v2043
  %v2239 = vadd.f32 %v2238, %v2044
  %v2240 = vadd.f32 %v2239, %v2045
  %v2241 = vadd.f32 %v2240, %v2046
  %v2242 = vadd.f32 %v2241, %v2047
  %v2243 = vadd.f32 %v2242, %v2048
  %v2244 = vadd.f32 %v2243, %v2049
  %v2245 = vadd.f32 %v2244, %v2050
  %v2246 = vadd.f32 %v2245, %v2051
  %v2247 = vadd.f32 %v2246, %v2052
  %v2248 = vadd.f32 %v2247, %v2053
  %v2249 = vadd.f32 %v2248, %v2054
  %v2250 = vadd.f32 %v2249, %v2055
  %v2251 = vadd.f32 %v2250, %v2056
  %v2252 = vadd.f32 %v2251, %v2057
  %v2253 = vadd.f32 %v2252, %v2058
  %v2254 = vadd.f32 %v2253, %v2059
  %v2255 = vadd.f32 %v2254, %v2060
  %v2256 = vadd.f32 %v2255, %v2061
  %v2257 = vadd.f32 %v2256, %v2062
  %v2258 = vadd.f32 %v2257, %v2063
  %v2259 = vadd.f32 %v2258, %v2064
  %v2260 = vadd.f32 %v2259, %v2065
  %v2261 = vadd.f32 %v2260, %v2066
  %v2262 = vadd.f32 %v2261, %v2067
  %v2263 = vadd.f32 %v2262, %v2068
  %v2264 = vadd.f32 %v2263, %v2069
  %v2265 = vadd.f32 %v2264, %v2070
  %v2266 = vadd.f32 %v2265, %v2071
  %v2267 = vadd.f32 %v2266, %v2072
  %v2268 = vadd.f32 %v2267, %v2073
  %v2269 = vadd.f32 %v2268, %v2074
  %v2270 = vadd.f32 %v2269, %v2075
  %v2271 = vadd.f32 %v2270, %v2076
  %v2272 = vadd.f32 %v2271, %v2077
  %v2273 = vadd.f32 %v2272, %v2078
  %v2274 = vadd.f32 %v2273, %v2079
  %v2275 = vadd.f32 %v2274, %v2080
  %v2276 = vadd.f32 %v2275, %v2081
  %v2277 = vadd.f32 %v2276, %v2082
  %v2278 = vadd.f32 %v2277, %v2083
  %v2279 = vadd.f32 %v2278, %v2084
  %v2280 = vadd.f32 %v2279, %v2085
  %v2281 = vadd.f32 %v2280, %v2086
  %v2282 = vadd.f32 %v2281, %v2087
  %v2283 = vadd.f32 %v2282, %v2088
  %v2284 = vadd.f32 %v2283, %v2089
  %v2285 = vadd.f32 %v2284, %v2090
  %v2286 = vadd.f32 %v2285, %v2091
  %v2287 = vadd.f32 %v2286, %v2092
  %v2288 = vadd.f32 %v2287, %v2093
  %v2289 = vadd.f32 %v2288, %v2094
  %v2290 = vadd.f32 %v2289, %v2095
  %v2291 = vadd.f32 %v2290, %v2096
  %v2292 = vadd.f32 %v2291, %v2097
  %v2293 = vadd.f32 %v2292, %v2098
  %v2294 = vadd.f32 %v2293, %v2099
  %v2295 = vadd.f32 %v2294, %v2100
  %v2296 = vadd.f32 %v2295, %v2101
  %v2297 = vadd.f32 %v2296, %v2102
  %v2298 = vadd.f32 %v2297, %v2103
  %v2299 = vadd.f32 %v2298, %v2104
  %v2300 = vadd.f32 %v2299, %v2105
  %v2301 = vadd.f32 %v2300, %v2106
  %v2302 = vadd.f32 %v2301, %v2107
  %v2303 = vadd.f32 %v2302, %v2108
  %v2304 = vadd.f32 %v2303, %v2109
  %v2305 = vadd.f32 %v2304, %v2110
  %v2306 = vadd.f32 %v2305, %v2111
  %v2307 = vadd.f32 %v2306, %v2112
  %v2308 = vadd.f32 %v2307, %v2113
  %v2309 = vadd.f32 %v2308, %v2114
  %v2310 = vadd.f32 %v2309, %v2115
  %v2311 = vadd.f32 %v2310, %v2116
  %v2312 = vadd.f32 %v2311, %v2117
  %v2313 = vadd.f32 %v2312, %v2118
  %v2314 = vadd.f32 %v2313, %v2119
  %v2315 = vadd.f32 %v2314, %v2120
  %v2316 = vadd.f32 %v2315, %v2121
  %v2317 = vadd.f32 %v2316, %v2122
  %v2318 = vadd.f32 %v2317, %v2123
  %v2319 = vadd.f32 %v2318, %v2124
  %v2320 = vadd.f32 %v2319, %v2125
  %v2321 = vadd.f32 %v2320, %v2126
  %v2322 = vadd.f32 %v2321, %v2127
  %v2323 = vadd.f32 %v2322, %v2128
  %v2324 = vadd.f32 %v2323, %v2129
  %v2325 = vadd.f32 %v2324, %v2130
  %v2326 = vadd.f32 %v2325, %v2131
  %v2327 = vadd.f32 %v2326, %v2132
  %v2328 = vadd.f32 %v2327, %v2133
  %v2329 = vadd.f32 %v2328, %v2134
  %v2330 = vadd.f32 %v2329, %v2135
  %v2331 = vadd.f32 %v2330, %v2136
  %v2332 = vadd.f32 %v2331, %v2137
  %v2333 = vadd.f32 %v2332, %v2138
  %v2334 = vadd.f32 %v2333, %v2139
  %v2335 = vadd.f32 %v2334, %v2140
  %v2336 = vadd.f32 %v2335, %v2141
  %v2337 = vadd.f32 %v2336, %v2142
  %v2338 = vadd.f32 %v2337, %v2143
  %v2339 = vadd.f32 %v2338, %v2144
  %v2340 = vadd.f32 %v2339, %v2145
  %v2341 = vadd.f32 %v2340, %v2146
  %v2342 = vadd.f32 %v2341, %v2147
  %v2343 = vadd.f32 %v2342, %v2148
  %v2344 = vadd.f32 %v2343, %v2149
  %v2345 = vadd.f32 %v2344, %v2150
  %v2346 = vadd.f32 %v2345, %v2151
  %v2347 = vadd.f32 %v2346, %v2152
  %v2348 = vadd.f32 %v2347, %v2153
  %v2349 = vadd.f32 %v2348, %v2154
  %v2350 = vadd.f32 %v2349, %v2155
  %v2351 = vadd.f32 %v2350, %v2156
  %v2352 = vadd.f32 %v2351, %v2157
  %v2353 = vadd.f32 %v2352, %v2158
  %v2354 = vadd.f32 %v2353, %v2159
  %v2355 = vadd.f32 %v2354, %v2160
  %v2356 = vadd.f32 %v2355, %v2161
  %v2357 = vadd.f32 %v2356, %v2162
  %v2358 = vadd.f32 %v2357, %v2163
  %v2359 = vadd.f32 %v2358, %v2164
  %v2360 = vadd.f32 %v2359, %v2165
  %v2361 = vadd.f32 %v2360, %v2166
  %v2362 = vadd.f32 %v2361, %v2167
  %v2363 = vadd.f32 %v2362, %v2168
  %v2364 = vadd.f32 %v2363, %v2169
  %v2365 = vadd.f32 %v2364, %v2170
  %v2366 = vadd.f32 %v2365, %v2171
  %v2367 = vadd.f32 %v2366, %v2172
  %v2368 = vadd.f32 %v2367, %v2173
  %v2369 = vadd.f32 %v2368, %v2174
  %v2370 = vadd.f32 %v2369, %v2175
  %v2371 = vadd.f32 %v2370, %v2176
  %v2372 = vadd.f32 %v2371, %v2177
  %v2373 = vadd.f32 %v2372, %v2178
  %v2374 = vadd.f32 %v2373, %v2179
  %v2375 = vadd.f32 %v2374, %v2180
  %v2376 = vadd.f32 %v2375, %v2181
  %v2377 = vadd.f32 %v2376, %v2182
  %v2378 = vadd.f32 %v2377, %v2183
  %v2379 = vadd.f32 %v2378, %v2184
  %v2380 = vadd.f32 %v2379, %v2185
  %v2381 = vadd.f32 %v2380, %v2186
  %v2382 = vadd.f32 %v2381, %v2187
  %v2383 = vadd.f32 %v2382, %v2188
  %v2384 = vadd.f32 %v2383, %v2189
  %v2385 = vadd.f32 %v2384, %v2190
  %v2386 = vadd.f32 %v2385, %v2191
  %v2387 = vadd.f32 %v2386, %v2192
  %v2388 = vadd.f32 %v2387, %v2193
  %v2389 = vadd.f32 %v2388, %v2194
  %v2390 = vadd.f32 %v2389, %v2195
  %v2391 = vadd.f32 %v2390, %v2196
  %v2392 = vadd.f32 %v2391, %v2197
  %v2393 = vadd.f32 %v2392, %v2198
  %v2394 = vadd.f32 %v2393, %v2199
  %v2395 = vadd.f32 %v2394, %v2200
  %v2396 = vadd.f32 %v2395, %v2201
  %v2397 = vadd.f32 %v2396, %v2202
  %v2398 = vadd.f32 %v2397, %v2203
  %v2399 = vadd.f32 %v2398, %v2204
  %v2400 = vadd.f32 %v2399, %v2205
  %v2401 = vadd.f32 %v2400, %v2206
  %v2402 = vadd.f32 %v2401, %v2207
  %v2403 = vadd.f32 %v2402, %v2208
  %v2404 = vadd.f32 %v2403, %v2209
  %v2405 = vadd.f32 %v2404, %v2210
  %v2406 = vadd.f32 %v2405, %v2211
  %v2407 = vadd.f32 %v2406, %v2212
  %v2408 = vadd.f32 %v2407, %v2213
  %v2409 = vadd.f32 %v2408, %v2214
  %v2410 = vadd.f32 %v2409, %v2215
  %v2411 = vadd.f32 %v2410, %v2216
  %v2412 = vadd.f32 %v2411, %v2217
  %v2413 = vadd.f32 %v2412, %v2218
  %v2414 = vadd.f32 %v2413, %v2219
  %v2415 = vadd.f32 %v2414, %v2220
  %v2416 = vadd.f32 %v2415, %v2221
  %v2417 = vadd.f32 %v2416, %v2222
  %v2418 = vadd.f32 %v2417, %v2223
  %v2419 = vadd.f32 %v2418, %v2224
  %v2420 = vadd.f32 %v2419, %v2225
  %v2421 = vadd.f32 %v2420, %v2226
  %v2422 = vrot.slane %v2421, 4
  %v2423 = vadd.f32 %v2421, %v2422
  %v2424 = vrot.slane %v2423, 2
  %v2425 = vadd.f32 %v2423, %v2424
  %v2426 = vrot.slane %v2425, 1
  %v2427 = vadd.f32 %v2425, %v2426
  %v2428 = vmul.f32 %v2030, 0.0006377551
  %v2429 = vmul.f32 %v2427, 0.0006377551
  %v2430 = vmul.f32 %v2428, %v2428
  %v2431 = vsub.f32 %v2429, %v2430
  %v2432 = vmax.f32 %v2431, 0.0
  %v2433 = vld [vmem:[%s2] sm:$0x1]
  %v2434 = vadd.f32 %v2432, 1e-05
  %v2435 = vrsqrt.pop %v2434
  %v2436 = vmul.f32 %v2433, %v2435
  %v2437 = vld [vmem:[%s3] sm:$0x1]
  %v2438 = vmul.f32 %v2428, %v2436
  %v2439 = vsub.f32 %v2437, %v2438
  %v2441 = vlaneseq
  %v2442 = vshrl.u32 %v2441, 7
  %v2443 = vsub.s32 0, %v2442
  %v2444 = vrot.slane %v2436, %v2443
  %v2446 = vmul.f32 %v1048, %v2444
  %v2447 = vmul.f32 %v1051, %v2444
  %v2448 = vmul.f32 %v1056, %v2444
  %v2449 = vmul.f32 %v1059, %v2444
  %v2450 = vmul.f32 %v1064, %v2444
  %v2451 = vmul.f32 %v1067, %v2444
  %v2452 = vmul.f32 %v1072, %v2444
  %v2453 = vmul.f32 %v1075, %v2444
  %v2454 = vmul.f32 %v1080, %v2444
  %v2455 = vmul.f32 %v1083, %v2444
  %v2456 = vmul.f32 %v1088, %v2444
  %v2457 = vmul.f32 %v1091, %v2444
  %v2458 = vmul.f32 %v1096, %v2444
  %v2459 = vmul.f32 %v1099, %v2444
  %v2460 = vmul.f32 %v1104, %v2444
  %v2461 = vmul.f32 %v1107, %v2444
  %v2462 = vmul.f32 %v1112, %v2444
  %v2463 = vmul.f32 %v1115, %v2444
  %v2464 = vmul.f32 %v1120, %v2444
  %v2465 = vmul.f32 %v1123, %v2444
  %v2466 = vmul.f32 %v1128, %v2444
  %v2467 = vmul.f32 %v1131, %v2444
  %v2468 = vmul.f32 %v1136, %v2444
  %v2469 = vmul.f32 %v1139, %v2444
  %v2470 = vmul.f32 %v1144, %v2444
  %v2471 = vmul.f32 %v1147, %v2444
  %v2472 = vmul.f32 %v1152, %v2444
  %v2473 = vmul.f32 %v1155, %v2444
  %v2474 = vmul.f32 %v1160, %v2444
  %v2475 = vmul.f32 %v1163, %v2444
  %v2476 = vmul.f32 %v1168, %v2444
  %v2477 = vmul.f32 %v1171, %v2444
  %v2478 = vmul.f32 %v1176, %v2444
  %v2479 = vmul.f32 %v1179, %v2444
  %v2480 = vmul.f32 %v1184, %v2444
  %v2481 = vmul.f32 %v1187, %v2444
  %v2482 = vmul.f32 %v1192, %v2444
  %v2483 = vmul.f32 %v1195, %v2444
  %v2484 = vmul.f32 %v1200, %v2444
  %v2485 = vmul.f32 %v1203, %v2444
  %v2486 = vmul.f32 %v1208, %v2444
  %v2487 = vmul.f32 %v1211, %v2444
  %v2488 = vmul.f32 %v1216, %v2444
  %v2489 = vmul.f32 %v1219, %v2444
  %v2490 = vmul.f32 %v1224, %v2444
  %v2491 = vmul.f32 %v1227, %v2444
  %v2492 = vmul.f32 %v1232, %v2444
  %v2493 = vmul.f32 %v1235, %v2444
  %v2494 = vmul.f32 %v1240, %v2444
  %v2495 = vmul.f32 %v1243, %v2444
  %v2496 = vmul.f32 %v1248, %v2444
  %v2497 = vmul.f32 %v1251, %v2444
  %v2498 = vmul.f32 %v1256, %v2444
  %v2499 = vmul.f32 %v1259, %v2444
  %v2500 = vmul.f32 %v1264, %v2444
  %v2501 = vmul.f32 %v1267, %v2444
  %v2502 = vmul.f32 %v1272, %v2444
  %v2503 = vmul.f32 %v1275, %v2444
  %v2504 = vmul.f32 %v1280, %v2444
  %v2505 = vmul.f32 %v1283, %v2444
  %v2506 = vmul.f32 %v1288, %v2444
  %v2507 = vmul.f32 %v1291, %v2444
  %v2508 = vmul.f32 %v1296, %v2444
  %v2509 = vmul.f32 %v1299, %v2444
  %v2510 = vmul.f32 %v1304, %v2444
  %v2511 = vmul.f32 %v1307, %v2444
  %v2512 = vmul.f32 %v1312, %v2444
  %v2513 = vmul.f32 %v1315, %v2444
  %v2514 = vmul.f32 %v1320, %v2444
  %v2515 = vmul.f32 %v1323, %v2444
  %v2516 = vmul.f32 %v1328, %v2444
  %v2517 = vmul.f32 %v1331, %v2444
  %v2518 = vmul.f32 %v1336, %v2444
  %v2519 = vmul.f32 %v1339, %v2444
  %v2520 = vmul.f32 %v1344, %v2444
  %v2521 = vmul.f32 %v1347, %v2444
  %v2522 = vmul.f32 %v1352, %v2444
  %v2523 = vmul.f32 %v1355, %v2444
  %v2524 = vmul.f32 %v1360, %v2444
  %v2525 = vmul.f32 %v1363, %v2444
  %v2526 = vmul.f32 %v1368, %v2444
  %v2527 = vmul.f32 %v1371, %v2444
  %v2528 = vmul.f32 %v1376, %v2444
  %v2529 = vmul.f32 %v1379, %v2444
  %v2530 = vmul.f32 %v1384, %v2444
  %v2531 = vmul.f32 %v1387, %v2444
  %v2532 = vmul.f32 %v1392, %v2444
  %v2533 = vmul.f32 %v1395, %v2444
  %v2534 = vmul.f32 %v1400, %v2444
  %v2535 = vmul.f32 %v1403, %v2444
  %v2536 = vmul.f32 %v1408, %v2444
  %v2537 = vmul.f32 %v1411, %v2444
  %v2538 = vmul.f32 %v1416, %v2444
  %v2539 = vmul.f32 %v1419, %v2444
  %v2540 = vmul.f32 %v1424, %v2444
  %v2541 = vmul.f32 %v1427, %v2444
  %v2542 = vmul.f32 %v1432, %v2444
  %v2543 = vmul.f32 %v1435, %v2444
  %v2544 = vmul.f32 %v1440, %v2444
  %v2545 = vmul.f32 %v1443, %v2444
  %v2546 = vmul.f32 %v1448, %v2444
  %v2547 = vmul.f32 %v1451, %v2444
  %v2548 = vmul.f32 %v1456, %v2444
  %v2549 = vmul.f32 %v1459, %v2444
  %v2550 = vmul.f32 %v1464, %v2444
  %v2551 = vmul.f32 %v1467, %v2444
  %v2552 = vmul.f32 %v1472, %v2444
  %v2553 = vmul.f32 %v1475, %v2444
  %v2554 = vmul.f32 %v1480, %v2444
  %v2555 = vmul.f32 %v1483, %v2444
  %v2556 = vmul.f32 %v1488, %v2444
  %v2557 = vmul.f32 %v1491, %v2444
  %v2558 = vmul.f32 %v1496, %v2444
  %v2559 = vmul.f32 %v1499, %v2444
  %v2560 = vmul.f32 %v1504, %v2444
  %v2561 = vmul.f32 %v1507, %v2444
  %v2562 = vmul.f32 %v1512, %v2444
  %v2563 = vmul.f32 %v1515, %v2444
  %v2564 = vmul.f32 %v1520, %v2444
  %v2565 = vmul.f32 %v1523, %v2444
  %v2566 = vmul.f32 %v1528, %v2444
  %v2567 = vmul.f32 %v1531, %v2444
  %v2568 = vmul.f32 %v1536, %v2444
  %v2569 = vmul.f32 %v1539, %v2444
  %v2570 = vmul.f32 %v1544, %v2444
  %v2571 = vmul.f32 %v1547, %v2444
  %v2572 = vmul.f32 %v1552, %v2444
  %v2573 = vmul.f32 %v1555, %v2444
  %v2574 = vmul.f32 %v1560, %v2444
  %v2575 = vmul.f32 %v1563, %v2444
  %v2576 = vmul.f32 %v1568, %v2444
  %v2577 = vmul.f32 %v1571, %v2444
  %v2578 = vmul.f32 %v1576, %v2444
  %v2579 = vmul.f32 %v1579, %v2444
  %v2580 = vmul.f32 %v1584, %v2444
  %v2581 = vmul.f32 %v1587, %v2444
  %v2582 = vmul.f32 %v1592, %v2444
  %v2583 = vmul.f32 %v1595, %v2444
  %v2584 = vmul.f32 %v1600, %v2444
  %v2585 = vmul.f32 %v1603, %v2444
  %v2586 = vmul.f32 %v1608, %v2444
  %v2587 = vmul.f32 %v1611, %v2444
  %v2588 = vmul.f32 %v1616, %v2444
  %v2589 = vmul.f32 %v1619, %v2444
  %v2590 = vmul.f32 %v1624, %v2444
  %v2591 = vmul.f32 %v1627, %v2444
  %v2592 = vmul.f32 %v1632, %v2444
  %v2593 = vmul.f32 %v1635, %v2444
  %v2594 = vmul.f32 %v1640, %v2444
  %v2595 = vmul.f32 %v1643, %v2444
  %v2596 = vmul.f32 %v1648, %v2444
  %v2597 = vmul.f32 %v1651, %v2444
  %v2598 = vmul.f32 %v1656, %v2444
  %v2599 = vmul.f32 %v1659, %v2444
  %v2600 = vmul.f32 %v1664, %v2444
  %v2601 = vmul.f32 %v1667, %v2444
  %v2602 = vmul.f32 %v1672, %v2444
  %v2603 = vmul.f32 %v1675, %v2444
  %v2604 = vmul.f32 %v1680, %v2444
  %v2605 = vmul.f32 %v1683, %v2444
  %v2606 = vmul.f32 %v1688, %v2444
  %v2607 = vmul.f32 %v1691, %v2444
  %v2608 = vmul.f32 %v1696, %v2444
  %v2609 = vmul.f32 %v1699, %v2444
  %v2610 = vmul.f32 %v1704, %v2444
  %v2611 = vmul.f32 %v1707, %v2444
  %v2612 = vmul.f32 %v1712, %v2444
  %v2613 = vmul.f32 %v1715, %v2444
  %v2614 = vmul.f32 %v1720, %v2444
  %v2615 = vmul.f32 %v1723, %v2444
  %v2616 = vmul.f32 %v1728, %v2444
  %v2617 = vmul.f32 %v1731, %v2444
  %v2618 = vmul.f32 %v1736, %v2444
  %v2619 = vmul.f32 %v1739, %v2444
  %v2620 = vmul.f32 %v1744, %v2444
  %v2621 = vmul.f32 %v1747, %v2444
  %v2622 = vmul.f32 %v1752, %v2444
  %v2623 = vmul.f32 %v1755, %v2444
  %v2624 = vmul.f32 %v1760, %v2444
  %v2625 = vmul.f32 %v1763, %v2444
  %v2626 = vmul.f32 %v1768, %v2444
  %v2627 = vmul.f32 %v1771, %v2444
  %v2628 = vmul.f32 %v1776, %v2444
  %v2629 = vmul.f32 %v1779, %v2444
  %v2630 = vmul.f32 %v1784, %v2444
  %v2631 = vmul.f32 %v1787, %v2444
  %v2632 = vmul.f32 %v1792, %v2444
  %v2633 = vmul.f32 %v1795, %v2444
  %v2634 = vmul.f32 %v1800, %v2444
  %v2635 = vmul.f32 %v1803, %v2444
  %v2636 = vmul.f32 %v1808, %v2444
  %v2637 = vmul.f32 %v1811, %v2444
  %v2638 = vmul.f32 %v1816, %v2444
  %v2639 = vmul.f32 %v1819, %v2444
  %v2640 = vmul.f32 %v1824, %v2444
  %v2641 = vmul.f32 %v1827, %v2444
  %v2643 = vlaneseq
  %v2644 = vshrl.u32 %v2643, 7
  %v2645 = vsub.s32 0, %v2644
  %v2646 = vrot.slane %v2439, %v2645
  %v2648 = vadd.f32 %v2446, %v2646
  %v2649 = vadd.f32 %v2447, %v2646
  %v2650 = vadd.f32 %v2448, %v2646
  %v2651 = vadd.f32 %v2449, %v2646
  %v2652 = vadd.f32 %v2450, %v2646
  %v2653 = vadd.f32 %v2451, %v2646
  %v2654 = vadd.f32 %v2452, %v2646
  %v2655 = vadd.f32 %v2453, %v2646
  %v2656 = vadd.f32 %v2454, %v2646
  %v2657 = vadd.f32 %v2455, %v2646
  %v2658 = vadd.f32 %v2456, %v2646
  %v2659 = vadd.f32 %v2457, %v2646
  %v2660 = vadd.f32 %v2458, %v2646
  %v2661 = vadd.f32 %v2459, %v2646
  %v2662 = vadd.f32 %v2460, %v2646
  %v2663 = vadd.f32 %v2461, %v2646
  %v2664 = vadd.f32 %v2462, %v2646
  %v2665 = vadd.f32 %v2463, %v2646
  %v2666 = vadd.f32 %v2464, %v2646
  %v2667 = vadd.f32 %v2465, %v2646
  %v2668 = vadd.f32 %v2466, %v2646
  %v2669 = vadd.f32 %v2467, %v2646
  %v2670 = vadd.f32 %v2468, %v2646
  %v2671 = vadd.f32 %v2469, %v2646
  %v2672 = vadd.f32 %v2470, %v2646
  %v2673 = vadd.f32 %v2471, %v2646
  %v2674 = vadd.f32 %v2472, %v2646
  %v2675 = vadd.f32 %v2473, %v2646
  %v2676 = vadd.f32 %v2474, %v2646
  %v2677 = vadd.f32 %v2475, %v2646
  %v2678 = vadd.f32 %v2476, %v2646
  %v2679 = vadd.f32 %v2477, %v2646
  %v2680 = vadd.f32 %v2478, %v2646
  %v2681 = vadd.f32 %v2479, %v2646
  %v2682 = vadd.f32 %v2480, %v2646
  %v2683 = vadd.f32 %v2481, %v2646
  %v2684 = vadd.f32 %v2482, %v2646
  %v2685 = vadd.f32 %v2483, %v2646
  %v2686 = vadd.f32 %v2484, %v2646
  %v2687 = vadd.f32 %v2485, %v2646
  %v2688 = vadd.f32 %v2486, %v2646
  %v2689 = vadd.f32 %v2487, %v2646
  %v2690 = vadd.f32 %v2488, %v2646
  %v2691 = vadd.f32 %v2489, %v2646
  %v2692 = vadd.f32 %v2490, %v2646
  %v2693 = vadd.f32 %v2491, %v2646
  %v2694 = vadd.f32 %v2492, %v2646
  %v2695 = vadd.f32 %v2493, %v2646
  %v2696 = vadd.f32 %v2494, %v2646
  %v2697 = vadd.f32 %v2495, %v2646
  %v2698 = vadd.f32 %v2496, %v2646
  %v2699 = vadd.f32 %v2497, %v2646
  %v2700 = vadd.f32 %v2498, %v2646
  %v2701 = vadd.f32 %v2499, %v2646
  %v2702 = vadd.f32 %v2500, %v2646
  %v2703 = vadd.f32 %v2501, %v2646
  %v2704 = vadd.f32 %v2502, %v2646
  %v2705 = vadd.f32 %v2503, %v2646
  %v2706 = vadd.f32 %v2504, %v2646
  %v2707 = vadd.f32 %v2505, %v2646
  %v2708 = vadd.f32 %v2506, %v2646
  %v2709 = vadd.f32 %v2507, %v2646
  %v2710 = vadd.f32 %v2508, %v2646
  %v2711 = vadd.f32 %v2509, %v2646
  %v2712 = vadd.f32 %v2510, %v2646
  %v2713 = vadd.f32 %v2511, %v2646
  %v2714 = vadd.f32 %v2512, %v2646
  %v2715 = vadd.f32 %v2513, %v2646
  %v2716 = vadd.f32 %v2514, %v2646
  %v2717 = vadd.f32 %v2515, %v2646
  %v2718 = vadd.f32 %v2516, %v2646
  %v2719 = vadd.f32 %v2517, %v2646
  %v2720 = vadd.f32 %v2518, %v2646
  %v2721 = vadd.f32 %v2519, %v2646
  %v2722 = vadd.f32 %v2520, %v2646
  %v2723 = vadd.f32 %v2521, %v2646
  %v2724 = vadd.f32 %v2522, %v2646
  %v2725 = vadd.f32 %v2523, %v2646
  %v2726 = vadd.f32 %v2524, %v2646
  %v2727 = vadd.f32 %v2525, %v2646
  %v2728 = vadd.f32 %v2526, %v2646
  %v2729 = vadd.f32 %v2527, %v2646
  %v2730 = vadd.f32 %v2528, %v2646
  %v2731 = vadd.f32 %v2529, %v2646
  %v2732 = vadd.f32 %v2530, %v2646
  %v2733 = vadd.f32 %v2531, %v2646
  %v2734 = vadd.f32 %v2532, %v2646
  %v2735 = vadd.f32 %v2533, %v2646
  %v2736 = vadd.f32 %v2534, %v2646
  %v2737 = vadd.f32 %v2535, %v2646
  %v2738 = vadd.f32 %v2536, %v2646
  %v2739 = vadd.f32 %v2537, %v2646
  %v2740 = vadd.f32 %v2538, %v2646
  %v2741 = vadd.f32 %v2539, %v2646
  %v2742 = vadd.f32 %v2540, %v2646
  %v2743 = vadd.f32 %v2541, %v2646
  %v2744 = vadd.f32 %v2542, %v2646
  %v2745 = vadd.f32 %v2543, %v2646
  %v2746 = vadd.f32 %v2544, %v2646
  %v2747 = vadd.f32 %v2545, %v2646
  %v2748 = vadd.f32 %v2546, %v2646
  %v2749 = vadd.f32 %v2547, %v2646
  %v2750 = vadd.f32 %v2548, %v2646
  %v2751 = vadd.f32 %v2549, %v2646
  %v2752 = vadd.f32 %v2550, %v2646
  %v2753 = vadd.f32 %v2551, %v2646
  %v2754 = vadd.f32 %v2552, %v2646
  %v2755 = vadd.f32 %v2553, %v2646
  %v2756 = vadd.f32 %v2554, %v2646
  %v2757 = vadd.f32 %v2555, %v2646
  %v2758 = vadd.f32 %v2556, %v2646
  %v2759 = vadd.f32 %v2557, %v2646
  %v2760 = vadd.f32 %v2558, %v2646
  %v2761 = vadd.f32 %v2559, %v2646
  %v2762 = vadd.f32 %v2560, %v2646
  %v2763 = vadd.f32 %v2561, %v2646
  %v2764 = vadd.f32 %v2562, %v2646
  %v2765 = vadd.f32 %v2563, %v2646
  %v2766 = vadd.f32 %v2564, %v2646
  %v2767 = vadd.f32 %v2565, %v2646
  %v2768 = vadd.f32 %v2566, %v2646
  %v2769 = vadd.f32 %v2567, %v2646
  %v2770 = vadd.f32 %v2568, %v2646
  %v2771 = vadd.f32 %v2569, %v2646
  %v2772 = vadd.f32 %v2570, %v2646
  %v2773 = vadd.f32 %v2571, %v2646
  %v2774 = vadd.f32 %v2572, %v2646
  %v2775 = vadd.f32 %v2573, %v2646
  %v2776 = vadd.f32 %v2574, %v2646
  %v2777 = vadd.f32 %v2575, %v2646
  %v2778 = vadd.f32 %v2576, %v2646
  %v2779 = vadd.f32 %v2577, %v2646
  %v2780 = vadd.f32 %v2578, %v2646
  %v2781 = vadd.f32 %v2579, %v2646
  %v2782 = vadd.f32 %v2580, %v2646
  %v2783 = vadd.f32 %v2581, %v2646
  %v2784 = vadd.f32 %v2582, %v2646
  %v2785 = vadd.f32 %v2583, %v2646
  %v2786 = vadd.f32 %v2584, %v2646
  %v2787 = vadd.f32 %v2585, %v2646
  %v2788 = vadd.f32 %v2586, %v2646
  %v2789 = vadd.f32 %v2587, %v2646
  %v2790 = vadd.f32 %v2588, %v2646
  %v2791 = vadd.f32 %v2589, %v2646
  %v2792 = vadd.f32 %v2590, %v2646
  %v2793 = vadd.f32 %v2591, %v2646
  %v2794 = vadd.f32 %v2592, %v2646
  %v2795 = vadd.f32 %v2593, %v2646
  %v2796 = vadd.f32 %v2594, %v2646
  %v2797 = vadd.f32 %v2595, %v2646
  %v2798 = vadd.f32 %v2596, %v2646
  %v2799 = vadd.f32 %v2597, %v2646
  %v2800 = vadd.f32 %v2598, %v2646
  %v2801 = vadd.f32 %v2599, %v2646
  %v2802 = vadd.f32 %v2600, %v2646
  %v2803 = vadd.f32 %v2601, %v2646
  %v2804 = vadd.f32 %v2602, %v2646
  %v2805 = vadd.f32 %v2603, %v2646
  %v2806 = vadd.f32 %v2604, %v2646
  %v2807 = vadd.f32 %v2605, %v2646
  %v2808 = vadd.f32 %v2606, %v2646
  %v2809 = vadd.f32 %v2607, %v2646
  %v2810 = vadd.f32 %v2608, %v2646
  %v2811 = vadd.f32 %v2609, %v2646
  %v2812 = vadd.f32 %v2610, %v2646
  %v2813 = vadd.f32 %v2611, %v2646
  %v2814 = vadd.f32 %v2612, %v2646
  %v2815 = vadd.f32 %v2613, %v2646
  %v2816 = vadd.f32 %v2614, %v2646
  %v2817 = vadd.f32 %v2615, %v2646
  %v2818 = vadd.f32 %v2616, %v2646
  %v2819 = vadd.f32 %v2617, %v2646
  %v2820 = vadd.f32 %v2618, %v2646
  %v2821 = vadd.f32 %v2619, %v2646
  %v2822 = vadd.f32 %v2620, %v2646
  %v2823 = vadd.f32 %v2621, %v2646
  %v2824 = vadd.f32 %v2622, %v2646
  %v2825 = vadd.f32 %v2623, %v2646
  %v2826 = vadd.f32 %v2624, %v2646
  %v2827 = vadd.f32 %v2625, %v2646
  %v2828 = vadd.f32 %v2626, %v2646
  %v2829 = vadd.f32 %v2627, %v2646
  %v2830 = vadd.f32 %v2628, %v2646
  %v2831 = vadd.f32 %v2629, %v2646
  %v2832 = vadd.f32 %v2630, %v2646
  %v2833 = vadd.f32 %v2631, %v2646
  %v2834 = vadd.f32 %v2632, %v2646
  %v2835 = vadd.f32 %v2633, %v2646
  %v2836 = vadd.f32 %v2634, %v2646
  %v2837 = vadd.f32 %v2635, %v2646
  %v2838 = vadd.f32 %v2636, %v2646
  %v2839 = vadd.f32 %v2637, %v2646
  %v2840 = vadd.f32 %v2638, %v2646
  %v2841 = vadd.f32 %v2639, %v2646
  %v2842 = vadd.f32 %v2640, %v2646
  %v2843 = vadd.f32 %v2641, %v2646
  %v2844 = vmax.f32 %v2648, 0.0
  %v2845 = vmax.f32 %v2649, 0.0
  %v2846 = vmax.f32 %v2650, 0.0
  %v2847 = vmax.f32 %v2651, 0.0
  %v2848 = vmax.f32 %v2652, 0.0
  %v2849 = vmax.f32 %v2653, 0.0
  %v2850 = vmax.f32 %v2654, 0.0
  %v2851 = vmax.f32 %v2655, 0.0
  %v2852 = vmax.f32 %v2656, 0.0
  %v2853 = vmax.f32 %v2657, 0.0
  %v2854 = vmax.f32 %v2658, 0.0
  %v2855 = vmax.f32 %v2659, 0.0
  %v2856 = vmax.f32 %v2660, 0.0
  %v2857 = vmax.f32 %v2661, 0.0
  %v2858 = vmax.f32 %v2662, 0.0
  %v2859 = vmax.f32 %v2663, 0.0
  %v2860 = vmax.f32 %v2664, 0.0
  %v2861 = vmax.f32 %v2665, 0.0
  %v2862 = vmax.f32 %v2666, 0.0
  %v2863 = vmax.f32 %v2667, 0.0
  %v2864 = vmax.f32 %v2668, 0.0
  %v2865 = vmax.f32 %v2669, 0.0
  %v2866 = vmax.f32 %v2670, 0.0
  %v2867 = vmax.f32 %v2671, 0.0
  %v2868 = vmax.f32 %v2672, 0.0
  %v2869 = vmax.f32 %v2673, 0.0
  %v2870 = vmax.f32 %v2674, 0.0
  %v2871 = vmax.f32 %v2675, 0.0
  %v2872 = vmax.f32 %v2676, 0.0
  %v2873 = vmax.f32 %v2677, 0.0
  %v2874 = vmax.f32 %v2678, 0.0
  %v2875 = vmax.f32 %v2679, 0.0
  %v2876 = vmax.f32 %v2680, 0.0
  %v2877 = vmax.f32 %v2681, 0.0
  %v2878 = vmax.f32 %v2682, 0.0
  %v2879 = vmax.f32 %v2683, 0.0
  %v2880 = vmax.f32 %v2684, 0.0
  %v2881 = vmax.f32 %v2685, 0.0
  %v2882 = vmax.f32 %v2686, 0.0
  %v2883 = vmax.f32 %v2687, 0.0
  %v2884 = vmax.f32 %v2688, 0.0
  %v2885 = vmax.f32 %v2689, 0.0
  %v2886 = vmax.f32 %v2690, 0.0
  %v2887 = vmax.f32 %v2691, 0.0
  %v2888 = vmax.f32 %v2692, 0.0
  %v2889 = vmax.f32 %v2693, 0.0
  %v2890 = vmax.f32 %v2694, 0.0
  %v2891 = vmax.f32 %v2695, 0.0
  %v2892 = vmax.f32 %v2696, 0.0
  %v2893 = vmax.f32 %v2697, 0.0
  %v2894 = vmax.f32 %v2698, 0.0
  %v2895 = vmax.f32 %v2699, 0.0
  %v2896 = vmax.f32 %v2700, 0.0
  %v2897 = vmax.f32 %v2701, 0.0
  %v2898 = vmax.f32 %v2702, 0.0
  %v2899 = vmax.f32 %v2703, 0.0
  %v2900 = vmax.f32 %v2704, 0.0
  %v2901 = vmax.f32 %v2705, 0.0
  %v2902 = vmax.f32 %v2706, 0.0
  %v2903 = vmax.f32 %v2707, 0.0
  %v2904 = vmax.f32 %v2708, 0.0
  %v2905 = vmax.f32 %v2709, 0.0
  %v2906 = vmax.f32 %v2710, 0.0
  %v2907 = vmax.f32 %v2711, 0.0
  %v2908 = vmax.f32 %v2712, 0.0
  %v2909 = vmax.f32 %v2713, 0.0
  %v2910 = vmax.f32 %v2714, 0.0
  %v2911 = vmax.f32 %v2715, 0.0
  %v2912 = vmax.f32 %v2716, 0.0
  %v2913 = vmax.f32 %v2717, 0.0
  %v2914 = vmax.f32 %v2718, 0.0
  %v2915 = vmax.f32 %v2719, 0.0
  %v2916 = vmax.f32 %v2720, 0.0
  %v2917 = vmax.f32 %v2721, 0.0
  %v2918 = vmax.f32 %v2722, 0.0
  %v2919 = vmax.f32 %v2723, 0.0
  %v2920 = vmax.f32 %v2724, 0.0
  %v2921 = vmax.f32 %v2725, 0.0
  %v2922 = vmax.f32 %v2726, 0.0
  %v2923 = vmax.f32 %v2727, 0.0
  %v2924 = vmax.f32 %v2728, 0.0
  %v2925 = vmax.f32 %v2729, 0.0
  %v2926 = vmax.f32 %v2730, 0.0
  %v2927 = vmax.f32 %v2731, 0.0
  %v2928 = vmax.f32 %v2732, 0.0
  %v2929 = vmax.f32 %v2733, 0.0
  %v2930 = vmax.f32 %v2734, 0.0
  %v2931 = vmax.f32 %v2735, 0.0
  %v2932 = vmax.f32 %v2736, 0.0
  %v2933 = vmax.f32 %v2737, 0.0
  %v2934 = vmax.f32 %v2738, 0.0
  %v2935 = vmax.f32 %v2739, 0.0
  %v2936 = vmax.f32 %v2740, 0.0
  %v2937 = vmax.f32 %v2741, 0.0
  %v2938 = vmax.f32 %v2742, 0.0
  %v2939 = vmax.f32 %v2743, 0.0
  %v2940 = vmax.f32 %v2744, 0.0
  %v2941 = vmax.f32 %v2745, 0.0
  %v2942 = vmax.f32 %v2746, 0.0
  %v2943 = vmax.f32 %v2747, 0.0
  %v2944 = vmax.f32 %v2748, 0.0
  %v2945 = vmax.f32 %v2749, 0.0
  %v2946 = vmax.f32 %v2750, 0.0
  %v2947 = vmax.f32 %v2751, 0.0
  %v2948 = vmax.f32 %v2752, 0.0
  %v2949 = vmax.f32 %v2753, 0.0
  %v2950 = vmax.f32 %v2754, 0.0
  %v2951 = vmax.f32 %v2755, 0.0
  %v2952 = vmax.f32 %v2756, 0.0
  %v2953 = vmax.f32 %v2757, 0.0
  %v2954 = vmax.f32 %v2758, 0.0
  %v2955 = vmax.f32 %v2759, 0.0
  %v2956 = vmax.f32 %v2760, 0.0
  %v2957 = vmax.f32 %v2761, 0.0
  %v2958 = vmax.f32 %v2762, 0.0
  %v2959 = vmax.f32 %v2763, 0.0
  %v2960 = vmax.f32 %v2764, 0.0
  %v2961 = vmax.f32 %v2765, 0.0
  %v2962 = vmax.f32 %v2766, 0.0
  %v2963 = vmax.f32 %v2767, 0.0
  %v2964 = vmax.f32 %v2768, 0.0
  %v2965 = vmax.f32 %v2769, 0.0
  %v2966 = vmax.f32 %v2770, 0.0
  %v2967 = vmax.f32 %v2771, 0.0
  %v2968 = vmax.f32 %v2772, 0.0
  %v2969 = vmax.f32 %v2773, 0.0
  %v2970 = vmax.f32 %v2774, 0.0
  %v2971 = vmax.f32 %v2775, 0.0
  %v2972 = vmax.f32 %v2776, 0.0
  %v2973 = vmax.f32 %v2777, 0.0
  %v2974 = vmax.f32 %v2778, 0.0
  %v2975 = vmax.f32 %v2779, 0.0
  %v2976 = vmax.f32 %v2780, 0.0
  %v2977 = vmax.f32 %v2781, 0.0
  %v2978 = vmax.f32 %v2782, 0.0
  %v2979 = vmax.f32 %v2783, 0.0
  %v2980 = vmax.f32 %v2784, 0.0
  %v2981 = vmax.f32 %v2785, 0.0
  %v2982 = vmax.f32 %v2786, 0.0
  %v2983 = vmax.f32 %v2787, 0.0
  %v2984 = vmax.f32 %v2788, 0.0
  %v2985 = vmax.f32 %v2789, 0.0
  %v2986 = vmax.f32 %v2790, 0.0
  %v2987 = vmax.f32 %v2791, 0.0
  %v2988 = vmax.f32 %v2792, 0.0
  %v2989 = vmax.f32 %v2793, 0.0
  %v2990 = vmax.f32 %v2794, 0.0
  %v2991 = vmax.f32 %v2795, 0.0
  %v2992 = vmax.f32 %v2796, 0.0
  %v2993 = vmax.f32 %v2797, 0.0
  %v2994 = vmax.f32 %v2798, 0.0
  %v2995 = vmax.f32 %v2799, 0.0
  %v2996 = vmax.f32 %v2800, 0.0
  %v2997 = vmax.f32 %v2801, 0.0
  %v2998 = vmax.f32 %v2802, 0.0
  %v2999 = vmax.f32 %v2803, 0.0
  %v3000 = vmax.f32 %v2804, 0.0
  %v3001 = vmax.f32 %v2805, 0.0
  %v3002 = vmax.f32 %v2806, 0.0
  %v3003 = vmax.f32 %v2807, 0.0
  %v3004 = vmax.f32 %v2808, 0.0
  %v3005 = vmax.f32 %v2809, 0.0
  %v3006 = vmax.f32 %v2810, 0.0
  %v3007 = vmax.f32 %v2811, 0.0
  %v3008 = vmax.f32 %v2812, 0.0
  %v3009 = vmax.f32 %v2813, 0.0
  %v3010 = vmax.f32 %v2814, 0.0
  %v3011 = vmax.f32 %v2815, 0.0
  %v3012 = vmax.f32 %v2816, 0.0
  %v3013 = vmax.f32 %v2817, 0.0
  %v3014 = vmax.f32 %v2818, 0.0
  %v3015 = vmax.f32 %v2819, 0.0
  %v3016 = vmax.f32 %v2820, 0.0
  %v3017 = vmax.f32 %v2821, 0.0
  %v3018 = vmax.f32 %v2822, 0.0
  %v3019 = vmax.f32 %v2823, 0.0
  %v3020 = vmax.f32 %v2824, 0.0
  %v3021 = vmax.f32 %v2825, 0.0
  %v3022 = vmax.f32 %v2826, 0.0
  %v3023 = vmax.f32 %v2827, 0.0
  %v3024 = vmax.f32 %v2828, 0.0
  %v3025 = vmax.f32 %v2829, 0.0
  %v3026 = vmax.f32 %v2830, 0.0
  %v3027 = vmax.f32 %v2831, 0.0
  %v3028 = vmax.f32 %v2832, 0.0
  %v3029 = vmax.f32 %v2833, 0.0
  %v3030 = vmax.f32 %v2834, 0.0
  %v3031 = vmax.f32 %v2835, 0.0
  %v3032 = vmax.f32 %v2836, 0.0
  %v3033 = vmax.f32 %v2837, 0.0
  %v3034 = vmax.f32 %v2838, 0.0
  %v3035 = vmax.f32 %v2839, 0.0
  %v3036 = vmax.f32 %v2840, 0.0
  %v3037 = vmax.f32 %v2841, 0.0
  %v3038 = vmax.f32 %v2842, 0.0
  %v3039 = vmax.f32 %v2843, 0.0
  %v3040 = vmax.f32 %v2844, %v2893
  %v3041 = vmax.f32 %v2845, %v2894
  %v3042 = vmax.f32 %v2846, %v2895
  %v3043 = vmax.f32 %v2847, %v2896
  %v3044 = vmax.f32 %v2848, %v2897
  %v3045 = vmax.f32 %v2849, %v2898
  %v3046 = vmax.f32 %v2850, %v2899
  %v3047 = vmax.f32 %v2851, %v2900
  %v3048 = vmax.f32 %v2852, %v2901
  %v3049 = vmax.f32 %v2853, %v2902
  %v3050 = vmax.f32 %v2854, %v2903
  %v3051 = vmax.f32 %v2855, %v2904
  %v3052 = vmax.f32 %v2856, %v2905
  %v3053 = vmax.f32 %v2857, %v2906
  %v3054 = vmax.f32 %v2858, %v2907
  %v3055 = vmax.f32 %v2859, %v2908
  %v3056 = vmax.f32 %v2860, %v2909
  %v3057 = vmax.f32 %v2861, %v2910
  %v3058 = vmax.f32 %v2862, %v2911
  %v3059 = vmax.f32 %v2863, %v2912
  %v3060 = vmax.f32 %v2864, %v2913
  %v3061 = vmax.f32 %v2865, %v2914
  %v3062 = vmax.f32 %v2866, %v2915
  %v3063 = vmax.f32 %v2867, %v2916
  %v3064 = vmax.f32 %v2868, %v2917
  %v3065 = vmax.f32 %v2869, %v2918
  %v3066 = vmax.f32 %v2870, %v2919
  %v3067 = vmax.f32 %v2871, %v2920
  %v3068 = vmax.f32 %v2872, %v2921
  %v3069 = vmax.f32 %v2873, %v2922
  %v3070 = vmax.f32 %v2874, %v2923
  %v3071 = vmax.f32 %v2875, %v2924
  %v3072 = vmax.f32 %v2876, %v2925
  %v3073 = vmax.f32 %v2877, %v2926
  %v3074 = vmax.f32 %v2878, %v2927
  %v3075 = vmax.f32 %v2879, %v2928
  %v3076 = vmax.f32 %v2880, %v2929
  %v3077 = vmax.f32 %v2881, %v2930
  %v3078 = vmax.f32 %v2882, %v2931
  %v3079 = vmax.f32 %v2883, %v2932
  %v3080 = vmax.f32 %v2884, %v2933
  %v3081 = vmax.f32 %v2885, %v2934
  %v3082 = vmax.f32 %v2886, %v2935
  %v3083 = vmax.f32 %v2887, %v2936
  %v3084 = vmax.f32 %v2888, %v2937
  %v3085 = vmax.f32 %v2889, %v2938
  %v3086 = vmax.f32 %v2890, %v2939
  %v3087 = vmax.f32 %v2891, %v2940
  %v3088 = vmax.f32 %v2892, %v2941
  %v3089 = vmax.f32 %v2942, %v2991
  %v3090 = vmax.f32 %v2943, %v2992
  %v3091 = vmax.f32 %v2944, %v2993
  %v3092 = vmax.f32 %v2945, %v2994
  %v3093 = vmax.f32 %v2946, %v2995
  %v3094 = vmax.f32 %v2947, %v2996
  %v3095 = vmax.f32 %v2948, %v2997
  %v3096 = vmax.f32 %v2949, %v2998
  %v3097 = vmax.f32 %v2950, %v2999
  %v3098 = vmax.f32 %v2951, %v3000
  %v3099 = vmax.f32 %v2952, %v3001
  %v3100 = vmax.f32 %v2953, %v3002
  %v3101 = vmax.f32 %v2954, %v3003
  %v3102 = vmax.f32 %v2955, %v3004
  %v3103 = vmax.f32 %v2956, %v3005
  %v3104 = vmax.f32 %v2957, %v3006
  %v3105 = vmax.f32 %v2958, %v3007
  %v3106 = vmax.f32 %v2959, %v3008
  %v3107 = vmax.f32 %v2960, %v3009
  %v3108 = vmax.f32 %v2961, %v3010
  %v3109 = vmax.f32 %v2962, %v3011
  %v3110 = vmax.f32 %v2963, %v3012
  %v3111 = vmax.f32 %v2964, %v3013
  %v3112 = vmax.f32 %v2965, %v3014
  %v3113 = vmax.f32 %v2966, %v3015
  %v3114 = vmax.f32 %v2967, %v3016
  %v3115 = vmax.f32 %v2968, %v3017
  %v3116 = vmax.f32 %v2969, %v3018
  %v3117 = vmax.f32 %v2970, %v3019
  %v3118 = vmax.f32 %v2971, %v3020
  %v3119 = vmax.f32 %v2972, %v3021
  %v3120 = vmax.f32 %v2973, %v3022
  %v3121 = vmax.f32 %v2974, %v3023
  %v3122 = vmax.f32 %v2975, %v3024
  %v3123 = vmax.f32 %v2976, %v3025
  %v3124 = vmax.f32 %v2977, %v3026
  %v3125 = vmax.f32 %v2978, %v3027
  %v3126 = vmax.f32 %v2979, %v3028
  %v3127 = vmax.f32 %v2980, %v3029
  %v3128 = vmax.f32 %v2981, %v3030
  %v3129 = vmax.f32 %v2982, %v3031
  %v3130 = vmax.f32 %v2983, %v3032
  %v3131 = vmax.f32 %v2984, %v3033
  %v3132 = vmax.f32 %v2985, %v3034
  %v3133 = vmax.f32 %v2986, %v3035
  %v3134 = vmax.f32 %v2987, %v3036
  %v3135 = vmax.f32 %v2988, %v3037
  %v3136 = vmax.f32 %v2989, %v3038
  %v3137 = vmax.f32 %v2990, %v3039
  %v3138 = vmax.f32 %v3040, %v3089
  %v3139 = vmax.f32 %v3041, %v3090
  %v3140 = vmax.f32 %v3042, %v3091
  %v3141 = vmax.f32 %v3043, %v3092
  %v3142 = vmax.f32 %v3044, %v3093
  %v3143 = vmax.f32 %v3045, %v3094
  %v3144 = vmax.f32 %v3046, %v3095
  %v3145 = vmax.f32 %v3047, %v3096
  %v3146 = vmax.f32 %v3048, %v3097
  %v3147 = vmax.f32 %v3049, %v3098
  %v3148 = vmax.f32 %v3050, %v3099
  %v3149 = vmax.f32 %v3051, %v3100
  %v3150 = vmax.f32 %v3052, %v3101
  %v3151 = vmax.f32 %v3053, %v3102
  %v3152 = vmax.f32 %v3054, %v3103
  %v3153 = vmax.f32 %v3055, %v3104
  %v3154 = vmax.f32 %v3056, %v3105
  %v3155 = vmax.f32 %v3057, %v3106
  %v3156 = vmax.f32 %v3058, %v3107
  %v3157 = vmax.f32 %v3059, %v3108
  %v3158 = vmax.f32 %v3060, %v3109
  %v3159 = vmax.f32 %v3061, %v3110
  %v3160 = vmax.f32 %v3062, %v3111
  %v3161 = vmax.f32 %v3063, %v3112
  %v3162 = vmax.f32 %v3064, %v3113
  %v3163 = vmax.f32 %v3065, %v3114
  %v3164 = vmax.f32 %v3066, %v3115
  %v3165 = vmax.f32 %v3067, %v3116
  %v3166 = vmax.f32 %v3068, %v3117
  %v3167 = vmax.f32 %v3069, %v3118
  %v3168 = vmax.f32 %v3070, %v3119
  %v3169 = vmax.f32 %v3071, %v3120
  %v3170 = vmax.f32 %v3072, %v3121
  %v3171 = vmax.f32 %v3073, %v3122
  %v3172 = vmax.f32 %v3074, %v3123
  %v3173 = vmax.f32 %v3075, %v3124
  %v3174 = vmax.f32 %v3076, %v3125
  %v3175 = vmax.f32 %v3077, %v3126
  %v3176 = vmax.f32 %v3078, %v3127
  %v3177 = vmax.f32 %v3079, %v3128
  %v3178 = vmax.f32 %v3080, %v3129
  %v3179 = vmax.f32 %v3081, %v3130
  %v3180 = vmax.f32 %v3082, %v3131
  %v3181 = vmax.f32 %v3083, %v3132
  %v3182 = vmax.f32 %v3084, %v3133
  %v3183 = vmax.f32 %v3085, %v3134
  %v3184 = vmax.f32 %v3086, %v3135
  %v3185 = vmax.f32 %v3087, %v3136
  %v3186 = vmax.f32 %v3088, %v3137
  %3187 = vst [vmem:[%s4] sm:$0xff] %v3138
  %3188 = vst [vmem:[%s4 + $0x8] sm:$0xff] %v3139
  %3189 = vst [vmem:[%s4 + $0x10] sm:$0xff] %v3140
  %3190 = vst [vmem:[%s4 + $0x18] sm:$0xff] %v3141
  %3191 = vst [vmem:[%s4 + $0x20] sm:$0xff] %v3142
  %3192 = vst [vmem:[%s4 + $0x28] sm:$0xff] %v3143
  %3193 = vst [vmem:[%s4 + $0x30] sm:$0xff] %v3144
  %3194 = vst [vmem:[%s4 + $0x38] sm:$0xff] %v3145
  %3195 = vst [vmem:[%s4 + $0x40] sm:$0xff] %v3146
  %3196 = vst [vmem:[%s4 + $0x48] sm:$0xff] %v3147
  %3197 = vst [vmem:[%s4 + $0x50] sm:$0xff] %v3148
  %3198 = vst [vmem:[%s4 + $0x58] sm:$0xff] %v3149
  %3199 = vst [vmem:[%s4 + $0x60] sm:$0xff] %v3150
  %3200 = vst [vmem:[%s4 + $0x68] sm:$0xff] %v3151
  %3201 = vst [vmem:[%s4 + $0x70] sm:$0xff] %v3152
  %3202 = vst [vmem:[%s4 + $0x78] sm:$0xff] %v3153
  %3203 = vst [vmem:[%s4 + $0x80] sm:$0xff] %v3154
  %3204 = vst [vmem:[%s4 + $0x88] sm:$0xff] %v3155
  %3205 = vst [vmem:[%s4 + $0x90] sm:$0xff] %v3156
  %3206 = vst [vmem:[%s4 + $0x98] sm:$0xff] %v3157
  %3207 = vst [vmem:[%s4 + $0xa0] sm:$0xff] %v3158
  %3208 = vst [vmem:[%s4 + $0xa8] sm:$0xff] %v3159
  %3209 = vst [vmem:[%s4 + $0xb0] sm:$0xff] %v3160
  %3210 = vst [vmem:[%s4 + $0xb8] sm:$0xff] %v3161
  %3211 = vst [vmem:[%s4 + $0xc0] sm:$0xff] %v3162
  %3212 = vst [vmem:[%s4 + $0xc8] sm:$0xff] %v3163
  %3213 = vst [vmem:[%s4 + $0xd0] sm:$0xff] %v3164
  %3214 = vst [vmem:[%s4 + $0xd8] sm:$0xff] %v3165
  %3215 = vst [vmem:[%s4 + $0xe0] sm:$0xff] %v3166
  %3216 = vst [vmem:[%s4 + $0xe8] sm:$0xff] %v3167
  %3217 = vst [vmem:[%s4 + $0xf0] sm:$0xff] %v3168
  %3218 = vst [vmem:[%s4 + $0xf8] sm:$0xff] %v3169
  %3219 = vst [vmem:[%s4 + $0x100] sm:$0xff] %v3170
  %3220 = vst [vmem:[%s4 + $0x108] sm:$0xff] %v3171
  %3221 = vst [vmem:[%s4 + $0x110] sm:$0xff] %v3172
  %3222 = vst [vmem:[%s4 + $0x118] sm:$0xff] %v3173
  %3223 = vst [vmem:[%s4 + $0x120] sm:$0xff] %v3174
  %3224 = vst [vmem:[%s4 + $0x128] sm:$0xff] %v3175
  %3225 = vst [vmem:[%s4 + $0x130] sm:$0xff] %v3176
  %3226 = vst [vmem:[%s4 + $0x138] sm:$0xff] %v3177
  %3227 = vst [vmem:[%s4 + $0x140] sm:$0xff] %v3178
  %3228 = vst [vmem:[%s4 + $0x148] sm:$0xff] %v3179
  %3229 = vst [vmem:[%s4 + $0x150] sm:$0xff] %v3180
  %3230 = vst [vmem:[%s4 + $0x158] sm:$0xff] %v3181
  %3231 = vst [vmem:[%s4 + $0x160] sm:$0xff] %v3182
  %3232 = vst [vmem:[%s4 + $0x168] sm:$0xff] %v3183
  %3233 = vst [vmem:[%s4 + $0x170] sm:$0xff] %v3184
  %3234 = vst [vmem:[%s4 + $0x178] sm:$0xff] %v3185
  %3235 = vst [vmem:[%s4 + $0x180] sm:$0xff] %v3186
  // Predicated region
  $region18: #{myconvnet_forward.3} parent=0 // pred_check
    _
  $region19: #{myconvnet_forward.3} parent=0 // pred_check_branch
    %3237 = sbr.rel (0) target = $region21
  $region20: #{myconvnet_forward.3} parent=0 // pred_region
    _
  $region21: #{myconvnet_forward.3} parent=0 // pred_fallthru
    _
  // Predicated region
  $region22: #{myconvnet_forward.3} parent=0 // pred_check
    _
  $region23: #{myconvnet_forward.3} parent=0 // pred_check_branch
    %3239 = sbr.rel (0) target = $region25
  $region24: #{myconvnet_forward.3} parent=0 // pred_region
    _
  $region25: #{myconvnet_forward.3} parent=0 // pred_fallthru
    _

// kernel: myconvnet_forward.4
$region0: #{myconvnet_forward.4}
  #allocation0 [shape = 'u32[]', space=smem, size = 0x4, offset = 0x4, fixed_abs, tag = 'smem constant byte address 0x4 - core index']
  #allocation1 [shape = 'u32[144,128]{1,0:T(1,128)}', space=vmem, size = 0x12000, scoped, tag = 'internal scratch']
  %s0 = inlined_call_operand.vmem [shape: bf16[416,144], index: 0, kind: input, shape index: {}]
  %s1 = inlined_call_operand.vmem [shape: bf16[144,128], index: 1, kind: input, shape index: {}]
  %s2 = inlined_call_operand.vmem [shape: f32[1,128], index: 2, kind: input, shape index: {}]
  %s3 = inlined_call_operand.vmem [shape: f32[1,128], index: 3, kind: input, shape index: {}]
  %s4 = inlined_call_operand.vmem [shape: f32[104,128], index: 4, kind: output, shape index: {}]
  %s5 = sld [smem:[#allocation0]]
  $region26: #{myconvnet_forward.4} parent=0
    _
  %s7 = ssub.s32 1, %s5
  %s8 = scalar_select 0, %s7, %s5
  // Predicated region
  $region2: #{myconvnet_forward.4} parent=0 // pred_check
    _
  $region3: #{myconvnet_forward.4} parent=0 // pred_check_branch
    %10 = sbr.rel (0) target = $region5
  $region4: #{myconvnet_forward.4} parent=0 // pred_region
    _
  $region5: #{myconvnet_forward.4} parent=0 // pred_fallthru
    _
  // Predicated region
  $region6: #{myconvnet_forward.4} parent=0 // pred_check
    _
  $region7: #{myconvnet_forward.4} parent=0 // pred_check_branch
    %12 = sbr.rel (0) target = $region9
  $region8: #{myconvnet_forward.4} parent=0 // pred_region
    _
  $region9: #{myconvnet_forward.4} parent=0 // pred_fallthru
    _
  // Predicated region
  $region10: #{myconvnet_forward.4} parent=0 // pred_check
    _
  $region11: #{myconvnet_forward.4} parent=0 // pred_check_branch
    %14 = sbr.rel (0) target = $region13
  $region12: #{myconvnet_forward.4} parent=0 // pred_region
    _
  $region13: #{myconvnet_forward.4} parent=0 // pred_fallthru
    _
  // Predicated region
  $region14: #{myconvnet_forward.4} parent=0 // pred_check
    _
  $region15: #{myconvnet_forward.4} parent=0 // pred_check_branch
    %16 = sbr.rel (0) target = $region17
  $region16: #{myconvnet_forward.4} parent=0 // pred_region
    _
  $region17: #{myconvnet_forward.4} parent=0 // pred_fallthru
    _
  %v18 = vld [vmem:[%s0] sm:$0xff]
  %v19 = vld [vmem:[%s0 + $0x8] sm:$0xff]
  %v20 = vld [vmem:[%s0 + $0x10] sm:$0xff]
  %v21 = vld [vmem:[%s0 + $0x18] sm:$0xff]
  %v22 = vld [vmem:[%s0 + $0x20] sm:$0xff]
  %v23 = vld [vmem:[%s0 + $0x28] sm:$0xff]
  %v24 = vld [vmem:[%s0 + $0x30] sm:$0xff]
  %v25 = vld [vmem:[%s0 + $0x38] sm:$0xff]
  %v26 = vld [vmem:[%s0 + $0x40] sm:$0xff]
  %v27 = vld [vmem:[%s0 + $0x48] sm:$0xff]
  %v28 = vld [vmem:[%s0 + $0x50] sm:$0xff]
  %v29 = vld [vmem:[%s0 + $0x58] sm:$0xff]
  %v30 = vld [vmem:[%s0 + $0x60] sm:$0xff]
  %v31 = vld [vmem:[%s0 + $0x68] sm:$0xff]
  %v32 = vld [vmem:[%s0 + $0x70] sm:$0xff]
  %v33 = vld [vmem:[%s0 + $0x78] sm:$0xff]
  %v34 = vld [vmem:[%s0 + $0x80] sm:$0xff]
  %v35 = vld [vmem:[%s0 + $0x88] sm:$0xff]
  %v36 = vld [vmem:[%s0 + $0x90] sm:$0xff]
  %v37 = vld [vmem:[%s0 + $0x98] sm:$0xff]
  %v38 = vld [vmem:[%s0 + $0xa0] sm:$0xff]
  %v39 = vld [vmem:[%s0 + $0xa8] sm:$0xff]
  %v40 = vld [vmem:[%s0 + $0xb0] sm:$0xff]
  %v41 = vld [vmem:[%s0 + $0xb8] sm:$0xff]
  %v42 = vld [vmem:[%s0 + $0xc0] sm:$0xff]
  %v43 = vld [vmem:[%s0 + $0xc8] sm:$0xff]
  %v44 = vld [vmem:[%s0 + $0xd0] sm:$0xff]
  %v45 = vld [vmem:[%s0 + $0xd8] sm:$0xff]
  %v46 = vld [vmem:[%s0 + $0xe0] sm:$0xff]
  %v47 = vld [vmem:[%s0 + $0xe8] sm:$0xff]
  %v48 = vld [vmem:[%s0 + $0xf0] sm:$0xff]
  %v49 = vld [vmem:[%s0 + $0xf8] sm:$0xff]
  %v50 = vld [vmem:[%s0 + $0x100] sm:$0xff]
  %v51 = vld [vmem:[%s0 + $0x108] sm:$0xff]
  %v52 = vld [vmem:[%s0 + $0x110] sm:$0xff]
  %v53 = vld [vmem:[%s0 + $0x118] sm:$0xff]
  %v54 = vld [vmem:[%s0 + $0x120] sm:$0xff]
  %v55 = vld [vmem:[%s0 + $0x128] sm:$0xff]
  %v56 = vld [vmem:[%s0 + $0x130] sm:$0xff]
  %v57 = vld [vmem:[%s0 + $0x138] sm:$0xff]
  %v58 = vld [vmem:[%s0 + $0x140] sm:$0xff]
  %v59 = vld [vmem:[%s0 + $0x148] sm:$0xff]
  %v60 = vld [vmem:[%s0 + $0x150] sm:$0xff]
  %v61 = vld [vmem:[%s0 + $0x158] sm:$0xff]
  %v62 = vld [vmem:[%s0 + $0x160] sm:$0xff]
  %v63 = vld [vmem:[%s0 + $0x168] sm:$0xff]
  %v64 = vld [vmem:[%s0 + $0x170] sm:$0xff]
  %v65 = vld [vmem:[%s0 + $0x178] sm:$0xff]
  %v66 = vld [vmem:[%s0 + $0x180] sm:$0xff]
  %v67 = vld [vmem:[%s0 + $0x188] sm:$0xff]
  %v68 = vld [vmem:[%s0 + $0x190] sm:$0xff]
  %v69 = vld [vmem:[%s0 + $0x198] sm:$0xff]
  %v70 = vld [vmem:[%s1] sm:$0xf]
  %v71 = vld [vmem:[%s1 + $0x4] sm:$0xf]
  %v72 = vld [vmem:[%s1 + $0x8] sm:$0xf]
  %v73 = vld [vmem:[%s1 + $0xc] sm:$0xf]
  %v74 = vld [vmem:[%s1 + $0x10] sm:$0xf]
  %v75 = vld [vmem:[%s1 + $0x14] sm:$0xf]
  %v76 = vld [vmem:[%s1 + $0x18] sm:$0xf]
  %v77 = vld [vmem:[%s1 + $0x1c] sm:$0xf]
  %v78 = vld [vmem:[%s1 + $0x20] sm:$0xf]
  %v79 = vld [vmem:[%s1 + $0x24] sm:$0xf]
  %v80 = vld [vmem:[%s1 + $0x28] sm:$0xf]
  %v81 = vld [vmem:[%s1 + $0x2c] sm:$0xf]
  %v82 = vld [vmem:[%s1 + $0x30] sm:$0xf]
  %v83 = vld [vmem:[%s1 + $0x34] sm:$0xf]
  %v84 = vld [vmem:[%s1 + $0x38] sm:$0xf]
  %v85 = vld [vmem:[%s1 + $0x3c] sm:$0xf]
  %v86 = vld [vmem:[%s1 + $0x40] sm:$0xf]
  %v87 = vld [vmem:[%s1 + $0x44] sm:$0xf]
  %v140 = vunpack.c.l.b16 %v18
  %v141 = vunpack.c.h.b16 %v18
  %v142 = vunpack.c.l.b16 %v19
  %v143 = vunpack.c.h.b16 %v19
  %v144 = vunpack.c.l.b16 %v20
  %v145 = vunpack.c.h.b16 %v20
  %v146 = vunpack.c.l.b16 %v21
  %v147 = vunpack.c.h.b16 %v21
  %v148 = vunpack.c.l.b16 %v22
  %v149 = vunpack.c.h.b16 %v22
  %v150 = vunpack.c.l.b16 %v23
  %v151 = vunpack.c.h.b16 %v23
  %v152 = vunpack.c.l.b16 %v24
  %v153 = vunpack.c.h.b16 %v24
  %v154 = vunpack.c.l.b16 %v25
  %v155 = vunpack.c.h.b16 %v25
  %v156 = vunpack.c.l.b16 %v26
  %v157 = vunpack.c.h.b16 %v26
  %v158 = vunpack.c.l.b16 %v27
  %v159 = vunpack.c.h.b16 %v27
  %v160 = vunpack.c.l.b16 %v28
  %v161 = vunpack.c.h.b16 %v28
  %v162 = vunpack.c.l.b16 %v29
  %v163 = vunpack.c.h.b16 %v29
  %v164 = vunpack.c.l.b16 %v30
  %v165 = vunpack.c.h.b16 %v30
  %v166 = vunpack.c.l.b16 %v31
  %v167 = vunpack.c.h.b16 %v31
  %v168 = vunpack.c.l.b16 %v32
  %v169 = vunpack.c.h.b16 %v32
  %v170 = vunpack.c.l.b16 %v33
  %v171 = vunpack.c.h.b16 %v33
  %v172 = vunpack.c.l.b16 %v34
  %v173 = vunpack.c.h.b16 %v34
  %v174 = vunpack.c.l.b16 %v35
  %v175 = vunpack.c.h.b16 %v35
  %v176 = vunpack.c.l.b16 %v36
  %v177 = vunpack.c.h.b16 %v36
  %v178 = vunpack.c.l.b16 %v37
  %v179 = vunpack.c.h.b16 %v37
  %v180 = vunpack.c.l.b16 %v38
  %v181 = vunpack.c.h.b16 %v38
  %v182 = vunpack.c.l.b16 %v39
  %v183 = vunpack.c.h.b16 %v39
  %v184 = vunpack.c.l.b16 %v40
  %v185 = vunpack.c.h.b16 %v40
  %v186 = vunpack.c.l.b16 %v41
  %v187 = vunpack.c.h.b16 %v41
  %v188 = vunpack.c.l.b16 %v42
  %v189 = vunpack.c.h.b16 %v42
  %v190 = vunpack.c.l.b16 %v43
  %v191 = vunpack.c.h.b16 %v43
  %v192 = vunpack.c.l.b16 %v44
  %v193 = vunpack.c.h.b16 %v44
  %v194 = vunpack.c.l.b16 %v45
  %v195 = vunpack.c.h.b16 %v45
  %v196 = vunpack.c.l.b16 %v46
  %v197 = vunpack.c.h.b16 %v46
  %v198 = vunpack.c.l.b16 %v47
  %v199 = vunpack.c.h.b16 %v47
  %v200 = vunpack.c.l.b16 %v48
  %v201 = vunpack.c.h.b16 %v48
  %v202 = vunpack.c.l.b16 %v49
  %v203 = vunpack.c.h.b16 %v49
  %v204 = vunpack.c.l.b16 %v50
  %v205 = vunpack.c.h.b16 %v50
  %v206 = vunpack.c.l.b16 %v51
  %v207 = vunpack.c.h.b16 %v51
  %v208 = vunpack.c.l.b16 %v52
  %v209 = vunpack.c.h.b16 %v52
  %v210 = vunpack.c.l.b16 %v53
  %v211 = vunpack.c.h.b16 %v53
  %v212 = vunpack.c.l.b16 %v54
  %v213 = vunpack.c.h.b16 %v54
  %v214 = vunpack.c.l.b16 %v55
  %v215 = vunpack.c.h.b16 %v55
  %v216 = vunpack.c.l.b16 %v56
  %v217 = vunpack.c.h.b16 %v56
  %v218 = vunpack.c.l.b16 %v57
  %v219 = vunpack.c.h.b16 %v57
  %v220 = vunpack.c.l.b16 %v58
  %v221 = vunpack.c.h.b16 %v58
  %v222 = vunpack.c.l.b16 %v59
  %v223 = vunpack.c.h.b16 %v59
  %v224 = vunpack.c.l.b16 %v60
  %v225 = vunpack.c.h.b16 %v60
  %v226 = vunpack.c.l.b16 %v61
  %v227 = vunpack.c.h.b16 %v61
  %v228 = vunpack.c.l.b16 %v62
  %v229 = vunpack.c.h.b16 %v62
  %v230 = vunpack.c.l.b16 %v63
  %v231 = vunpack.c.h.b16 %v63
  %v232 = vunpack.c.l.b16 %v64
  %v233 = vunpack.c.h.b16 %v64
  %v234 = vunpack.c.l.b16 %v65
  %v235 = vunpack.c.h.b16 %v65
  %v236 = vunpack.c.l.b16 %v66
  %v237 = vunpack.c.h.b16 %v66
  %v238 = vunpack.c.l.b16 %v67
  %v239 = vunpack.c.h.b16 %v67
  %v240 = vunpack.c.l.b16 %v68
  %v241 = vunpack.c.h.b16 %v68
  %v242 = vunpack.c.l.b16 %v69
  %v243 = vunpack.c.h.b16 %v69
  %v244 = vpack.c.b16 %v142, %v140
  %v245 = vpack.c.b16 %v143, %v141
  %v246 = vpack.c.b16 %v146, %v144
  %v247 = vpack.c.b16 %v147, %v145
  %v248 = vpack.c.b16 %v150, %v148
  %v249 = vpack.c.b16 %v151, %v149
  %v250 = vpack.c.b16 %v154, %v152
  %v251 = vpack.c.b16 %v155, %v153
  %v252 = vpack.c.b16 %v158, %v156
  %v253 = vpack.c.b16 %v159, %v157
  %v254 = vpack.c.b16 %v162, %v160
  %v255 = vpack.c.b16 %v163, %v161
  %v256 = vpack.c.b16 %v166, %v164
  %v257 = vpack.c.b16 %v167, %v165
  %v258 = vpack.c.b16 %v170, %v168
  %v259 = vpack.c.b16 %v171, %v169
  %v260 = vpack.c.b16 %v174, %v172
  %v261 = vpack.c.b16 %v175, %v173
  %v262 = vpack.c.b16 %v178, %v176
  %v263 = vpack.c.b16 %v179, %v177
  %v264 = vpack.c.b16 %v182, %v180
  %v265 = vpack.c.b16 %v183, %v181
  %v266 = vpack.c.b16 %v186, %v184
  %v267 = vpack.c.b16 %v187, %v185
  %v268 = vpack.c.b16 %v190, %v188
  %v269 = vpack.c.b16 %v191, %v189
  %v270 = vpack.c.b16 %v194, %v192
  %v271 = vpack.c.b16 %v195, %v193
  %v272 = vpack.c.b16 %v198, %v196
  %v273 = vpack.c.b16 %v199, %v197
  %v274 = vpack.c.b16 %v202, %v200
  %v275 = vpack.c.b16 %v203, %v201
  %v276 = vpack.c.b16 %v206, %v204
  %v277 = vpack.c.b16 %v207, %v205
  %v278 = vpack.c.b16 %v210, %v208
  %v279 = vpack.c.b16 %v211, %v209
  %v280 = vpack.c.b16 %v214, %v212
  %v281 = vpack.c.b16 %v215, %v213
  %v282 = vpack.c.b16 %v218, %v216
  %v283 = vpack.c.b16 %v219, %v217
  %v284 = vpack.c.b16 %v222, %v220
  %v285 = vpack.c.b16 %v223, %v221
  %v286 = vpack.c.b16 %v226, %v224
  %v287 = vpack.c.b16 %v227, %v225
  %v288 = vpack.c.b16 %v230, %v228
  %v289 = vpack.c.b16 %v231, %v229
  %v290 = vpack.c.b16 %v234, %v232
  %v291 = vpack.c.b16 %v235, %v233
  %v292 = vpack.c.b16 %v238, %v236
  %v293 = vpack.c.b16 %v239, %v237
  %v294 = vpack.c.b16 %v242, %v240
  %v295 = vpack.c.b16 %v243, %v241
  %v340 = vunpack.c.l.b16 %v70
  %v341 = vunpack.c.l.b16 %v71
  %v342 = vunpack.c.l.b16 %v72
  %v343 = vunpack.c.l.b16 %v73
  %v344 = vunpack.c.l.b16 %v74
  %v345 = vunpack.c.l.b16 %v75
  %v346 = vunpack.c.l.b16 %v76
  %v347 = vunpack.c.l.b16 %v77
  %v348 = vunpack.c.l.b16 %v78
  %v349 = vunpack.c.l.b16 %v79
  %v350 = vunpack.c.l.b16 %v80
  %v351 = vunpack.c.l.b16 %v81
  %v352 = vunpack.c.l.b16 %v82
  %v353 = vunpack.c.l.b16 %v83
  %v354 = vunpack.c.l.b16 %v84
  %v355 = vunpack.c.l.b16 %v85
  %v356 = vunpack.c.l.b16 %v86
  %v357 = vunpack.c.l.b16 %v87
  %v358 = vpack.c.b16 %v341, %v340
  %v359 = vpack.c.b16 %v343, %v342
  %v360 = vpack.c.b16 %v345, %v344
  %v361 = vpack.c.b16 %v347, %v346
  %v362 = vpack.c.b16 %v349, %v348
  %v363 = vpack.c.b16 %v351, %v350
  %v364 = vpack.c.b16 %v353, %v352
  %v365 = vpack.c.b16 %v355, %v354
  %v366 = vpack.c.b16 %v357, %v356
  %vm376 = vcmask 130048
  %v378 = vsel %vm376, %v245, 0
  %v381 = vsel %vm376, %v247, 0
  %v384 = vsel %vm376, %v249, 0
  %v387 = vsel %vm376, %v251, 0
  %v390 = vsel %vm376, %v253, 0
  %v393 = vsel %vm376, %v255, 0
  %v396 = vsel %vm376, %v257, 0
  %v399 = vsel %vm376, %v259, 0
  %v402 = vsel %vm376, %v261, 0
  %v405 = vsel %vm376, %v263, 0
  %v408 = vsel %vm376, %v265, 0
  %v411 = vsel %vm376, %v267, 0
  %v414 = vsel %vm376, %v269, 0
  %v417 = vsel %vm376, %v271, 0
  %v420 = vsel %vm376, %v273, 0
  %v423 = vsel %vm376, %v275, 0
  %v426 = vsel %vm376, %v277, 0
  %v429 = vsel %vm376, %v279, 0
  %v432 = vsel %vm376, %v281, 0
  %v435 = vsel %vm376, %v283, 0
  %v438 = vsel %vm376, %v285, 0
  %v441 = vsel %vm376, %v287, 0
  %v444 = vsel %vm376, %v289, 0
  %v447 = vsel %vm376, %v291, 0
  %v450 = vsel %vm376, %v293, 0
  %v453 = vsel %vm376, %v295, 0
  %455 = vmatprep.subr.bf16.mxu0 0
  %456 = vmatpush1.bf16.msra.mxu0 %v358
  %457 = vmatprep.subr.bf16.mxu0 0
  %458 = vmatpush1.bf16.msra.mxu0 %v359
  %459 = vmatprep.subr.bf16.mxu0 0
  %460 = vmatpush1.bf16.msra.mxu0 %v360
  %461 = vmatprep.subr.bf16.mxu0 0
  %462 = vmatpush1.bf16.msra.mxu0 %v361
  %463 = vmatprep.subr.bf16.mxu0 0
  %464 = vmatpush1.bf16.msra.mxu0 %v362
  %465 = vmatprep.subr.bf16.mxu0 0
  %466 = vmatpush1.bf16.msra.mxu0 %v363
  %467 = vmatprep.subr.bf16.mxu0 0
  %468 = vmatpush1.bf16.msra.mxu0 %v364
  %469 = vmatprep.subr.bf16.mxu0 0
  %470 = vmatpush1.bf16.msra.mxu0 %v365
  %471 = vmatprep.subr.bf16.mxu0 0
  %472 = vmatpush1.bf16.msra.mxu0 %v366
  %473 = vmatprep.subr.bf16.mxu0 0
  %474 = vmatpush1.bf16.msra.mxu0 0
  %475 = vmatprep.subr.bf16.mxu0 0
  %476 = vmatpush1.bf16.msra.mxu0 0
  %477 = vmatprep.subr.bf16.mxu0 0
  %478 = vmatpush1.bf16.msra.mxu0 0
  %479 = vmatprep.subr.bf16.mxu0 0
  %480 = vmatpush1.bf16.msra.mxu0 0
  %481 = vmatprep.subr.bf16.mxu0 0
  %482 = vmatpush1.bf16.msra.mxu0 0
  %483 = vmatprep.subr.bf16.mxu0 0
  %484 = vmatpush1.bf16.msra.mxu0 0
  %485 = vmatprep.subr.bf16.mxu0 0
  %486 = vmatpush1.bf16.msra.mxu0 0
  %487 = vmatprep.mubr.bf16.mxu0 %v378
  %488 = vmatmul.mubr.bf16.gmra.mrb[0].mxu0 %v244
  %v489 = vpop.f32.mrb[0].mxu0
  %v490 = vadd.f32 0.0, %v489
  %v491 = vpop.f32.mrb[0].mxu0
  %v492 = vpop.f32.mrb[0].mxu0
  %v493 = vadd.f32 0.0, %v492
  %v494 = vpop.f32.mrb[0].mxu0
  %495 = vmatprep.mubr.bf16.mxu0 %v381
  %496 = vmatmul.mubr.bf16.gmra.mrb[0].mxu0 %v246
  %v497 = vpop.f32.mrb[0].mxu0
  %v498 = vadd.f32 0.0, %v497
  %v499 = vpop.f32.mrb[0].mxu0
  %v500 = vpop.f32.mrb[0].mxu0
  %v501 = vadd.f32 0.0, %v500
  %v502 = vpop.f32.mrb[0].mxu0
  %503 = vmatprep.mubr.bf16.mxu0 %v384
  %504 = vmatmul.mubr.bf16.gmra.mrb[0].mxu0 %v248
  %v505 = vpop.f32.mrb[0].mxu0
  %v506 = vadd.f32 0.0, %v505
  %v507 = vpop.f32.mrb[0].mxu0
  %v508 = vpop.f32.mrb[0].mxu0
  %v509 = vadd.f32 0.0, %v508
  %v510 = vpop.f32.mrb[0].mxu0
  %511 = vmatprep.mubr.bf16.mxu0 %v387
  %512 = vmatmul.mubr.bf16.gmra.mrb[0].mxu0 %v250
  %v513 = vpop.f32.mrb[0].mxu0
  %v514 = vadd.f32 0.0, %v513
  %v515 = vpop.f32.mrb[0].mxu0
  %v516 = vpop.f32.mrb[0].mxu0
  %v517 = vadd.f32 0.0, %v516
  %v518 = vpop.f32.mrb[0].mxu0
  %519 = vmatprep.mubr.bf16.mxu0 %v390
  %520 = vmatmul.mubr.bf16.gmra.mrb[0].mxu0 %v252
  %v521 = vpop.f32.mrb[0].mxu0
  %v522 = vadd.f32 0.0, %v521
  %v523 = vpop.f32.mrb[0].mxu0
  %v524 = vpop.f32.mrb[0].mxu0
  %v525 = vadd.f32 0.0, %v524
  %v526 = vpop.f32.mrb[0].mxu0
  %527 = vmatprep.mubr.bf16.mxu0 %v393
  %528 = vmatmul.mubr.bf16.gmra.mrb[0].mxu0 %v254
  %v529 = vpop.f32.mrb[0].mxu0
  %v530 = vadd.f32 0.0, %v529
  %v531 = vpop.f32.mrb[0].mxu0
  %v532 = vpop.f32.mrb[0].mxu0
  %v533 = vadd.f32 0.0, %v532
  %v534 = vpop.f32.mrb[0].mxu0
  %535 = vmatprep.mubr.bf16.mxu0 %v396
  %536 = vmatmul.mubr.bf16.gmra.mrb[0].mxu0 %v256
  %v537 = vpop.f32.mrb[0].mxu0
  %v538 = vadd.f32 0.0, %v537
  %v539 = vpop.f32.mrb[0].mxu0
  %v540 = vpop.f32.mrb[0].mxu0
  %v541 = vadd.f32 0.0, %v540
  %v542 = vpop.f32.mrb[0].mxu0
  %543 = vmatprep.mubr.bf16.mxu0 %v399
  %544 = vmatmul.mubr.bf16.gmra.mrb[0].mxu0 %v258
  %v545 = vpop.f32.mrb[0].mxu0
  %v546 = vadd.f32 0.0, %v545
  %v547 = vpop.f32.mrb[0].mxu0
  %v548 = vpop.f32.mrb[0].mxu0
  %v549 = vadd.f32 0.0, %v548
  %v550 = vpop.f32.mrb[0].mxu0
  %551 = vmatprep.mubr.bf16.mxu0 %v402
  %552 = vmatmul.mubr.bf16.gmra.mrb[0].mxu0 %v260
  %v553 = vpop.f32.mrb[0].mxu0
  %v554 = vadd.f32 0.0, %v553
  %v555 = vpop.f32.mrb[0].mxu0
  %v556 = vpop.f32.mrb[0].mxu0
  %v557 = vadd.f32 0.0, %v556
  %v558 = vpop.f32.mrb[0].mxu0
  %559 = vmatprep.mubr.bf16.mxu0 %v405
  %560 = vmatmul.mubr.bf16.gmra.mrb[0].mxu0 %v262
  %v561 = vpop.f32.mrb[0].mxu0
  %v562 = vadd.f32 0.0, %v561
  %v563 = vpop.f32.mrb[0].mxu0
  %v564 = vpop.f32.mrb[0].mxu0
  %v565 = vadd.f32 0.0, %v564
  %v566 = vpop.f32.mrb[0].mxu0
  %567 = vmatprep.mubr.bf16.mxu0 %v408
  %568 = vmatmul.mubr.bf16.gmra.mrb[0].mxu0 %v264
  %v569 = vpop.f32.mrb[0].mxu0
  %v570 = vadd.f32 0.0, %v569
  %v571 = vpop.f32.mrb[0].mxu0
  %v572 = vpop.f32.mrb[0].mxu0
  %v573 = vadd.f32 0.0, %v572
  %v574 = vpop.f32.mrb[0].mxu0
  %575 = vmatprep.mubr.bf16.mxu0 %v411
  %576 = vmatmul.mubr.bf16.gmra.mrb[0].mxu0 %v266
  %v577 = vpop.f32.mrb[0].mxu0
  %v578 = vadd.f32 0.0, %v577
  %v579 = vpop.f32.mrb[0].mxu0
  %v580 = vpop.f32.mrb[0].mxu0
  %v581 = vadd.f32 0.0, %v580
  %v582 = vpop.f32.mrb[0].mxu0
  %583 = vmatprep.mubr.bf16.mxu0 %v414
  %584 = vmatmul.mubr.bf16.gmra.mrb[0].mxu0 %v268
  %v585 = vpop.f32.mrb[0].mxu0
  %v586 = vadd.f32 0.0, %v585
  %v587 = vpop.f32.mrb[0].mxu0
  %v588 = vpop.f32.mrb[0].mxu0
  %v589 = vadd.f32 0.0, %v588
  %v590 = vpop.f32.mrb[0].mxu0
  %591 = vmatprep.mubr.bf16.mxu0 %v417
  %592 = vmatmul.mubr.bf16.gmra.mrb[0].mxu0 %v270
  %v593 = vpop.f32.mrb[0].mxu0
  %v594 = vadd.f32 0.0, %v593
  %v595 = vpop.f32.mrb[0].mxu0
  %v596 = vpop.f32.mrb[0].mxu0
  %v597 = vadd.f32 0.0, %v596
  %v598 = vpop.f32.mrb[0].mxu0
  %599 = vmatprep.mubr.bf16.mxu0 %v420
  %600 = vmatmul.mubr.bf16.gmra.mrb[0].mxu0 %v272
  %v601 = vpop.f32.mrb[0].mxu0
  %v602 = vadd.f32 0.0, %v601
  %v603 = vpop.f32.mrb[0].mxu0
  %v604 = vpop.f32.mrb[0].mxu0
  %v605 = vadd.f32 0.0, %v604
  %v606 = vpop.f32.mrb[0].mxu0
  %607 = vmatprep.mubr.bf16.mxu0 %v423
  %608 = vmatmul.mubr.bf16.gmra.mrb[0].mxu0 %v274
  %v609 = vpop.f32.mrb[0].mxu0
  %v610 = vadd.f32 0.0, %v609
  %v611 = vpop.f32.mrb[0].mxu0
  %v612 = vpop.f32.mrb[0].mxu0
  %v613 = vadd.f32 0.0, %v612
  %v614 = vpop.f32.mrb[0].mxu0
  %615 = vmatprep.mubr.bf16.mxu0 %v426
  %616 = vmatmul.mubr.bf16.gmra.mrb[0].mxu0 %v276
  %v617 = vpop.f32.mrb[0].mxu0
  %v618 = vadd.f32 0.0, %v617
  %v619 = vpop.f32.mrb[0].mxu0
  %v620 = vpop.f32.mrb[0].mxu0
  %v621 = vadd.f32 0.0, %v620
  %v622 = vpop.f32.mrb[0].mxu0
  %623 = vmatprep.mubr.bf16.mxu0 %v429
  %624 = vmatmul.mubr.bf16.gmra.mrb[0].mxu0 %v278
  %v625 = vpop.f32.mrb[0].mxu0
  %v626 = vadd.f32 0.0, %v625
  %v627 = vpop.f32.mrb[0].mxu0
  %v628 = vpop.f32.mrb[0].mxu0
  %v629 = vadd.f32 0.0, %v628
  %v630 = vpop.f32.mrb[0].mxu0
  %631 = vmatprep.mubr.bf16.mxu0 %v432
  %632 = vmatmul.mubr.bf16.gmra.mrb[0].mxu0 %v280
  %v633 = vpop.f32.mrb[0].mxu0
  %v634 = vadd.f32 0.0, %v633
  %v635 = vpop.f32.mrb[0].mxu0
  %v636 = vpop.f32.mrb[0].mxu0
  %v637 = vadd.f32 0.0, %v636
  %v638 = vpop.f32.mrb[0].mxu0
  %639 = vmatprep.mubr.bf16.mxu0 %v435
  %640 = vmatmul.mubr.bf16.gmra.mrb[0].mxu0 %v282
  %v641 = vpop.f32.mrb[0].mxu0
  %v642 = vadd.f32 0.0, %v641
  %v643 = vpop.f32.mrb[0].mxu0
  %v644 = vpop.f32.mrb[0].mxu0
  %v645 = vadd.f32 0.0, %v644
  %v646 = vpop.f32.mrb[0].mxu0
  %647 = vmatprep.mubr.bf16.mxu0 %v438
  %648 = vmatmul.mubr.bf16.gmra.mrb[0].mxu0 %v284
  %v649 = vpop.f32.mrb[0].mxu0
  %v650 = vadd.f32 0.0, %v649
  %v651 = vpop.f32.mrb[0].mxu0
  %v652 = vpop.f32.mrb[0].mxu0
  %v653 = vadd.f32 0.0, %v652
  %v654 = vpop.f32.mrb[0].mxu0
  %655 = vmatprep.mubr.bf16.mxu0 %v441
  %656 = vmatmul.mubr.bf16.gmra.mrb[0].mxu0 %v286
  %v657 = vpop.f32.mrb[0].mxu0
  %v658 = vadd.f32 0.0, %v657
  %v659 = vpop.f32.mrb[0].mxu0
  %v660 = vpop.f32.mrb[0].mxu0
  %v661 = vadd.f32 0.0, %v660
  %v662 = vpop.f32.mrb[0].mxu0
  %663 = vmatprep.mubr.bf16.mxu0 %v444
  %664 = vmatmul.mubr.bf16.gmra.mrb[0].mxu0 %v288
  %v665 = vpop.f32.mrb[0].mxu0
  %v666 = vadd.f32 0.0, %v665
  %v667 = vpop.f32.mrb[0].mxu0
  %v668 = vpop.f32.mrb[0].mxu0
  %v669 = vadd.f32 0.0, %v668
  %v670 = vpop.f32.mrb[0].mxu0
  %671 = vmatprep.mubr.bf16.mxu0 %v447
  %672 = vmatmul.mubr.bf16.gmra.mrb[0].mxu0 %v290
  %v673 = vpop.f32.mrb[0].mxu0
  %v674 = vadd.f32 0.0, %v673
  %v675 = vpop.f32.mrb[0].mxu0
  %v676 = vpop.f32.mrb[0].mxu0
  %v677 = vadd.f32 0.0, %v676
  %v678 = vpop.f32.mrb[0].mxu0
  %679 = vmatprep.mubr.bf16.mxu0 %v450
  %680 = vmatmul.mubr.bf16.gmra.mrb[0].mxu0 %v292
  %v681 = vpop.f32.mrb[0].mxu0
  %v682 = vadd.f32 0.0, %v681
  %v683 = vpop.f32.mrb[0].mxu0
  %v684 = vpop.f32.mrb[0].mxu0
  %v685 = vadd.f32 0.0, %v684
  %v686 = vpop.f32.mrb[0].mxu0
  %687 = vmatprep.mubr.bf16.mxu0 %v453
  %688 = vmatmul.mubr.bf16.gmra.mrb[0].mxu0 %v294
  %v689 = vpop.f32.mrb[0].mxu0
  %v690 = vadd.f32 0.0, %v689
  %v691 = vpop.f32.mrb[0].mxu0
  %v692 = vpop.f32.mrb[0].mxu0
  %v693 = vadd.f32 0.0, %v692
  %v694 = vpop.f32.mrb[0].mxu0
  %695 = vdwg.mxu0
  %v696 = vadd.f32 %v490, %v493
  %v697 = vadd.f32 %v696, %v498
  %v698 = vadd.f32 %v697, %v501
  %v699 = vadd.f32 %v698, %v506
  %v700 = vadd.f32 %v699, %v509
  %v701 = vadd.f32 %v700, %v514
  %v702 = vadd.f32 %v701, %v517
  %v703 = vadd.f32 %v702, %v522
  %v704 = vadd.f32 %v703, %v525
  %v705 = vadd.f32 %v704, %v530
  %v706 = vadd.f32 %v705, %v533
  %v707 = vadd.f32 %v706, %v538
  %v708 = vadd.f32 %v707, %v541
  %v709 = vadd.f32 %v708, %v546
  %v710 = vadd.f32 %v709, %v549
  %v711 = vadd.f32 %v710, %v554
  %v712 = vadd.f32 %v711, %v557
  %v713 = vadd.f32 %v712, %v562
  %v714 = vadd.f32 %v713, %v565
  %v715 = vadd.f32 %v714, %v570
  %v716 = vadd.f32 %v715, %v573
  %v717 = vadd.f32 %v716, %v578
  %v718 = vadd.f32 %v717, %v581
  %v719 = vadd.f32 %v718, %v586
  %v720 = vadd.f32 %v719, %v589
  %v721 = vadd.f32 %v720, %v594
  %v722 = vadd.f32 %v721, %v597
  %v723 = vadd.f32 %v722, %v602
  %v724 = vadd.f32 %v723, %v605
  %v725 = vadd.f32 %v724, %v610
  %v726 = vadd.f32 %v725, %v613
  %v727 = vadd.f32 %v726, %v618
  %v728 = vadd.f32 %v727, %v621
  %v729 = vadd.f32 %v728, %v626
  %v730 = vadd.f32 %v729, %v629
  %v731 = vadd.f32 %v730, %v634
  %v732 = vadd.f32 %v731, %v637
  %v733 = vadd.f32 %v732, %v642
  %v734 = vadd.f32 %v733, %v645
  %v735 = vadd.f32 %v734, %v650
  %v736 = vadd.f32 %v735, %v653
  %v737 = vadd.f32 %v736, %v658
  %v738 = vadd.f32 %v737, %v661
  %v739 = vadd.f32 %v738, %v666
  %v740 = vadd.f32 %v739, %v669
  %v741 = vadd.f32 %v740, %v674
  %v742 = vadd.f32 %v741, %v677
  %v743 = vadd.f32 %v742, %v682
  %v744 = vadd.f32 %v743, %v685
  %v745 = vadd.f32 %v744, %v690
  %v746 = vadd.f32 %v745, %v693
  %v747 = vrot.slane %v746, 4
  %v748 = vadd.f32 %v746, %v747
  %v749 = vrot.slane %v748, 2
  %v750 = vadd.f32 %v748, %v749
  %v751 = vrot.slane %v750, 1
  %v752 = vadd.f32 %v750, %v751
  %v753 = vmul.f32 %v490, %v490
  %v754 = vmul.f32 %v493, %v493
  %v755 = vmul.f32 %v498, %v498
  %v756 = vmul.f32 %v501, %v501
  %v757 = vmul.f32 %v506, %v506
  %v758 = vmul.f32 %v509, %v509
  %v759 = vmul.f32 %v514, %v514
  %v760 = vmul.f32 %v517, %v517
  %v761 = vmul.f32 %v522, %v522
  %v762 = vmul.f32 %v525, %v525
  %v763 = vmul.f32 %v530, %v530
  %v764 = vmul.f32 %v533, %v533
  %v765 = vmul.f32 %v538, %v538
  %v766 = vmul.f32 %v541, %v541
  %v767 = vmul.f32 %v546, %v546
  %v768 = vmul.f32 %v549, %v549
  %v769 = vmul.f32 %v554, %v554
  %v770 = vmul.f32 %v557, %v557
  %v771 = vmul.f32 %v562, %v562
  %v772 = vmul.f32 %v565, %v565
  %v773 = vmul.f32 %v570, %v570
  %v774 = vmul.f32 %v573, %v573
  %v775 = vmul.f32 %v578, %v578
  %v776 = vmul.f32 %v581, %v581
  %v777 = vmul.f32 %v586, %v586
  %v778 = vmul.f32 %v589, %v589
  %v779 = vmul.f32 %v594, %v594
  %v780 = vmul.f32 %v597, %v597
  %v781 = vmul.f32 %v602, %v602
  %v782 = vmul.f32 %v605, %v605
  %v783 = vmul.f32 %v610, %v610
  %v784 = vmul.f32 %v613, %v613
  %v785 = vmul.f32 %v618, %v618
  %v786 = vmul.f32 %v621, %v621
  %v787 = vmul.f32 %v626, %v626
  %v788 = vmul.f32 %v629, %v629
  %v789 = vmul.f32 %v634, %v634
  %v790 = vmul.f32 %v637, %v637
  %v791 = vmul.f32 %v642, %v642
  %v792 = vmul.f32 %v645, %v645
  %v793 = vmul.f32 %v650, %v650
  %v794 = vmul.f32 %v653, %v653
  %v795 = vmul.f32 %v658, %v658
  %v796 = vmul.f32 %v661, %v661
  %v797 = vmul.f32 %v666, %v666
  %v798 = vmul.f32 %v669, %v669
  %v799 = vmul.f32 %v674, %v674
  %v800 = vmul.f32 %v677, %v677
  %v801 = vmul.f32 %v682, %v682
  %v802 = vmul.f32 %v685, %v685
  %v803 = vmul.f32 %v690, %v690
  %v804 = vmul.f32 %v693, %v693
  %v805 = vadd.f32 %v753, %v754
  %v806 = vadd.f32 %v805, %v755
  %v807 = vadd.f32 %v806, %v756
  %v808 = vadd.f32 %v807, %v757
  %v809 = vadd.f32 %v808, %v758
  %v810 = vadd.f32 %v809, %v759
  %v811 = vadd.f32 %v810, %v760
  %v812 = vadd.f32 %v811, %v761
  %v813 = vadd.f32 %v812, %v762
  %v814 = vadd.f32 %v813, %v763
  %v815 = vadd.f32 %v814, %v764
  %v816 = vadd.f32 %v815, %v765
  %v817 = vadd.f32 %v816, %v766
  %v818 = vadd.f32 %v817, %v767
  %v819 = vadd.f32 %v818, %v768
  %v820 = vadd.f32 %v819, %v769
  %v821 = vadd.f32 %v820, %v770
  %v822 = vadd.f32 %v821, %v771
  %v823 = vadd.f32 %v822, %v772
  %v824 = vadd.f32 %v823, %v773
  %v825 = vadd.f32 %v824, %v774
  %v826 = vadd.f32 %v825, %v775
  %v827 = vadd.f32 %v826, %v776
  %v828 = vadd.f32 %v827, %v777
  %v829 = vadd.f32 %v828, %v778
  %v830 = vadd.f32 %v829, %v779
  %v831 = vadd.f32 %v830, %v780
  %v832 = vadd.f32 %v831, %v781
  %v833 = vadd.f32 %v832, %v782
  %v834 = vadd.f32 %v833, %v783
  %v835 = vadd.f32 %v834, %v784
  %v836 = vadd.f32 %v835, %v785
  %v837 = vadd.f32 %v836, %v786
  %v838 = vadd.f32 %v837, %v787
  %v839 = vadd.f32 %v838, %v788
  %v840 = vadd.f32 %v839, %v789
  %v841 = vadd.f32 %v840, %v790
  %v842 = vadd.f32 %v841, %v791
  %v843 = vadd.f32 %v842, %v792
  %v844 = vadd.f32 %v843, %v793
  %v845 = vadd.f32 %v844, %v794
  %v846 = vadd.f32 %v845, %v795
  %v847 = vadd.f32 %v846, %v796
  %v848 = vadd.f32 %v847, %v797
  %v849 = vadd.f32 %v848, %v798
  %v850 = vadd.f32 %v849, %v799
  %v851 = vadd.f32 %v850, %v800
  %v852 = vadd.f32 %v851, %v801
  %v853 = vadd.f32 %v852, %v802
  %v854 = vadd.f32 %v853, %v803
  %v855 = vadd.f32 %v854, %v804
  %v856 = vrot.slane %v855, 4
  %v857 = vadd.f32 %v855, %v856
  %v858 = vrot.slane %v857, 2
  %v859 = vadd.f32 %v857, %v858
  %v860 = vrot.slane %v859, 1
  %v861 = vadd.f32 %v859, %v860
  %v862 = vmul.f32 %v752, 0.0025510204
  %v863 = vmul.f32 %v861, 0.0025510204
  %v864 = vmul.f32 %v862, %v862
  %v865 = vsub.f32 %v863, %v864
  %v866 = vmax.f32 %v865, 0.0
  %v867 = vld [vmem:[%s2] sm:$0x1]
  %v868 = vadd.f32 %v866, 1e-05
  %v869 = vrsqrt.pop %v868
  %v870 = vmul.f32 %v867, %v869
  %v871 = vld [vmem:[%s3] sm:$0x1]
  %v872 = vmul.f32 %v862, %v870
  %v873 = vsub.f32 %v871, %v872
  %v875 = vlaneseq
  %v876 = vshrl.u32 %v875, 7
  %v877 = vsub.s32 0, %v876
  %v878 = vrot.slane %v870, %v877
  %v880 = vmul.f32 %v490, %v878
  %v881 = vmul.f32 %v493, %v878
  %v882 = vmul.f32 %v498, %v878
  %v883 = vmul.f32 %v501, %v878
  %v884 = vmul.f32 %v506, %v878
  %v885 = vmul.f32 %v509, %v878
  %v886 = vmul.f32 %v514, %v878
  %v887 = vmul.f32 %v517, %v878
  %v888 = vmul.f32 %v522, %v878
  %v889 = vmul.f32 %v525, %v878
  %v890 = vmul.f32 %v530, %v878
  %v891 = vmul.f32 %v533, %v878
  %v892 = vmul.f32 %v538, %v878
  %v893 = vmul.f32 %v541, %v878
  %v894 = vmul.f32 %v546, %v878
  %v895 = vmul.f32 %v549, %v878
  %v896 = vmul.f32 %v554, %v878
  %v897 = vmul.f32 %v557, %v878
  %v898 = vmul.f32 %v562, %v878
  %v899 = vmul.f32 %v565, %v878
  %v900 = vmul.f32 %v570, %v878
  %v901 = vmul.f32 %v573, %v878
  %v902 = vmul.f32 %v578, %v878
  %v903 = vmul.f32 %v581, %v878
  %v904 = vmul.f32 %v586, %v878
  %v905 = vmul.f32 %v589, %v878
  %v906 = vmul.f32 %v594, %v878
  %v907 = vmul.f32 %v597, %v878
  %v908 = vmul.f32 %v602, %v878
  %v909 = vmul.f32 %v605, %v878
  %v910 = vmul.f32 %v610, %v878
  %v911 = vmul.f32 %v613, %v878
  %v912 = vmul.f32 %v618, %v878
  %v913 = vmul.f32 %v621, %v878
  %v914 = vmul.f32 %v626, %v878
  %v915 = vmul.f32 %v629, %v878
  %v916 = vmul.f32 %v634, %v878
  %v917 = vmul.f32 %v637, %v878
  %v918 = vmul.f32 %v642, %v878
  %v919 = vmul.f32 %v645, %v878
  %v920 = vmul.f32 %v650, %v878
  %v921 = vmul.f32 %v653, %v878
  %v922 = vmul.f32 %v658, %v878
  %v923 = vmul.f32 %v661, %v878
  %v924 = vmul.f32 %v666, %v878
  %v925 = vmul.f32 %v669, %v878
  %v926 = vmul.f32 %v674, %v878
  %v927 = vmul.f32 %v677, %v878
  %v928 = vmul.f32 %v682, %v878
  %v929 = vmul.f32 %v685, %v878
  %v930 = vmul.f32 %v690, %v878
  %v931 = vmul.f32 %v693, %v878
  %v933 = vlaneseq
  %v934 = vshrl.u32 %v933, 7
  %v935 = vsub.s32 0, %v934
  %v936 = vrot.slane %v873, %v935
  %v938 = vadd.f32 %v880, %v936
  %v939 = vadd.f32 %v881, %v936
  %v940 = vadd.f32 %v882, %v936
  %v941 = vadd.f32 %v883, %v936
  %v942 = vadd.f32 %v884, %v936
  %v943 = vadd.f32 %v885, %v936
  %v944 = vadd.f32 %v886, %v936
  %v945 = vadd.f32 %v887, %v936
  %v946 = vadd.f32 %v888, %v936
  %v947 = vadd.f32 %v889, %v936
  %v948 = vadd.f32 %v890, %v936
  %v949 = vadd.f32 %v891, %v936
  %v950 = vadd.f32 %v892, %v936
  %v951 = vadd.f32 %v893, %v936
  %v952 = vadd.f32 %v894, %v936
  %v953 = vadd.f32 %v895, %v936
  %v954 = vadd.f32 %v896, %v936
  %v955 = vadd.f32 %v897, %v936
  %v956 = vadd.f32 %v898, %v936
  %v957 = vadd.f32 %v899, %v936
  %v958 = vadd.f32 %v900, %v936
  %v959 = vadd.f32 %v901, %v936
  %v960 = vadd.f32 %v902, %v936
  %v961 = vadd.f32 %v903, %v936
  %v962 = vadd.f32 %v904, %v936
  %v963 = vadd.f32 %v905, %v936
  %v964 = vadd.f32 %v906, %v936
  %v965 = vadd.f32 %v907, %v936
  %v966 = vadd.f32 %v908, %v936
  %v967 = vadd.f32 %v909, %v936
  %v968 = vadd.f32 %v910, %v936
  %v969 = vadd.f32 %v911, %v936
  %v970 = vadd.f32 %v912, %v936
  %v971 = vadd.f32 %v913, %v936
  %v972 = vadd.f32 %v914, %v936
  %v973 = vadd.f32 %v915, %v936
  %v974 = vadd.f32 %v916, %v936
  %v975 = vadd.f32 %v917, %v936
  %v976 = vadd.f32 %v918, %v936
  %v977 = vadd.f32 %v919, %v936
  %v978 = vadd.f32 %v920, %v936
  %v979 = vadd.f32 %v921, %v936
  %v980 = vadd.f32 %v922, %v936
  %v981 = vadd.f32 %v923, %v936
  %v982 = vadd.f32 %v924, %v936
  %v983 = vadd.f32 %v925, %v936
  %v984 = vadd.f32 %v926, %v936
  %v985 = vadd.f32 %v927, %v936
  %v986 = vadd.f32 %v928, %v936
  %v987 = vadd.f32 %v929, %v936
  %v988 = vadd.f32 %v930, %v936
  %v989 = vadd.f32 %v931, %v936
  %v990 = vmax.f32 %v938, 0.0
  %v991 = vmax.f32 %v939, 0.0
  %v992 = vmax.f32 %v940, 0.0
  %v993 = vmax.f32 %v941, 0.0
  %v994 = vmax.f32 %v942, 0.0
  %v995 = vmax.f32 %v943, 0.0
  %v996 = vmax.f32 %v944, 0.0
  %v997 = vmax.f32 %v945, 0.0
  %v998 = vmax.f32 %v946, 0.0
  %v999 = vmax.f32 %v947, 0.0
  %v1000 = vmax.f32 %v948, 0.0
  %v1001 = vmax.f32 %v949, 0.0
  %v1002 = vmax.f32 %v950, 0.0
  %v1003 = vmax.f32 %v951, 0.0
  %v1004 = vmax.f32 %v952, 0.0
  %v1005 = vmax.f32 %v953, 0.0
  %v1006 = vmax.f32 %v954, 0.0
  %v1007 = vmax.f32 %v955, 0.0
  %v1008 = vmax.f32 %v956, 0.0
  %v1009 = vmax.f32 %v957, 0.0
  %v1010 = vmax.f32 %v958, 0.0
  %v1011 = vmax.f32 %v959, 0.0
  %v1012 = vmax.f32 %v960, 0.0
  %v1013 = vmax.f32 %v961, 0.0
  %v1014 = vmax.f32 %v962, 0.0
  %v1015 = vmax.f32 %v963, 0.0
  %v1016 = vmax.f32 %v964, 0.0
  %v1017 = vmax.f32 %v965, 0.0
  %v1018 = vmax.f32 %v966, 0.0
  %v1019 = vmax.f32 %v967, 0.0
  %v1020 = vmax.f32 %v968, 0.0
  %v1021 = vmax.f32 %v969, 0.0
  %v1022 = vmax.f32 %v970, 0.0
  %v1023 = vmax.f32 %v971, 0.0
  %v1024 = vmax.f32 %v972, 0.0
  %v1025 = vmax.f32 %v973, 0.0
  %v1026 = vmax.f32 %v974, 0.0
  %v1027 = vmax.f32 %v975, 0.0
  %v1028 = vmax.f32 %v976, 0.0
  %v1029 = vmax.f32 %v977, 0.0
  %v1030 = vmax.f32 %v978, 0.0
  %v1031 = vmax.f32 %v979, 0.0
  %v1032 = vmax.f32 %v980, 0.0
  %v1033 = vmax.f32 %v981, 0.0
  %v1034 = vmax.f32 %v982, 0.0
  %v1035 = vmax.f32 %v983, 0.0
  %v1036 = vmax.f32 %v984, 0.0
  %v1037 = vmax.f32 %v985, 0.0
  %v1038 = vmax.f32 %v986, 0.0
  %v1039 = vmax.f32 %v987, 0.0
  %v1040 = vmax.f32 %v988, 0.0
  %v1041 = vmax.f32 %v989, 0.0
  %v1042 = vmax.f32 %v990, %v1003
  %v1043 = vmax.f32 %v991, %v1004
  %v1044 = vmax.f32 %v992, %v1005
  %v1045 = vmax.f32 %v993, %v1006
  %v1046 = vmax.f32 %v994, %v1007
  %v1047 = vmax.f32 %v995, %v1008
  %v1048 = vmax.f32 %v996, %v1009
  %v1049 = vmax.f32 %v997, %v1010
  %v1050 = vmax.f32 %v998, %v1011
  %v1051 = vmax.f32 %v999, %v1012
  %v1052 = vmax.f32 %v1000, %v1013
  %v1053 = vmax.f32 %v1001, %v1014
  %v1054 = vmax.f32 %v1002, %v1015
  %v1055 = vmax.f32 %v1016, %v1029
  %v1056 = vmax.f32 %v1017, %v1030
  %v1057 = vmax.f32 %v1018, %v1031
  %v1058 = vmax.f32 %v1019, %v1032
  %v1059 = vmax.f32 %v1020, %v1033
  %v1060 = vmax.f32 %v1021, %v1034
  %v1061 = vmax.f32 %v1022, %v1035
  %v1062 = vmax.f32 %v1023, %v1036
  %v1063 = vmax.f32 %v1024, %v1037
  %v1064 = vmax.f32 %v1025, %v1038
  %v1065 = vmax.f32 %v1026, %v1039
  %v1066 = vmax.f32 %v1027, %v1040
  %v1067 = vmax.f32 %v1028, %v1041
  %v1068 = vmax.f32 %v1042, %v1055
  %v1069 = vmax.f32 %v1043, %v1056
  %v1070 = vmax.f32 %v1044, %v1057
  %v1071 = vmax.f32 %v1045, %v1058
  %v1072 = vmax.f32 %v1046, %v1059
  %v1073 = vmax.f32 %v1047, %v1060
  %v1074 = vmax.f32 %v1048, %v1061
  %v1075 = vmax.f32 %v1049, %v1062
  %v1076 = vmax.f32 %v1050, %v1063
  %v1077 = vmax.f32 %v1051, %v1064
  %v1078 = vmax.f32 %v1052, %v1065
  %v1079 = vmax.f32 %v1053, %v1066
  %v1080 = vmax.f32 %v1054, %v1067
  %1081 = vst [vmem:[%s4] sm:$0xff] %v1068
  %1082 = vst [vmem:[%s4 + $0x8] sm:$0xff] %v1069
  %1083 = vst [vmem:[%s4 + $0x10] sm:$0xff] %v1070
  %1084 = vst [vmem:[%s4 + $0x18] sm:$0xff] %v1071
  %1085 = vst [vmem:[%s4 + $0x20] sm:$0xff] %v1072
  %1086 = vst [vmem:[%s4 + $0x28] sm:$0xff] %v1073
  %1087 = vst [vmem:[%s4 + $0x30] sm:$0xff] %v1074
  %1088 = vst [vmem:[%s4 + $0x38] sm:$0xff] %v1075
  %1089 = vst [vmem:[%s4 + $0x40] sm:$0xff] %v1076
  %1090 = vst [vmem:[%s4 + $0x48] sm:$0xff] %v1077
  %1091 = vst [vmem:[%s4 + $0x50] sm:$0xff] %v1078
  %1092 = vst [vmem:[%s4 + $0x58] sm:$0xff] %v1079
  %1093 = vst [vmem:[%s4 + $0x60] sm:$0xff] %v1080
  // Predicated region
  $region18: #{myconvnet_forward.4} parent=0 // pred_check
    _
  $region19: #{myconvnet_forward.4} parent=0 // pred_check_branch
    %1095 = sbr.rel (0) target = $region21
  $region20: #{myconvnet_forward.4} parent=0 // pred_region
    _
  $region21: #{myconvnet_forward.4} parent=0 // pred_fallthru
    _
  // Predicated region
  $region22: #{myconvnet_forward.4} parent=0 // pred_check
    _
  $region23: #{myconvnet_forward.4} parent=0 // pred_check_branch
    %1097 = sbr.rel (0) target = $region25
  $region24: #{myconvnet_forward.4} parent=0 // pred_region
    _
  $region25: #{myconvnet_forward.4} parent=0 // pred_fallthru
    _

// kernel: myconvnet_forward.5
$region0: #{myconvnet_forward.5}
  #allocation0 [shape = 'u32[]', space=smem, size = 0x4, offset = 0x4, fixed_abs, tag = 'smem constant byte address 0x4 - core index']
  #allocation1 [shape = 'u32[144,128]{1,0:T(1,128)}', space=vmem, size = 0x12000, scoped, tag = 'internal scratch']
  %s0 = inlined_call_operand.vmem [shape: bf16[2,1568], index: 0, kind: input, shape index: {}]
  %s1 = inlined_call_operand.vmem [shape: bf16[1568,128], index: 1, kind: input, shape index: {}]
  %s2 = inlined_call_operand.vmem [shape: f32[1,128], index: 2, kind: input, shape index: {}]
  %s3 = inlined_call_operand.hbm [shape: f32[2,128], index: 3, kind: output, shape index: {}]
  %s4 = sld [smem:[#allocation0]]
  $region22: #{myconvnet_forward.5} parent=0
    _
  %s6 = ssub.s32 1, %s4
  %s7 = scalar_select 0, %s6, %s4
  $region1: #{myconvnet_forward.5} parent=0
    #allocation2 [shape = 'u8[1024]{0}', space=vmem, size = 0x400, scoped, tag = 'output window, operand 0, single buffered']
    #allocation3 [shape = 's32[1]{0}', space=sflag, size = 0x4, scoped, tag = 'scoped memory for myconvnet_forward.5']
    %8 = vsyncpa [#allocation3], 0
    // Predicated region
    $region2: #{myconvnet_forward.5} parent=1 // pred_check
      _
    $region3: #{myconvnet_forward.5} parent=1 // pred_check_branch
      %10 = sbr.rel (0) target = $region5
    $region4: #{myconvnet_forward.5} parent=1 // pred_region
      _
    $region5: #{myconvnet_forward.5} parent=1 // pred_fallthru
      _
    // Predicated region
    $region6: #{myconvnet_forward.5} parent=1 // pred_check
      _
    $region7: #{myconvnet_forward.5} parent=1 // pred_check_branch
      %12 = sbr.rel (0) target = $region9
    $region8: #{myconvnet_forward.5} parent=1 // pred_region
      _
    $region9: #{myconvnet_forward.5} parent=1 // pred_fallthru
      _
    // Predicated region
    $region10: #{myconvnet_forward.5} parent=1 // pred_check
      _
    $region11: #{myconvnet_forward.5} parent=1 // pred_check_branch
      %14 = sbr.rel (0) target = $region13
    $region12: #{myconvnet_forward.5} parent=1 // pred_region
      _
    $region13: #{myconvnet_forward.5} parent=1 // pred_fallthru
      _
    %v16 = vld [vmem:[%s0] sm:$0xff]
    %v17 = vld [vmem:[%s0 + $0x8] sm:$0x1f]
    %v18 = vld [vmem:[%s1] sm:$0xf]
    %v19 = vld [vmem:[%s1 + $0x4] sm:$0xf]
    %v20 = vld [vmem:[%s1 + $0x8] sm:$0xf]
    %v21 = vld [vmem:[%s1 + $0xc] sm:$0xf]
    %v22 = vld [vmem:[%s1 + $0x10] sm:$0xf]
    %v23 = vld [vmem:[%s1 + $0x14] sm:$0xf]
    %v24 = vld [vmem:[%s1 + $0x18] sm:$0xf]
    %v25 = vld [vmem:[%s1 + $0x1c] sm:$0xf]
    %v26 = vld [vmem:[%s1 + $0x20] sm:$0xf]
    %v27 = vld [vmem:[%s1 + $0x24] sm:$0xf]
    %v28 = vld [vmem:[%s1 + $0x28] sm:$0xf]
    %v29 = vld [vmem:[%s1 + $0x2c] sm:$0xf]
    %v30 = vld [vmem:[%s1 + $0x30] sm:$0xf]
    %v31 = vld [vmem:[%s1 + $0x34] sm:$0xf]
    %v32 = vld [vmem:[%s1 + $0x38] sm:$0xf]
    %v33 = vld [vmem:[%s1 + $0x3c] sm:$0xf]
    %v34 = vld [vmem:[%s1 + $0x40] sm:$0xf]
    %v35 = vld [vmem:[%s1 + $0x44] sm:$0xf]
    %v36 = vld [vmem:[%s1 + $0x48] sm:$0xf]
    %v37 = vld [vmem:[%s1 + $0x4c] sm:$0xf]
    %v38 = vld [vmem:[%s1 + $0x50] sm:$0xf]
    %v39 = vld [vmem:[%s1 + $0x54] sm:$0xf]
    %v40 = vld [vmem:[%s1 + $0x58] sm:$0xf]
    %v41 = vld [vmem:[%s1 + $0x5c] sm:$0xf]
    %v42 = vld [vmem:[%s1 + $0x60] sm:$0xf]
    %v43 = vld [vmem:[%s1 + $0x64] sm:$0xf]
    %v44 = vld [vmem:[%s1 + $0x68] sm:$0xf]
    %v45 = vld [vmem:[%s1 + $0x6c] sm:$0xf]
    %v46 = vld [vmem:[%s1 + $0x70] sm:$0xf]
    %v47 = vld [vmem:[%s1 + $0x74] sm:$0xf]
    %v48 = vld [vmem:[%s1 + $0x78] sm:$0xf]
    %v49 = vld [vmem:[%s1 + $0x7c] sm:$0xf]
    %v50 = vld [vmem:[%s1 + $0x80] sm:$0xf]
    %v51 = vld [vmem:[%s1 + $0x84] sm:$0xf]
    %v52 = vld [vmem:[%s1 + $0x88] sm:$0xf]
    %v53 = vld [vmem:[%s1 + $0x8c] sm:$0xf]
    %v54 = vld [vmem:[%s1 + $0x90] sm:$0xf]
    %v55 = vld [vmem:[%s1 + $0x94] sm:$0xf]
    %v56 = vld [vmem:[%s1 + $0x98] sm:$0xf]
    %v57 = vld [vmem:[%s1 + $0x9c] sm:$0xf]
    %v58 = vld [vmem:[%s1 + $0xa0] sm:$0xf]
    %v59 = vld [vmem:[%s1 + $0xa4] sm:$0xf]
    %v60 = vld [vmem:[%s1 + $0xa8] sm:$0xf]
    %v61 = vld [vmem:[%s1 + $0xac] sm:$0xf]
    %v62 = vld [vmem:[%s1 + $0xb0] sm:$0xf]
    %v63 = vld [vmem:[%s1 + $0xb4] sm:$0xf]
    %v64 = vld [vmem:[%s1 + $0xb8] sm:$0xf]
    %v65 = vld [vmem:[%s1 + $0xbc] sm:$0xf]
    %v66 = vld [vmem:[%s1 + $0xc0] sm:$0xf]
    %v67 = vld [vmem:[%s1 + $0xc4] sm:$0xf]
    %v68 = vld [vmem:[%s1 + $0xc8] sm:$0xf]
    %v69 = vld [vmem:[%s1 + $0xcc] sm:$0xf]
    %v70 = vld [vmem:[%s1 + $0xd0] sm:$0xf]
    %v71 = vld [vmem:[%s1 + $0xd4] sm:$0xf]
    %v72 = vld [vmem:[%s1 + $0xd8] sm:$0xf]
    %v73 = vld [vmem:[%s1 + $0xdc] sm:$0xf]
    %v74 = vld [vmem:[%s1 + $0xe0] sm:$0xf]
    %v75 = vld [vmem:[%s1 + $0xe4] sm:$0xf]
    %v76 = vld [vmem:[%s1 + $0xe8] sm:$0xf]
    %v77 = vld [vmem:[%s1 + $0xec] sm:$0xf]
    %v78 = vld [vmem:[%s1 + $0xf0] sm:$0xf]
    %v79 = vld [vmem:[%s1 + $0xf4] sm:$0xf]
    %v80 = vld [vmem:[%s1 + $0xf8] sm:$0xf]
    %v81 = vld [vmem:[%s1 + $0xfc] sm:$0xf]
    %v82 = vld [vmem:[%s1 + $0x100] sm:$0xf]
    %v83 = vld [vmem:[%s1 + $0x104] sm:$0xf]
    %v84 = vld [vmem:[%s1 + $0x108] sm:$0xf]
    %v85 = vld [vmem:[%s1 + $0x10c] sm:$0xf]
    %v86 = vld [vmem:[%s1 + $0x110] sm:$0xf]
    %v87 = vld [vmem:[%s1 + $0x114] sm:$0xf]
    %v88 = vld [vmem:[%s1 + $0x118] sm:$0xf]
    %v89 = vld [vmem:[%s1 + $0x11c] sm:$0xf]
    %v90 = vld [vmem:[%s1 + $0x120] sm:$0xf]
    %v91 = vld [vmem:[%s1 + $0x124] sm:$0xf]
    %v92 = vld [vmem:[%s1 + $0x128] sm:$0xf]
    %v93 = vld [vmem:[%s1 + $0x12c] sm:$0xf]
    %v94 = vld [vmem:[%s1 + $0x130] sm:$0xf]
    %v95 = vld [vmem:[%s1 + $0x134] sm:$0xf]
    %v96 = vld [vmem:[%s1 + $0x138] sm:$0xf]
    %v97 = vld [vmem:[%s1 + $0x13c] sm:$0xf]
    %v98 = vld [vmem:[%s1 + $0x140] sm:$0xf]
    %v99 = vld [vmem:[%s1 + $0x144] sm:$0xf]
    %v100 = vld [vmem:[%s1 + $0x148] sm:$0xf]
    %v101 = vld [vmem:[%s1 + $0x14c] sm:$0xf]
    %v102 = vld [vmem:[%s1 + $0x150] sm:$0xf]
    %v103 = vld [vmem:[%s1 + $0x154] sm:$0xf]
    %v104 = vld [vmem:[%s1 + $0x158] sm:$0xf]
    %v105 = vld [vmem:[%s1 + $0x15c] sm:$0xf]
    %v106 = vld [vmem:[%s1 + $0x160] sm:$0xf]
    %v107 = vld [vmem:[%s1 + $0x164] sm:$0xf]
    %v108 = vld [vmem:[%s1 + $0x168] sm:$0xf]
    %v109 = vld [vmem:[%s1 + $0x16c] sm:$0xf]
    %v110 = vld [vmem:[%s1 + $0x170] sm:$0xf]
    %v111 = vld [vmem:[%s1 + $0x174] sm:$0xf]
    %v112 = vld [vmem:[%s1 + $0x178] sm:$0xf]
    %v113 = vld [vmem:[%s1 + $0x17c] sm:$0xf]
    %v114 = vld [vmem:[%s1 + $0x180] sm:$0xf]
    %v115 = vld [vmem:[%s1 + $0x184] sm:$0xf]
    %v116 = vld [vmem:[%s1 + $0x188] sm:$0xf]
    %v117 = vld [vmem:[%s1 + $0x18c] sm:$0xf]
    %v118 = vld [vmem:[%s1 + $0x190] sm:$0xf]
    %v119 = vld [vmem:[%s1 + $0x194] sm:$0xf]
    %v120 = vld [vmem:[%s1 + $0x198] sm:$0xf]
    %v121 = vld [vmem:[%s1 + $0x19c] sm:$0xf]
    %v122 = vld [vmem:[%s1 + $0x1a0] sm:$0xf]
    %v123 = vld [vmem:[%s1 + $0x1a4] sm:$0xf]
    %v124 = vld [vmem:[%s1 + $0x1a8] sm:$0xf]
    %v125 = vld [vmem:[%s1 + $0x1ac] sm:$0xf]
    %v126 = vld [vmem:[%s1 + $0x1b0] sm:$0xf]
    %v127 = vld [vmem:[%s1 + $0x1b4] sm:$0xf]
    %v128 = vld [vmem:[%s1 + $0x1b8] sm:$0xf]
    %v129 = vld [vmem:[%s1 + $0x1bc] sm:$0xf]
    %v130 = vld [vmem:[%s1 + $0x1c0] sm:$0xf]
    %v131 = vld [vmem:[%s1 + $0x1c4] sm:$0xf]
    %v132 = vld [vmem:[%s1 + $0x1c8] sm:$0xf]
    %v133 = vld [vmem:[%s1 + $0x1cc] sm:$0xf]
    %v134 = vld [vmem:[%s1 + $0x1d0] sm:$0xf]
    %v135 = vld [vmem:[%s1 + $0x1d4] sm:$0xf]
    %v136 = vld [vmem:[%s1 + $0x1d8] sm:$0xf]
    %v137 = vld [vmem:[%s1 + $0x1dc] sm:$0xf]
    %v138 = vld [vmem:[%s1 + $0x1e0] sm:$0xf]
    %v139 = vld [vmem:[%s1 + $0x1e4] sm:$0xf]
    %v140 = vld [vmem:[%s1 + $0x1e8] sm:$0xf]
    %v141 = vld [vmem:[%s1 + $0x1ec] sm:$0xf]
    %v142 = vld [vmem:[%s1 + $0x1f0] sm:$0xf]
    %v143 = vld [vmem:[%s1 + $0x1f4] sm:$0xf]
    %v144 = vld [vmem:[%s1 + $0x1f8] sm:$0xf]
    %v145 = vld [vmem:[%s1 + $0x1fc] sm:$0xf]
    %v146 = vld [vmem:[%s1 + $0x200] sm:$0xf]
    %v147 = vld [vmem:[%s1 + $0x204] sm:$0xf]
    %v148 = vld [vmem:[%s1 + $0x208] sm:$0xf]
    %v149 = vld [vmem:[%s1 + $0x20c] sm:$0xf]
    %v150 = vld [vmem:[%s1 + $0x210] sm:$0xf]
    %v151 = vld [vmem:[%s1 + $0x214] sm:$0xf]
    %v152 = vld [vmem:[%s1 + $0x218] sm:$0xf]
    %v153 = vld [vmem:[%s1 + $0x21c] sm:$0xf]
    %v154 = vld [vmem:[%s1 + $0x220] sm:$0xf]
    %v155 = vld [vmem:[%s1 + $0x224] sm:$0xf]
    %v156 = vld [vmem:[%s1 + $0x228] sm:$0xf]
    %v157 = vld [vmem:[%s1 + $0x22c] sm:$0xf]
    %v158 = vld [vmem:[%s1 + $0x230] sm:$0xf]
    %v159 = vld [vmem:[%s1 + $0x234] sm:$0xf]
    %v160 = vld [vmem:[%s1 + $0x238] sm:$0xf]
    %v161 = vld [vmem:[%s1 + $0x23c] sm:$0xf]
    %v162 = vld [vmem:[%s1 + $0x240] sm:$0xf]
    %v163 = vld [vmem:[%s1 + $0x244] sm:$0xf]
    %v164 = vld [vmem:[%s1 + $0x248] sm:$0xf]
    %v165 = vld [vmem:[%s1 + $0x24c] sm:$0xf]
    %v166 = vld [vmem:[%s1 + $0x250] sm:$0xf]
    %v167 = vld [vmem:[%s1 + $0x254] sm:$0xf]
    %v168 = vld [vmem:[%s1 + $0x258] sm:$0xf]
    %v169 = vld [vmem:[%s1 + $0x25c] sm:$0xf]
    %v170 = vld [vmem:[%s1 + $0x260] sm:$0xf]
    %v171 = vld [vmem:[%s1 + $0x264] sm:$0xf]
    %v172 = vld [vmem:[%s1 + $0x268] sm:$0xf]
    %v173 = vld [vmem:[%s1 + $0x26c] sm:$0xf]
    %v174 = vld [vmem:[%s1 + $0x270] sm:$0xf]
    %v175 = vld [vmem:[%s1 + $0x274] sm:$0xf]
    %v176 = vld [vmem:[%s1 + $0x278] sm:$0xf]
    %v177 = vld [vmem:[%s1 + $0x27c] sm:$0xf]
    %v178 = vld [vmem:[%s1 + $0x280] sm:$0xf]
    %v179 = vld [vmem:[%s1 + $0x284] sm:$0xf]
    %v180 = vld [vmem:[%s1 + $0x288] sm:$0xf]
    %v181 = vld [vmem:[%s1 + $0x28c] sm:$0xf]
    %v182 = vld [vmem:[%s1 + $0x290] sm:$0xf]
    %v183 = vld [vmem:[%s1 + $0x294] sm:$0xf]
    %v184 = vld [vmem:[%s1 + $0x298] sm:$0xf]
    %v185 = vld [vmem:[%s1 + $0x29c] sm:$0xf]
    %v186 = vld [vmem:[%s1 + $0x2a0] sm:$0xf]
    %v187 = vld [vmem:[%s1 + $0x2a4] sm:$0xf]
    %v188 = vld [vmem:[%s1 + $0x2a8] sm:$0xf]
    %v189 = vld [vmem:[%s1 + $0x2ac] sm:$0xf]
    %v190 = vld [vmem:[%s1 + $0x2b0] sm:$0xf]
    %v191 = vld [vmem:[%s1 + $0x2b4] sm:$0xf]
    %v192 = vld [vmem:[%s1 + $0x2b8] sm:$0xf]
    %v193 = vld [vmem:[%s1 + $0x2bc] sm:$0xf]
    %v194 = vld [vmem:[%s1 + $0x2c0] sm:$0xf]
    %v195 = vld [vmem:[%s1 + $0x2c4] sm:$0xf]
    %v196 = vld [vmem:[%s1 + $0x2c8] sm:$0xf]
    %v197 = vld [vmem:[%s1 + $0x2cc] sm:$0xf]
    %v198 = vld [vmem:[%s1 + $0x2d0] sm:$0xf]
    %v199 = vld [vmem:[%s1 + $0x2d4] sm:$0xf]
    %v200 = vld [vmem:[%s1 + $0x2d8] sm:$0xf]
    %v201 = vld [vmem:[%s1 + $0x2dc] sm:$0xf]
    %v202 = vld [vmem:[%s1 + $0x2e0] sm:$0xf]
    %v203 = vld [vmem:[%s1 + $0x2e4] sm:$0xf]
    %v204 = vld [vmem:[%s1 + $0x2e8] sm:$0xf]
    %v205 = vld [vmem:[%s1 + $0x2ec] sm:$0xf]
    %v206 = vld [vmem:[%s1 + $0x2f0] sm:$0xf]
    %v207 = vld [vmem:[%s1 + $0x2f4] sm:$0xf]
    %v208 = vld [vmem:[%s1 + $0x2f8] sm:$0xf]
    %v209 = vld [vmem:[%s1 + $0x2fc] sm:$0xf]
    %v210 = vld [vmem:[%s1 + $0x300] sm:$0xf]
    %v211 = vld [vmem:[%s1 + $0x304] sm:$0xf]
    %v212 = vld [vmem:[%s1 + $0x308] sm:$0xf]
    %v213 = vld [vmem:[%s1 + $0x30c] sm:$0xf]
    %v214 = vld [vmem:[%s2] sm:$0x1]
    %v216 = vlaneseq
    %v217 = vshrl.u32 %v216, 7
    %v218 = vsub.s32 0, %v217
    %v219 = vrot.slane %v214, %v218
    %v223 = vcombine.high %v16, %v16
    %v225 = vunpack.c.l.s4 1966171168
    %v226 = vunpack.c.0.s8 %v225
    %v227 = vlaneseq
    %v228 = vshrl.u32 %v227, 7
    %v229 = vsub.s32 %v226, %v228
    %v230 = vrot.slane %v16, %v229
    %v232 = vunpack.c.l.s4 1966171168
    %v233 = vunpack.c.0.s8 %v232
    %v234 = vlaneseq
    %v235 = vshrl.u32 %v234, 7
    %v236 = vsub.s32 %v233, %v235
    %v237 = vrot.slane %v223, %v236
    %v238 = vcombine.high %v230, %v230
    %v239 = vcombine.high %v237, %v237
    %v241 = vunpack.c.l.s4 1966171168
    %v242 = vunpack.c.0.s8 %v241
    %v243 = vlaneseq
    %v244 = vshrl.u32 %v243, 7
    %v245 = vsub.s32 %v242, %v244
    %v246 = vrot.slane %v230, %v245
    %v248 = vunpack.c.l.s4 1966171168
    %v249 = vunpack.c.0.s8 %v248
    %v250 = vlaneseq
    %v251 = vshrl.u32 %v250, 7
    %v252 = vsub.s32 %v249, %v251
    %v253 = vrot.slane %v237, %v252
    %v255 = vunpack.c.l.s4 1966171168
    %v256 = vunpack.c.0.s8 %v255
    %v257 = vlaneseq
    %v258 = vshrl.u32 %v257, 7
    %v259 = vsub.s32 %v256, %v258
    %v260 = vrot.slane %v238, %v259
    %v262 = vunpack.c.l.s4 1966171168
    %v263 = vunpack.c.0.s8 %v262
    %v264 = vlaneseq
    %v265 = vshrl.u32 %v264, 7
    %v266 = vsub.s32 %v263, %v265
    %v267 = vrot.slane %v239, %v266
    %v268 = vcombine.high %v246, %v246
    %v269 = vcombine.high %v253, %v253
    %v270 = vcombine.high %v260, %v260
    %v271 = vcombine.high %v267, %v267
    %v272 = vcombine.high %v17, %v17
    %v274 = vunpack.c.l.s4 1966171168
    %v275 = vunpack.c.0.s8 %v274
    %v276 = vlaneseq
    %v277 = vshrl.u32 %v276, 7
    %v278 = vsub.s32 %v275, %v277
    %v279 = vrot.slane %v17, %v278
    %v281 = vunpack.c.l.s4 1966171168
    %v282 = vunpack.c.0.s8 %v281
    %v283 = vlaneseq
    %v284 = vshrl.u32 %v283, 7
    %v285 = vsub.s32 %v282, %v284
    %v286 = vrot.slane %v272, %v285
    %v287 = vcombine.high %v279, %v279
    %v289 = vunpack.c.l.s4 1966171168
    %v290 = vunpack.c.0.s8 %v289
    %v291 = vlaneseq
    %v292 = vshrl.u32 %v291, 7
    %v293 = vsub.s32 %v290, %v292
    %v294 = vrot.slane %v279, %v293
    %v296 = vunpack.c.l.s4 1966171168
    %v297 = vunpack.c.0.s8 %v296
    %v298 = vlaneseq
    %v299 = vshrl.u32 %v298, 7
    %v300 = vsub.s32 %v297, %v299
    %v301 = vrot.slane %v286, %v300
    %v303 = vunpack.c.l.s4 1966171168
    %v304 = vunpack.c.0.s8 %v303
    %v305 = vlaneseq
    %v306 = vshrl.u32 %v305, 7
    %v307 = vsub.s32 %v304, %v306
    %v308 = vrot.slane %v287, %v307
    %v309 = vcombine.high %v294, %v294
    %v310 = vcombine.high %v308, %v308
    %v519 = vunpack.c.l.b16 %v18
    %v520 = vunpack.c.l.b16 %v19
    %v521 = vunpack.c.l.b16 %v20
    %v522 = vunpack.c.l.b16 %v21
    %v523 = vunpack.c.l.b16 %v22
    %v524 = vunpack.c.l.b16 %v23
    %v525 = vunpack.c.l.b16 %v24
    %v526 = vunpack.c.l.b16 %v25
    %v527 = vunpack.c.l.b16 %v26
    %v528 = vunpack.c.l.b16 %v27
    %v529 = vunpack.c.l.b16 %v28
    %v530 = vunpack.c.l.b16 %v29
    %v531 = vunpack.c.l.b16 %v30
    %v532 = vunpack.c.l.b16 %v31
    %v533 = vunpack.c.l.b16 %v32
    %v534 = vunpack.c.l.b16 %v33
    %v535 = vunpack.c.l.b16 %v34
    %v536 = vunpack.c.l.b16 %v35
    %v537 = vunpack.c.l.b16 %v36
    %v538 = vunpack.c.l.b16 %v37
    %v539 = vunpack.c.l.b16 %v38
    %v540 = vunpack.c.l.b16 %v39
    %v541 = vunpack.c.l.b16 %v40
    %v542 = vunpack.c.l.b16 %v41
    %v543 = vunpack.c.l.b16 %v42
    %v544 = vunpack.c.l.b16 %v43
    %v545 = vunpack.c.l.b16 %v44
    %v546 = vunpack.c.l.b16 %v45
    %v547 = vunpack.c.l.b16 %v46
    %v548 = vunpack.c.l.b16 %v47
    %v549 = vunpack.c.l.b16 %v48
    %v550 = vunpack.c.l.b16 %v49
    %v551 = vunpack.c.l.b16 %v50
    %v552 = vunpack.c.l.b16 %v51
    %v553 = vunpack.c.l.b16 %v52
    %v554 = vunpack.c.l.b16 %v53
    %v555 = vunpack.c.l.b16 %v54
    %v556 = vunpack.c.l.b16 %v55
    %v557 = vunpack.c.l.b16 %v56
    %v558 = vunpack.c.l.b16 %v57
    %v559 = vunpack.c.l.b16 %v58
    %v560 = vunpack.c.l.b16 %v59
    %v561 = vunpack.c.l.b16 %v60
    %v562 = vunpack.c.l.b16 %v61
    %v563 = vunpack.c.l.b16 %v62
    %v564 = vunpack.c.l.b16 %v63
    %v565 = vunpack.c.l.b16 %v64
    %v566 = vunpack.c.l.b16 %v65
    %v567 = vunpack.c.l.b16 %v66
    %v568 = vunpack.c.l.b16 %v67
    %v569 = vunpack.c.l.b16 %v68
    %v570 = vunpack.c.l.b16 %v69
    %v571 = vunpack.c.l.b16 %v70
    %v572 = vunpack.c.l.b16 %v71
    %v573 = vunpack.c.l.b16 %v72
    %v574 = vunpack.c.l.b16 %v73
    %v575 = vunpack.c.l.b16 %v74
    %v576 = vunpack.c.l.b16 %v75
    %v577 = vunpack.c.l.b16 %v76
    %v578 = vunpack.c.l.b16 %v77
    %v579 = vunpack.c.l.b16 %v78
    %v580 = vunpack.c.l.b16 %v79
    %v581 = vunpack.c.l.b16 %v80
    %v582 = vunpack.c.l.b16 %v81
    %v583 = vunpack.c.l.b16 %v82
    %v584 = vunpack.c.l.b16 %v83
    %v585 = vunpack.c.l.b16 %v84
    %v586 = vunpack.c.l.b16 %v85
    %v587 = vunpack.c.l.b16 %v86
    %v588 = vunpack.c.l.b16 %v87
    %v589 = vunpack.c.l.b16 %v88
    %v590 = vunpack.c.l.b16 %v89
    %v591 = vunpack.c.l.b16 %v90
    %v592 = vunpack.c.l.b16 %v91
    %v593 = vunpack.c.l.b16 %v92
    %v594 = vunpack.c.l.b16 %v93
    %v595 = vunpack.c.l.b16 %v94
    %v596 = vunpack.c.l.b16 %v95
    %v597 = vunpack.c.l.b16 %v96
    %v598 = vunpack.c.l.b16 %v97
    %v599 = vunpack.c.l.b16 %v98
    %v600 = vunpack.c.l.b16 %v99
    %v601 = vunpack.c.l.b16 %v100
    %v602 = vunpack.c.l.b16 %v101
    %v603 = vunpack.c.l.b16 %v102
    %v604 = vunpack.c.l.b16 %v103
    %v605 = vunpack.c.l.b16 %v104
    %v606 = vunpack.c.l.b16 %v105
    %v607 = vunpack.c.l.b16 %v106
    %v608 = vunpack.c.l.b16 %v107
    %v609 = vunpack.c.l.b16 %v108
    %v610 = vunpack.c.l.b16 %v109
    %v611 = vunpack.c.l.b16 %v110
    %v612 = vunpack.c.l.b16 %v111
    %v613 = vunpack.c.l.b16 %v112
    %v614 = vunpack.c.l.b16 %v113
    %v615 = vunpack.c.l.b16 %v114
    %v616 = vunpack.c.l.b16 %v115
    %v617 = vunpack.c.l.b16 %v116
    %v618 = vunpack.c.l.b16 %v117
    %v619 = vunpack.c.l.b16 %v118
    %v620 = vunpack.c.l.b16 %v119
    %v621 = vunpack.c.l.b16 %v120
    %v622 = vunpack.c.l.b16 %v121
    %v623 = vunpack.c.l.b16 %v122
    %v624 = vunpack.c.l.b16 %v123
    %v625 = vunpack.c.l.b16 %v124
    %v626 = vunpack.c.l.b16 %v125
    %v627 = vunpack.c.l.b16 %v126
    %v628 = vunpack.c.l.b16 %v127
    %v629 = vunpack.c.l.b16 %v128
    %v630 = vunpack.c.l.b16 %v129
    %v631 = vunpack.c.l.b16 %v130
    %v632 = vunpack.c.l.b16 %v131
    %v633 = vunpack.c.l.b16 %v132
    %v634 = vunpack.c.l.b16 %v133
    %v635 = vunpack.c.l.b16 %v134
    %v636 = vunpack.c.l.b16 %v135
    %v637 = vunpack.c.l.b16 %v136
    %v638 = vunpack.c.l.b16 %v137
    %v639 = vunpack.c.l.b16 %v138
    %v640 = vunpack.c.l.b16 %v139
    %v641 = vunpack.c.l.b16 %v140
    %v642 = vunpack.c.l.b16 %v141
    %v643 = vunpack.c.l.b16 %v142
    %v644 = vunpack.c.l.b16 %v143
    %v645 = vunpack.c.l.b16 %v144
    %v646 = vunpack.c.l.b16 %v145
    %v647 = vunpack.c.l.b16 %v146
    %v648 = vunpack.c.l.b16 %v147
    %v649 = vunpack.c.l.b16 %v148
    %v650 = vunpack.c.l.b16 %v149
    %v651 = vunpack.c.l.b16 %v150
    %v652 = vunpack.c.l.b16 %v151
    %v653 = vunpack.c.l.b16 %v152
    %v654 = vunpack.c.l.b16 %v153
    %v655 = vunpack.c.l.b16 %v154
    %v656 = vunpack.c.l.b16 %v155
    %v657 = vunpack.c.l.b16 %v156
    %v658 = vunpack.c.l.b16 %v157
    %v659 = vunpack.c.l.b16 %v158
    %v660 = vunpack.c.l.b16 %v159
    %v661 = vunpack.c.l.b16 %v160
    %v662 = vunpack.c.l.b16 %v161
    %v663 = vunpack.c.l.b16 %v162
    %v664 = vunpack.c.l.b16 %v163
    %v665 = vunpack.c.l.b16 %v164
    %v666 = vunpack.c.l.b16 %v165
    %v667 = vunpack.c.l.b16 %v166
    %v668 = vunpack.c.l.b16 %v167
    %v669 = vunpack.c.l.b16 %v168
    %v670 = vunpack.c.l.b16 %v169
    %v671 = vunpack.c.l.b16 %v170
    %v672 = vunpack.c.l.b16 %v171
    %v673 = vunpack.c.l.b16 %v172
    %v674 = vunpack.c.l.b16 %v173
    %v675 = vunpack.c.l.b16 %v174
    %v676 = vunpack.c.l.b16 %v175
    %v677 = vunpack.c.l.b16 %v176
    %v678 = vunpack.c.l.b16 %v177
    %v679 = vunpack.c.l.b16 %v178
    %v680 = vunpack.c.l.b16 %v179
    %v681 = vunpack.c.l.b16 %v180
    %v682 = vunpack.c.l.b16 %v181
    %v683 = vunpack.c.l.b16 %v182
    %v684 = vunpack.c.l.b16 %v183
    %v685 = vunpack.c.l.b16 %v184
    %v686 = vunpack.c.l.b16 %v185
    %v687 = vunpack.c.l.b16 %v186
    %v688 = vunpack.c.l.b16 %v187
    %v689 = vunpack.c.l.b16 %v188
    %v690 = vunpack.c.l.b16 %v189
    %v691 = vunpack.c.l.b16 %v190
    %v692 = vunpack.c.l.b16 %v191
    %v693 = vunpack.c.l.b16 %v192
    %v694 = vunpack.c.l.b16 %v193
    %v695 = vunpack.c.l.b16 %v194
    %v696 = vunpack.c.l.b16 %v195
    %v697 = vunpack.c.l.b16 %v196
    %v698 = vunpack.c.l.b16 %v197
    %v699 = vunpack.c.l.b16 %v198
    %v700 = vunpack.c.l.b16 %v199
    %v701 = vunpack.c.l.b16 %v200
    %v702 = vunpack.c.l.b16 %v201
    %v703 = vunpack.c.l.b16 %v202
    %v704 = vunpack.c.l.b16 %v203
    %v705 = vunpack.c.l.b16 %v204
    %v706 = vunpack.c.l.b16 %v205
    %v707 = vunpack.c.l.b16 %v206
    %v708 = vunpack.c.l.b16 %v207
    %v709 = vunpack.c.l.b16 %v208
    %v710 = vunpack.c.l.b16 %v209
    %v711 = vunpack.c.l.b16 %v210
    %v712 = vunpack.c.l.b16 %v211
    %v713 = vunpack.c.l.b16 %v212
    %v714 = vunpack.c.l.b16 %v213
    %v715 = vpack.c.b16 %v520, %v519
    %v716 = vpack.c.b16 %v522, %v521
    %v717 = vpack.c.b16 %v524, %v523
    %v718 = vpack.c.b16 %v526, %v525
    %v719 = vpack.c.b16 %v528, %v527
    %v720 = vpack.c.b16 %v530, %v529
    %v721 = vpack.c.b16 %v532, %v531
    %v722 = vpack.c.b16 %v534, %v533
    %v723 = vpack.c.b16 %v536, %v535
    %v724 = vpack.c.b16 %v538, %v537
    %v725 = vpack.c.b16 %v540, %v539
    %v726 = vpack.c.b16 %v542, %v541
    %v727 = vpack.c.b16 %v544, %v543
    %v728 = vpack.c.b16 %v546, %v545
    %v729 = vpack.c.b16 %v548, %v547
    %v730 = vpack.c.b16 %v550, %v549
    %v731 = vpack.c.b16 %v552, %v551
    %v732 = vpack.c.b16 %v554, %v553
    %v733 = vpack.c.b16 %v556, %v555
    %v734 = vpack.c.b16 %v558, %v557
    %v735 = vpack.c.b16 %v560, %v559
    %v736 = vpack.c.b16 %v562, %v561
    %v737 = vpack.c.b16 %v564, %v563
    %v738 = vpack.c.b16 %v566, %v565
    %v739 = vpack.c.b16 %v568, %v567
    %v740 = vpack.c.b16 %v570, %v569
    %v741 = vpack.c.b16 %v572, %v571
    %v742 = vpack.c.b16 %v574, %v573
    %v743 = vpack.c.b16 %v576, %v575
    %v744 = vpack.c.b16 %v578, %v577
    %v745 = vpack.c.b16 %v580, %v579
    %v746 = vpack.c.b16 %v582, %v581
    %v747 = vpack.c.b16 %v584, %v583
    %v748 = vpack.c.b16 %v586, %v585
    %v749 = vpack.c.b16 %v588, %v587
    %v750 = vpack.c.b16 %v590, %v589
    %v751 = vpack.c.b16 %v592, %v591
    %v752 = vpack.c.b16 %v594, %v593
    %v753 = vpack.c.b16 %v596, %v595
    %v754 = vpack.c.b16 %v598, %v597
    %v755 = vpack.c.b16 %v600, %v599
    %v756 = vpack.c.b16 %v602, %v601
    %v757 = vpack.c.b16 %v604, %v603
    %v758 = vpack.c.b16 %v606, %v605
    %v759 = vpack.c.b16 %v608, %v607
    %v760 = vpack.c.b16 %v610, %v609
    %v761 = vpack.c.b16 %v612, %v611
    %v762 = vpack.c.b16 %v614, %v613
    %v763 = vpack.c.b16 %v616, %v615
    %v764 = vpack.c.b16 %v618, %v617
    %v765 = vpack.c.b16 %v620, %v619
    %v766 = vpack.c.b16 %v622, %v621
    %v767 = vpack.c.b16 %v624, %v623
    %v768 = vpack.c.b16 %v626, %v625
    %v769 = vpack.c.b16 %v628, %v627
    %v770 = vpack.c.b16 %v630, %v629
    %v771 = vpack.c.b16 %v632, %v631
    %v772 = vpack.c.b16 %v634, %v633
    %v773 = vpack.c.b16 %v636, %v635
    %v774 = vpack.c.b16 %v638, %v637
    %v775 = vpack.c.b16 %v640, %v639
    %v776 = vpack.c.b16 %v642, %v641
    %v777 = vpack.c.b16 %v644, %v643
    %v778 = vpack.c.b16 %v646, %v645
    %v779 = vpack.c.b16 %v648, %v647
    %v780 = vpack.c.b16 %v650, %v649
    %v781 = vpack.c.b16 %v652, %v651
    %v782 = vpack.c.b16 %v654, %v653
    %v783 = vpack.c.b16 %v656, %v655
    %v784 = vpack.c.b16 %v658, %v657
    %v785 = vpack.c.b16 %v660, %v659
    %v786 = vpack.c.b16 %v662, %v661
    %v787 = vpack.c.b16 %v664, %v663
    %v788 = vpack.c.b16 %v666, %v665
    %v789 = vpack.c.b16 %v668, %v667
    %v790 = vpack.c.b16 %v670, %v669
    %v791 = vpack.c.b16 %v672, %v671
    %v792 = vpack.c.b16 %v674, %v673
    %v793 = vpack.c.b16 %v676, %v675
    %v794 = vpack.c.b16 %v678, %v677
    %v795 = vpack.c.b16 %v680, %v679
    %v796 = vpack.c.b16 %v682, %v681
    %v797 = vpack.c.b16 %v684, %v683
    %v798 = vpack.c.b16 %v686, %v685
    %v799 = vpack.c.b16 %v688, %v687
    %v800 = vpack.c.b16 %v690, %v689
    %v801 = vpack.c.b16 %v692, %v691
    %v802 = vpack.c.b16 %v694, %v693
    %v803 = vpack.c.b16 %v696, %v695
    %v804 = vpack.c.b16 %v698, %v697
    %v805 = vpack.c.b16 %v700, %v699
    %v806 = vpack.c.b16 %v702, %v701
    %v807 = vpack.c.b16 %v704, %v703
    %v808 = vpack.c.b16 %v706, %v705
    %v809 = vpack.c.b16 %v708, %v707
    %v810 = vpack.c.b16 %v710, %v709
    %v811 = vpack.c.b16 %v712, %v711
    %v812 = vpack.c.b16 %v714, %v713
    %vm911 = vcmask 261120
    %v913 = vsel %vm911, %v301, 0
    %915 = vmatprep.subr.bf16.mxu0 0
    %916 = vmatpush1.bf16.msra.mxu0 %v715
    %917 = vmatprep.subr.bf16.mxu0 0
    %918 = vmatpush1.bf16.msra.mxu0 %v716
    %919 = vmatprep.subr.bf16.mxu0 0
    %920 = vmatpush1.bf16.msra.mxu0 %v717
    %921 = vmatprep.subr.bf16.mxu0 0
    %922 = vmatpush1.bf16.msra.mxu0 %v718
    %923 = vmatprep.subr.bf16.mxu0 0
    %924 = vmatpush1.bf16.msra.mxu0 %v719
    %925 = vmatprep.subr.bf16.mxu0 0
    %926 = vmatpush1.bf16.msra.mxu0 %v720
    %927 = vmatprep.subr.bf16.mxu0 0
    %928 = vmatpush1.bf16.msra.mxu0 %v721
    %929 = vmatprep.subr.bf16.mxu0 0
    %930 = vmatpush1.bf16.msra.mxu0 %v722
    %931 = vmatprep.subr.bf16.mxu0 0
    %932 = vmatpush1.bf16.msra.mxu0 %v723
    %933 = vmatprep.subr.bf16.mxu0 0
    %934 = vmatpush1.bf16.msra.mxu0 %v724
    %935 = vmatprep.subr.bf16.mxu0 0
    %936 = vmatpush1.bf16.msra.mxu0 %v725
    %937 = vmatprep.subr.bf16.mxu0 0
    %938 = vmatpush1.bf16.msra.mxu0 %v726
    %939 = vmatprep.subr.bf16.mxu0 0
    %940 = vmatpush1.bf16.msra.mxu0 %v727
    %941 = vmatprep.subr.bf16.mxu0 0
    %942 = vmatpush1.bf16.msra.mxu0 %v728
    %943 = vmatprep.subr.bf16.mxu0 0
    %944 = vmatpush1.bf16.msra.mxu0 %v729
    %945 = vmatprep.subr.bf16.mxu0 0
    %946 = vmatpush1.bf16.msra.mxu0 %v730
    %947 = vmatprep.mubr.bf16.mxu0 %v260
    %948 = vmatmul.mubr.bf16.gmra.mrb[0].mxu0 %v246
    %v949 = vpop.f32.mrb[0].mxu0
    %v950 = vadd.f32 %v219, %v949
    %v951 = vpop.f32.mrb[0].mxu0
    %v952 = vpop.f32.mrb[0].mxu0
    %v953 = vpop.f32.mrb[0].mxu0
    %954 = vdwg.mxu0
    %955 = vmatprep.subr.bf16.mxu0 0
    %956 = vmatpush1.bf16.msra.mxu0 %v731
    %957 = vmatprep.subr.bf16.mxu0 0
    %958 = vmatpush1.bf16.msra.mxu0 %v732
    %959 = vmatprep.subr.bf16.mxu0 0
    %960 = vmatpush1.bf16.msra.mxu0 %v733
    %961 = vmatprep.subr.bf16.mxu0 0
    %962 = vmatpush1.bf16.msra.mxu0 %v734
    %963 = vmatprep.subr.bf16.mxu0 0
    %964 = vmatpush1.bf16.msra.mxu0 %v735
    %965 = vmatprep.subr.bf16.mxu0 0
    %966 = vmatpush1.bf16.msra.mxu0 %v736
    %967 = vmatprep.subr.bf16.mxu0 0
    %968 = vmatpush1.bf16.msra.mxu0 %v737
    %969 = vmatprep.subr.bf16.mxu0 0
    %970 = vmatpush1.bf16.msra.mxu0 %v738
    %971 = vmatprep.subr.bf16.mxu0 0
    %972 = vmatpush1.bf16.msra.mxu0 %v739
    %973 = vmatprep.subr.bf16.mxu0 0
    %974 = vmatpush1.bf16.msra.mxu0 %v740
    %975 = vmatprep.subr.bf16.mxu0 0
    %976 = vmatpush1.bf16.msra.mxu0 %v741
    %977 = vmatprep.subr.bf16.mxu0 0
    %978 = vmatpush1.bf16.msra.mxu0 %v742
    %979 = vmatprep.subr.bf16.mxu0 0
    %980 = vmatpush1.bf16.msra.mxu0 %v743
    %981 = vmatprep.subr.bf16.mxu0 0
    %982 = vmatpush1.bf16.msra.mxu0 %v744
    %983 = vmatprep.subr.bf16.mxu0 0
    %984 = vmatpush1.bf16.msra.mxu0 %v745
    %985 = vmatprep.subr.bf16.mxu0 0
    %986 = vmatpush1.bf16.msra.mxu0 %v746
    %987 = vmatprep.mubr.bf16.mxu0 %v270
    %988 = vmatmul.mubr.bf16.gmra.mrb[0].mxu0 %v268
    %v989 = vpop.f32.mrb[0].mxu0
    %v990 = vadd.f32 %v950, %v989
    %v991 = vpop.f32.mrb[0].mxu0
    %v992 = vpop.f32.mrb[0].mxu0
    %v993 = vpop.f32.mrb[0].mxu0
    %994 = vdwg.mxu0
    %995 = vmatprep.subr.bf16.mxu0 0
    %996 = vmatpush1.bf16.msra.mxu0 %v747
    %997 = vmatprep.subr.bf16.mxu0 0
    %998 = vmatpush1.bf16.msra.mxu0 %v748
    %999 = vmatprep.subr.bf16.mxu0 0
    %1000 = vmatpush1.bf16.msra.mxu0 %v749
    %1001 = vmatprep.subr.bf16.mxu0 0
    %1002 = vmatpush1.bf16.msra.mxu0 %v750
    %1003 = vmatprep.subr.bf16.mxu0 0
    %1004 = vmatpush1.bf16.msra.mxu0 %v751
    %1005 = vmatprep.subr.bf16.mxu0 0
    %1006 = vmatpush1.bf16.msra.mxu0 %v752
    %1007 = vmatprep.subr.bf16.mxu0 0
    %1008 = vmatpush1.bf16.msra.mxu0 %v753
    %1009 = vmatprep.subr.bf16.mxu0 0
    %1010 = vmatpush1.bf16.msra.mxu0 %v754
    %1011 = vmatprep.subr.bf16.mxu0 0
    %1012 = vmatpush1.bf16.msra.mxu0 %v755
    %1013 = vmatprep.subr.bf16.mxu0 0
    %1014 = vmatpush1.bf16.msra.mxu0 %v756
    %1015 = vmatprep.subr.bf16.mxu0 0
    %1016 = vmatpush1.bf16.msra.mxu0 %v757
    %1017 = vmatprep.subr.bf16.mxu0 0
    %1018 = vmatpush1.bf16.msra.mxu0 %v758
    %1019 = vmatprep.subr.bf16.mxu0 0
    %1020 = vmatpush1.bf16.msra.mxu0 %v759
    %1021 = vmatprep.subr.bf16.mxu0 0
    %1022 = vmatpush1.bf16.msra.mxu0 %v760
    %1023 = vmatprep.subr.bf16.mxu0 0
    %1024 = vmatpush1.bf16.msra.mxu0 %v761
    %1025 = vmatprep.subr.bf16.mxu0 0
    %1026 = vmatpush1.bf16.msra.mxu0 %v762
    %1027 = vmatprep.mubr.bf16.mxu0 %v267
    %1028 = vmatmul.mubr.bf16.gmra.mrb[0].mxu0 %v253
    %v1029 = vpop.f32.mrb[0].mxu0
    %v1030 = vadd.f32 %v990, %v1029
    %v1031 = vpop.f32.mrb[0].mxu0
    %v1032 = vpop.f32.mrb[0].mxu0
    %v1033 = vpop.f32.mrb[0].mxu0
    %1034 = vdwg.mxu0
    %1035 = vmatprep.subr.bf16.mxu0 0
    %1036 = vmatpush1.bf16.msra.mxu0 %v763
    %1037 = vmatprep.subr.bf16.mxu0 0
    %1038 = vmatpush1.bf16.msra.mxu0 %v764
    %1039 = vmatprep.subr.bf16.mxu0 0
    %1040 = vmatpush1.bf16.msra.mxu0 %v765
    %1041 = vmatprep.subr.bf16.mxu0 0
    %1042 = vmatpush1.bf16.msra.mxu0 %v766
    %1043 = vmatprep.subr.bf16.mxu0 0
    %1044 = vmatpush1.bf16.msra.mxu0 %v767
    %1045 = vmatprep.subr.bf16.mxu0 0
    %1046 = vmatpush1.bf16.msra.mxu0 %v768
    %1047 = vmatprep.subr.bf16.mxu0 0
    %1048 = vmatpush1.bf16.msra.mxu0 %v769
    %1049 = vmatprep.subr.bf16.mxu0 0
    %1050 = vmatpush1.bf16.msra.mxu0 %v770
    %1051 = vmatprep.subr.bf16.mxu0 0
    %1052 = vmatpush1.bf16.msra.mxu0 %v771
    %1053 = vmatprep.subr.bf16.mxu0 0
    %1054 = vmatpush1.bf16.msra.mxu0 %v772
    %1055 = vmatprep.subr.bf16.mxu0 0
    %1056 = vmatpush1.bf16.msra.mxu0 %v773
    %1057 = vmatprep.subr.bf16.mxu0 0
    %1058 = vmatpush1.bf16.msra.mxu0 %v774
    %1059 = vmatprep.subr.bf16.mxu0 0
    %1060 = vmatpush1.bf16.msra.mxu0 %v775
    %1061 = vmatprep.subr.bf16.mxu0 0
    %1062 = vmatpush1.bf16.msra.mxu0 %v776
    %1063 = vmatprep.subr.bf16.mxu0 0
    %1064 = vmatpush1.bf16.msra.mxu0 %v777
    %1065 = vmatprep.subr.bf16.mxu0 0
    %1066 = vmatpush1.bf16.msra.mxu0 %v778
    %1067 = vmatprep.mubr.bf16.mxu0 %v271
    %1068 = vmatmul.mubr.bf16.gmra.mrb[0].mxu0 %v269
    %v1069 = vpop.f32.mrb[0].mxu0
    %v1070 = vadd.f32 %v1030, %v1069
    %v1071 = vpop.f32.mrb[0].mxu0
    %v1072 = vpop.f32.mrb[0].mxu0
    %v1073 = vpop.f32.mrb[0].mxu0
    %1074 = vdwg.mxu0
    %1075 = vmatprep.subr.bf16.mxu0 0
    %1076 = vmatpush1.bf16.msra.mxu0 %v779
    %1077 = vmatprep.subr.bf16.mxu0 0
    %1078 = vmatpush1.bf16.msra.mxu0 %v780
    %1079 = vmatprep.subr.bf16.mxu0 0
    %1080 = vmatpush1.bf16.msra.mxu0 %v781
    %1081 = vmatprep.subr.bf16.mxu0 0
    %1082 = vmatpush1.bf16.msra.mxu0 %v782
    %1083 = vmatprep.subr.bf16.mxu0 0
    %1084 = vmatpush1.bf16.msra.mxu0 %v783
    %1085 = vmatprep.subr.bf16.mxu0 0
    %1086 = vmatpush1.bf16.msra.mxu0 %v784
    %1087 = vmatprep.subr.bf16.mxu0 0
    %1088 = vmatpush1.bf16.msra.mxu0 %v785
    %1089 = vmatprep.subr.bf16.mxu0 0
    %1090 = vmatpush1.bf16.msra.mxu0 %v786
    %1091 = vmatprep.subr.bf16.mxu0 0
    %1092 = vmatpush1.bf16.msra.mxu0 %v787
    %1093 = vmatprep.subr.bf16.mxu0 0
    %1094 = vmatpush1.bf16.msra.mxu0 %v788
    %1095 = vmatprep.subr.bf16.mxu0 0
    %1096 = vmatpush1.bf16.msra.mxu0 %v789
    %1097 = vmatprep.subr.bf16.mxu0 0
    %1098 = vmatpush1.bf16.msra.mxu0 %v790
    %1099 = vmatprep.subr.bf16.mxu0 0
    %1100 = vmatpush1.bf16.msra.mxu0 %v791
    %1101 = vmatprep.subr.bf16.mxu0 0
    %1102 = vmatpush1.bf16.msra.mxu0 %v792
    %1103 = vmatprep.subr.bf16.mxu0 0
    %1104 = vmatpush1.bf16.msra.mxu0 %v793
    %1105 = vmatprep.subr.bf16.mxu0 0
    %1106 = vmatpush1.bf16.msra.mxu0 %v794
    %1107 = vmatprep.mubr.bf16.mxu0 %v308
    %1108 = vmatmul.mubr.bf16.gmra.mrb[0].mxu0 %v294
    %v1109 = vpop.f32.mrb[0].mxu0
    %v1110 = vadd.f32 %v1070, %v1109
    %v1111 = vpop.f32.mrb[0].mxu0
    %v1112 = vpop.f32.mrb[0].mxu0
    %v1113 = vpop.f32.mrb[0].mxu0
    %1114 = vdwg.mxu0
    %1115 = vmatprep.subr.bf16.mxu0 0
    %1116 = vmatpush1.bf16.msra.mxu0 %v795
    %1117 = vmatprep.subr.bf16.mxu0 0
    %1118 = vmatpush1.bf16.msra.mxu0 %v796
    %1119 = vmatprep.subr.bf16.mxu0 0
    %1120 = vmatpush1.bf16.msra.mxu0 %v797
    %1121 = vmatprep.subr.bf16.mxu0 0
    %1122 = vmatpush1.bf16.msra.mxu0 %v798
    %1123 = vmatprep.subr.bf16.mxu0 0
    %1124 = vmatpush1.bf16.msra.mxu0 %v799
    %1125 = vmatprep.subr.bf16.mxu0 0
    %1126 = vmatpush1.bf16.msra.mxu0 %v800
    %1127 = vmatprep.subr.bf16.mxu0 0
    %1128 = vmatpush1.bf16.msra.mxu0 %v801
    %1129 = vmatprep.subr.bf16.mxu0 0
    %1130 = vmatpush1.bf16.msra.mxu0 %v802
    %1131 = vmatprep.subr.bf16.mxu0 0
    %1132 = vmatpush1.bf16.msra.mxu0 %v803
    %1133 = vmatprep.subr.bf16.mxu0 0
    %1134 = vmatpush1.bf16.msra.mxu0 %v804
    %1135 = vmatprep.subr.bf16.mxu0 0
    %1136 = vmatpush1.bf16.msra.mxu0 %v805
    %1137 = vmatprep.subr.bf16.mxu0 0
    %1138 = vmatpush1.bf16.msra.mxu0 %v806
    %1139 = vmatprep.subr.bf16.mxu0 0
    %1140 = vmatpush1.bf16.msra.mxu0 %v807
    %1141 = vmatprep.subr.bf16.mxu0 0
    %1142 = vmatpush1.bf16.msra.mxu0 %v808
    %1143 = vmatprep.subr.bf16.mxu0 0
    %1144 = vmatpush1.bf16.msra.mxu0 %v809
    %1145 = vmatprep.subr.bf16.mxu0 0
    %1146 = vmatpush1.bf16.msra.mxu0 %v810
    %1147 = vmatprep.mubr.bf16.mxu0 %v310
    %1148 = vmatmul.mubr.bf16.gmra.mrb[0].mxu0 %v309
    %v1149 = vpop.f32.mrb[0].mxu0
    %v1150 = vadd.f32 %v1110, %v1149
    %v1151 = vpop.f32.mrb[0].mxu0
    %v1152 = vpop.f32.mrb[0].mxu0
    %v1153 = vpop.f32.mrb[0].mxu0
    %1154 = vdwg.mxu0
    %1155 = vmatprep.subr.bf16.mxu0 0
    %1156 = vmatpush1.bf16.msra.mxu0 %v811
    %1157 = vmatprep.subr.bf16.mxu0 0
    %1158 = vmatpush1.bf16.msra.mxu0 %v812
    %1159 = vmatprep.subr.bf16.mxu0 0
    %1160 = vmatpush1.bf16.msra.mxu0 0
    %1161 = vmatprep.subr.bf16.mxu0 0
    %1162 = vmatpush1.bf16.msra.mxu0 0
    %1163 = vmatprep.subr.bf16.mxu0 0
    %1164 = vmatpush1.bf16.msra.mxu0 0
    %1165 = vmatprep.subr.bf16.mxu0 0
    %1166 = vmatpush1.bf16.msra.mxu0 0
    %1167 = vmatprep.subr.bf16.mxu0 0
    %1168 = vmatpush1.bf16.msra.mxu0 0
    %1169 = vmatprep.subr.bf16.mxu0 0
    %1170 = vmatpush1.bf16.msra.mxu0 0
    %1171 = vmatprep.subr.bf16.mxu0 0
    %1172 = vmatpush1.bf16.msra.mxu0 0
    %1173 = vmatprep.subr.bf16.mxu0 0
    %1174 = vmatpush1.bf16.msra.mxu0 0
    %1175 = vmatprep.subr.bf16.mxu0 0
    %1176 = vmatpush1.bf16.msra.mxu0 0
    %1177 = vmatprep.subr.bf16.mxu0 0
    %1178 = vmatpush1.bf16.msra.mxu0 0
    %1179 = vmatprep.subr.bf16.mxu0 0
    %1180 = vmatpush1.bf16.msra.mxu0 0
    %1181 = vmatprep.subr.bf16.mxu0 0
    %1182 = vmatpush1.bf16.msra.mxu0 0
    %1183 = vmatprep.subr.bf16.mxu0 0
    %1184 = vmatpush1.bf16.msra.mxu0 0
    %1185 = vmatprep.subr.bf16.mxu0 0
    %1186 = vmatpush1.bf16.msra.mxu0 0
    %1187 = vmatprep.mubr.bf16.mxu0 0
    %1188 = vmatmul.mubr.bf16.gmra.mrb[0].mxu0 %v913
    %v1189 = vpop.f32.mrb[0].mxu0
    %v1190 = vadd.f32 %v1150, %v1189
    %v1191 = vpop.f32.mrb[0].mxu0
    %v1192 = vpop.f32.mrb[0].mxu0
    %v1193 = vpop.f32.mrb[0].mxu0
    %1194 = vdwg.mxu0
    %1195 = vst [vmem:[#allocation2] sm:$0x3] %v1190
    // Predicated region
    $region14: #{myconvnet_forward.5} parent=1 // pred_check
      _
    $region15: #{myconvnet_forward.5} parent=1 // pred_check_branch
      %1197 = sbr.rel (0) target = $region17
    $region16: #{myconvnet_forward.5} parent=1 // pred_region
      %s1199 = ssub.s32 32, 32
      %1200 = vsyncadd [#allocation3], %s1199
      %s1202 = sshll.u32 [#allocation2], 4
      %s1203 = int_to_ptr.vmem [resolvable:$true] %s1202
      %1205 = dma.vmem_to_hbm [thread:$0]  %s1203, 32, %s3, [#allocation3]
    $region17: #{myconvnet_forward.5} parent=1 // pred_fallthru
      _
    // Predicated region
    $region18: #{myconvnet_forward.5} parent=1 // pred_check
      _
    $region19: #{myconvnet_forward.5} parent=1 // pred_check_branch
      %1207 = sbr.rel (0) target = $region21
    $region20: #{myconvnet_forward.5} parent=1 // pred_region
      %1208 = dma.done [#allocation3], 32
    $region21: #{myconvnet_forward.5} parent=1 // pred_fallthru
      _
    %1209 = vsyncpa [#allocation3], 1

</llo_original>
